<compile_context>
chip_gen: v5e
topology: v5e:2x2
jax: 0.10.0
libtpu: 0.0.40
codegen_flags: <defaults>
</compile_context>

<pallas_src>
import functools

import numpy as np

import jax
import jax.numpy as jnp
from jax import lax
from jax.experimental import pallas as pl
from jax.experimental.pallas import tpu as pltpu


def _round_up(x: int, m: int) -> int:
    return ((x + m - 1) // m) * m


# ---------------------------------------------------------------------------
# Bilinear interpolation matrix (PyTorch align_corners=False semantics):
# src = (o + 0.5)/scale - 0.5, negative src clamped, indices edge-clamped.
# ---------------------------------------------------------------------------
def _bilinear_matrix(in_size: int, scale: int) -> np.ndarray:
    out_size = in_size * scale
    o = np.arange(out_size, dtype=np.float64)
    src = (o + 0.5) / float(scale) - 0.5
    src = np.maximum(src, 0.0)                     # PyTorch clamps negative src
    i0 = np.floor(src)
    frac = src - i0
    lo = np.clip(i0, 0, in_size - 1).astype(np.int64)
    hi = np.clip(i0 + 1, 0, in_size - 1).astype(np.int64)
    mat = np.zeros((out_size, in_size), dtype=np.float64)
    mat[np.arange(out_size), lo] += 1.0 - frac
    mat[np.arange(out_size), hi] += frac           # lo == hi at edges -> weight 1
    return mat                                     # weights are k/8: exact in bf16


# ---------------------------------------------------------------------------
# Kernel: one NCHW output block (TILE_C, 4*TILE_H, 4W) per grid step.
# ---------------------------------------------------------------------------
def _head_kernel(xw_ref, w_ref, b_ref, uhb_ref, uwt_ref, o_ref, wup_ref, *,
                 tile_c: int, s_w: int):
    # xw_ref : (Cin, THP, W)            VMEM bf16  (pre-gathered halo window)
    # w_ref  : (TILE_C, Cin)            VMEM bf16  (1x1 conv weight tile)
    # b_ref  : (TILE_C, 1, 1)           VMEM f32
    # uhb_ref: (4*TILE_H, THP)          VMEM bf16  (banded row-interp matrix, this tile)
    # uwt_ref: (W, 4W)                  VMEM bf16  (col-interp matrix, transposed)
    # o_ref  : (TILE_C, 4*TILE_H, 4W)   VMEM       (NCHW output block)
    # wup_ref: (THP, TILE_C*4W)         VMEM bf16  scratch (H-upsample RHS)
    x_win = xw_ref[...]                                   # (Cin, THP, W) bf16
    thp = x_win.shape[1]
    w_in = x_win.shape[2]

    # (1) 1x1 conv == channel contraction on the MXU (fp32 accumulate) + bias.
    logits = lax.dot_general(
        w_ref[...], x_win,
        dimension_numbers=(((1,), (0,)), ((), ())),
        preferred_element_type=jnp.float32)               # (TILE_C, THP, W) f32
    logits = (logits + b_ref[...]).astype(jnp.bfloat16)

    # (2) width x4 upsample: ONE lane-dense matmul; rows = (c, k).
    #     THP % 8 == 0 so the leading-dim merge is a free sublane relabel.
    up = jnp.dot(logits.reshape(tile_c * thp, w_in), uwt_ref[...],
                 preferred_element_type=jnp.float32)      # (TILE_C*THP, 4W)
    up = up.astype(jnp.bfloat16).reshape(tile_c, thp, s_w)

    # Assemble the H-upsample RHS (THP, TILE_C*4W) in VMEM scratch with cheap
    # lane-offset slice stores (vreg-aligned when 4W % 128 == 0, i.e. W % 32 == 0).
    for c in range(tile_c):
        wup_ref[:, c * s_w:(c + 1) * s_w] = up[c]

    # (3) height x4 upsample: ONE matmul (4*TILE_H, THP) @ (THP, TILE_C*4W).
    big = jnp.dot(uhb_ref[...], wup_ref[...],
                  preferred_element_type=jnp.float32)     # (4*TILE_H, TILE_C*4W)
    big = big.astype(o_ref.dtype)

    # NCHW channel-plane stores: full-width (4W-lane) stores, lane slices of `big`.
    for c in range(tile_c):
        o_ref[c] = big[:, c * s_w:(c + 1) * s_w]


# ---------------------------------------------------------------------------
# VMEM budgeting / tile selection (v5e / v6e: ~128 MiB, v7x: 64 MiB per TC).
# ---------------------------------------------------------------------------
def _vmem_cap_bytes() -> int:
    cap = 64 * 1024 * 1024
    try:
        info = pltpu.get_tpu_info()
        cap = int(getattr(info, "vmem_capacity_bytes", cap)) or cap
    except Exception:
        pass
    # Leave headroom for Mosaic-internal scratch / semaphores:
    # 128 MiB parts -> ~105 MiB scoped, 64 MiB parts (v7x) -> ~52 MiB scoped.
    return max(min(cap - 8 * 1024 * 1024, int(cap * 0.82)), 16 * 1024 * 1024)


def _vmem_estimate(cin, tc, th, w, s, out_isz):
    thp = _round_up(th + 2, 8)
    sw, sth = s * w, s * th
    xw_blk = cin * thp * w * 2 * 2                  # halo window, double buffered
    out_blk = tc * sth * sw * out_isz * 2           # NCHW output block, double buffered
    par_blk = tc * cin * 2 * 2 + tc * 8 + sth * thp * 2 * 2 + w * sw * 2
    scratch = thp * tc * sw * 2                     # H-upsample RHS scratch
    temps = (tc * thp * w * (4 + 2)                 # conv logits f32 + bf16
             + tc * thp * sw * (4 + 2)              # W-upsampled   f32 + bf16
             + sth * tc * sw * (4 + out_isz))       # H-upsampled   f32 + store cast
    return int(1.15 * (xw_blk + out_blk + par_blk + scratch + temps))


def _pick_tiles(cin, cout, h, w, s, out_isz, budget):
    # tile_c: divisor of Cout (<= 32, VMEM / MXU-M trade-off); no alignment needed
    # because the weight/bias arrays are reshaped to (n_ct, tile_c, ...).
    # tile_h: divisor of H with 4*tile_h % 8 == 0 (or the whole H).
    tcs = [d for d in range(1, cout + 1) if cout % d == 0 and d <= 32] or [1]
    ths = [d for d in range(1, h + 1) if h % d == 0 and ((s * d) % 8 == 0 or d == h)]
    best = None
    for tc in tcs:
        for th in ths:
            if _vmem_estimate(cin, tc, th, w, s, out_isz) > budget:
                continue
            nth = h // th
            # Prefer >=2 row tiles (keeps the spatial axis splittable across the two
            # v7x TensorCores even at N=1), then larger row tiles, then larger tc.
            score = (1 if nth >= 2 else 0, min(s * th, 256), tc, th)
            if best is None or score > best[0]:
                best = (score, tc, th)
    if best is None:
        return min(tcs), min(ths)
    return best[1], best[2]


# ---------------------------------------------------------------------------
# Public wrapper: (N, mask_dim, H, W) NCHW -> (N, num_classes, 4H, 4W) NCHW.
# ---------------------------------------------------------------------------
def per_pixel_baseline_head(mask_features, conv_w, conv_b, *,
                            common_stride=4, tile_h=None, tile_c=None,
                            out_dtype=jnp.bfloat16):   # bf16 halves HBM writeback
    N, Cin, H, W = mask_features.shape
    Cout = conv_w.shape[0]
    s = int(common_stride)
    out_isz = jnp.dtype(out_dtype).itemsize

    budget = _vmem_cap_bytes()
    tc_auto, th_auto = _pick_tiles(Cin, Cout, H, W, s, out_isz, budget)
    tile_c = tc_auto if tile_c is None else tile_c
    tile_h = th_auto if tile_h is None else tile_h
    assert Cout % tile_c == 0, (Cout, tile_c)
    assert H % tile_h == 0, (H, tile_h)
    assert (s * tile_h) % 8 == 0 or tile_h == H, (s, tile_h)
    n_ct = Cout // tile_c
    n_th = H // tile_h
    thp = _round_up(tile_h + 2, 8)                   # halo window rows, sublane aligned

    # --- kernel operands (bf16 for the MXU; fp32 accumulation inside) --------------
    x = mask_features.astype(jnp.bfloat16)

    # Overlapping halo windows are materialized once in HBM (row gather) so every grid
    # step fetches a small non-overlapping (Cin, THP, W) block: no full-image VMEM
    # residency and no unaligned in-kernel dynamic slice.
    src = np.arange(n_th)[:, None] * tile_h - 1 + np.arange(thp)[None, :]   # (n_th, thp)
    row_idx = np.clip(src, 0, H - 1).reshape(-1)
    xw = jnp.take(x, jnp.asarray(row_idx, jnp.int32), axis=2)               # (N,Cin,n_th*thp,W)
    xw = xw.reshape(N, Cin, n_th, thp, W)

    # Weight / bias reshaped so the channel tile is a full leading axis (keeps BlockSpec
    # last-two-dims constraints satisfied for any tile_c).
    w3 = conv_w.reshape(Cout, Cin).astype(jnp.bfloat16).reshape(n_ct, tile_c, Cin)
    b3 = conv_b.astype(jnp.float32).reshape(n_ct, tile_c, 1, 1)

    # Interpolation matrices; uh is pre-sliced into the (4*tile_h, thp) band each row
    # tile needs (all of its non-zero weights lie inside its halo window; padded window
    # rows get zero weight).
    uh = _bilinear_matrix(H, s)                      # (s*H, H)
    uw = _bilinear_matrix(W, s)                      # (s*W, W)
    band = np.zeros((n_th, s * tile_h, thp), np.float64)
    for t in range(n_th):
        valid = (src[t] >= 0) & (src[t] < H)
        band[t][:, valid] = uh[t * s * tile_h:(t + 1) * s * tile_h, src[t][valid]]
    # Rows of uh sum to 1; equal band row sums <=> no non-zero weight was dropped.
    assert np.allclose(band.sum(-1), 1.0), "bilinear band missed a non-zero weight"
    uh_band = jnp.asarray(band, jnp.bfloat16)        # k/8 weights -> exact in bf16
    uwt = jnp.asarray(uw.T, jnp.bfloat16)            # (W, s*W)

    flops = int(2 * N * n_th * Cout * thp
                * (Cin * W + W * s * W + s * tile_h * s * W))
    bytes_accessed = int(N * Cin * n_th * thp * W * 2
                         + N * Cout * s * H * s * W * out_isz
                         + Cout * Cin * 2 + Cout * 4
                         + uh_band.size * 2 + W * s * W * 2)

    kernel = functools.partial(_head_kernel, tile_c=tile_c, s_w=s * W)
    out = pl.pallas_call(
        kernel,
        out_shape=jax.ShapeDtypeStruct((N, Cout, s * H, s * W), out_dtype),
        grid_spec=pltpu.PrefetchScalarGridSpec(
            num_scalar_prefetch=0,
            # ct innermost: the x-window block index is ct-invariant, so the window is
            # fetched once per (n, t) and reused across the channel tiles.
            grid=(N, n_th, n_ct),
            in_specs=[
                pl.BlockSpec((None, Cin, None, thp, W),
                             lambda n, t, c: (n, 0, t, 0, 0)),
                pl.BlockSpec((None, tile_c, Cin), lambda n, t, c: (c, 0, 0)),
                pl.BlockSpec((None, tile_c, 1, 1), lambda n, t, c: (c, 0, 0, 0)),
                pl.BlockSpec((None, s * tile_h, thp), lambda n, t, c: (t, 0, 0)),
                # Grid-invariant: single-buffer to save VMEM.
                pl.BlockSpec((W, s * W), lambda n, t, c: (0, 0),
                             pipeline_mode=pl.Buffered(1)),
            ],
            out_specs=pl.BlockSpec((None, tile_c, s * tile_h, s * W),
                                   lambda n, t, c: (n, c, t, 0)),
            scratch_shapes=[pltpu.VMEM((thp, tile_c * s * W), jnp.bfloat16)],
        ),
        compiler_params=pltpu.CompilerParams(
            dimension_semantics=("parallel", "parallel", "arbitrary"),
            vmem_limit_bytes=int(budget)),
        cost_estimate=pl.CostEstimate(flops=flops, transcendentals=0,
                                      bytes_accessed=bytes_accessed),
    )(xw, w3, b3, uh_band, uwt)
    return out


# ---------------------------------------------------------------------------
# Pure-JAX reference (same bf16 input/weight rounding, fp32 math) for the self-test.
# ---------------------------------------------------------------------------
def _reference(mask_features, conv_w, conv_b, common_stride=4):
    N, Cin, H, W = mask_features.shape
    Cout = conv_w.shape[0]
    s = common_stride
    hp = lax.Precision.HIGHEST
    xb = mask_features.astype(jnp.bfloat16).astype(jnp.float32)
    wb = conv_w.reshape(Cout, Cin).astype(jnp.bfloat16).astype(jnp.float32)
    logits = jnp.einsum('oc,nchw->nohw', wb, xb, precision=hp)
    logits = logits + conv_b.astype(jnp.float32)[None, :, None, None]
    uh = jnp.asarray(_bilinear_matrix(H, s), jnp.float32)
    uw = jnp.asarray(_bilinear_matrix(W, s), jnp.float32)
    up = jnp.einsum('nohw,qw->nohq', logits, uw, precision=hp)
    up = jnp.einsum('nohq,ph->nopq', up, uh, precision=hp)
    return up


if __name__ == "__main__":
    key = jax.random.PRNGKey(0)
    N, mask_dim, H, W = 2, 32, 16, 32
    num_classes = 16

    k1, k2, k3 = jax.random.split(key, 3)
    mask_features = jax.random.normal(k1, (N, mask_dim, H, W), jnp.float32)

    # predictor = Conv2d(mask_dim, num_classes, 1); c2_msra_fill -> kaiming normal
    # (fan_out, relu) weights.  (Real init zeroes the bias; small random bias here so
    # the bias path is exercised by the test.)
    fan_out = num_classes * 1 * 1
    std = (2.0 / fan_out) ** 0.5
    conv_w = std * jax.random.normal(k2, (num_classes, mask_dim, 1, 1), jnp.float32)
    conv_b = 0.1 * jax.random.normal(k3, (num_classes,), jnp.float32)

    out = per_pixel_baseline_head(mask_features, conv_w, conv_b)
    out = jax.block_until_ready(out)

    ref = _reference(mask_features, conv_w, conv_b)
    assert out.shape == (N, num_classes, 4 * H, 4 * W), out.shape
    err = float(jnp.max(jnp.abs(out.astype(jnp.float32) - ref)))
    scale = float(jnp.max(jnp.abs(ref))) + 1e-6
    assert err / scale < 2e-2, (err, scale)

    print("KERNEL_OK")
</pallas_src>

<mosaic_0001>
module attributes {stable_mosaic.version = 11 : i64} {
  func.func @_head_kernel(%arg0: i32, %arg1: i32, %arg2: i32, %arg3: memref<1x32x1x16x32xbf16, #tpu.memory_space<vmem>>, %arg4: memref<1x16x32xbf16, #tpu.memory_space<vmem>>, %arg5: memref<1x16x1x1xf32, #tpu.memory_space<vmem>>, %arg6: memref<1x32x16xbf16, #tpu.memory_space<vmem>>, %arg7: memref<32x128xbf16, #tpu.memory_space<vmem>>, %arg8: memref<1x16x32x128xbf16, #tpu.memory_space<vmem>>, %arg9: memref<16x2048xbf16, #tpu.memory_space<vmem>>) attributes {dimension_semantics = [#tpu.dimension_semantics<parallel>, #tpu.dimension_semantics<parallel>, #tpu.dimension_semantics<arbitrary>], iteration_bounds = array<i64: 2, 2, 1>, scalar_prefetch = 0 : i64, scratch_operands = 1 : i64, tpu.core_type = #tpu.core_type<tc>, window_params = [{transform_indices = @transform_0, window_bounds = array<i64: 1, 32, 1, 16, 32>}, {transform_indices = @transform_1, window_bounds = array<i64: 1, 16, 32>}, {transform_indices = @transform_2, window_bounds = array<i64: 1, 16, 1, 1>}, {transform_indices = @transform_3, window_bounds = array<i64: 1, 32, 16>}, {pipeline_mode = #tpu.pipeline_mode<synchronous>, transform_indices = @transform_4, window_bounds = array<i64: 32, 128>}, {transform_indices = @transform_5, window_bounds = array<i64: 1, 16, 32, 128>}]} {
    %c0 = arith.constant 0 : index
    %c0_0 = arith.constant 0 : index
    %c0_1 = arith.constant 0 : index
    %c0_2 = arith.constant 0 : index
    %c0_3 = arith.constant 0 : index
    %0 = vector.load %arg3[%c0, %c0_0, %c0_1, %c0_2, %c0_3] : memref<1x32x1x16x32xbf16, #tpu.memory_space<vmem>>, vector<1x32x1x16x32xbf16>
    %1 = vector.shape_cast %0 : vector<1x32x1x16x32xbf16> to vector<32x16x32xbf16>
    %c0_4 = arith.constant 0 : index
    %c0_5 = arith.constant 0 : index
    %c0_6 = arith.constant 0 : index
    %2 = vector.load %arg4[%c0_4, %c0_5, %c0_6] : memref<1x16x32xbf16, #tpu.memory_space<vmem>>, vector<1x16x32xbf16>
    %3 = vector.shape_cast %2 : vector<1x16x32xbf16> to vector<16x32xbf16>
    %cst = arith.constant dense<0.000000e+00> : vector<16x16x32xf32>
    %4 = tpu.matmul %3, %1, %cst {dimension_numbers = #tpu.dot_dimension_numbers<[1], [0], [0], [1, 2], [0, 0, 1, 1, 1, 2], [], []>} : vector<16x32xbf16>, vector<32x16x32xbf16>, vector<16x16x32xf32> -> vector<16x16x32xf32>
    %c0_7 = arith.constant 0 : index
    %c0_8 = arith.constant 0 : index
    %c0_9 = arith.constant 0 : index
    %c0_10 = arith.constant 0 : index
    %5 = vector.load %arg5[%c0_7, %c0_8, %c0_9, %c0_10] : memref<1x16x1x1xf32, #tpu.memory_space<vmem>>, vector<1x16x1x1xf32>
    %6 = vector.shape_cast %5 : vector<1x16x1x1xf32> to vector<16x1x1xf32>
    %7 = vector.broadcast %6 : vector<16x1x1xf32> to vector<16x16x32xf32>
    %8 = arith.addf %4, %7 : vector<16x16x32xf32>
    %9 = arith.truncf %8 : vector<16x16x32xf32> to vector<16x16x32xbf16>
    %10 = vector.shape_cast %9 : vector<16x16x32xbf16> to vector<256x32xbf16>
    %c0_11 = arith.constant 0 : index
    %c0_12 = arith.constant 0 : index
    %11 = vector.load %arg7[%c0_11, %c0_12] : memref<32x128xbf16, #tpu.memory_space<vmem>>, vector<32x128xbf16>
    %cst_13 = arith.constant dense<0.000000e+00> : vector<256x128xf32>
    %12 = tpu.matmul %10, %11, %cst_13 {dimension_numbers = #tpu.dot_dimension_numbers<[1], [0], [0], [1], [0, 0, 1, 1], [], []>} : vector<256x32xbf16>, vector<32x128xbf16>, vector<256x128xf32> -> vector<256x128xf32>
    %13 = arith.truncf %12 : vector<256x128xf32> to vector<256x128xbf16>
    %14 = vector.shape_cast %13 : vector<256x128xbf16> to vector<16x16x128xbf16>
    %15 = vector.extract_strided_slice %14 {offsets = [0, 0, 0], sizes = [1, 16, 128], strides = [1, 1, 1]} : vector<16x16x128xbf16> to vector<1x16x128xbf16>
    %16 = vector.shape_cast %15 : vector<1x16x128xbf16> to vector<16x128xbf16>
    %c0_14 = arith.constant 0 : index
    %c0_15 = arith.constant 0 : index
    %17 = vector.load %arg9[%c0_14, %c0_15] : memref<16x2048xbf16, #tpu.memory_space<vmem>>, vector<16x128xbf16>
    tpu.vector_store %arg9[%c0_14, %c0_15], %16 {strides = array<i32>} : memref<16x2048xbf16, #tpu.memory_space<vmem>>, vector<16x128xbf16>,
    %18 = vector.extract_strided_slice %14 {offsets = [1, 0, 0], sizes = [1, 16, 128], strides = [1, 1, 1]} : vector<16x16x128xbf16> to vector<1x16x128xbf16>
    %19 = vector.shape_cast %18 : vector<1x16x128xbf16> to vector<16x128xbf16>
    %c0_16 = arith.constant 0 : index
    %c128 = arith.constant 128 : index
    %20 = vector.load %arg9[%c0_16, %c128] : memref<16x2048xbf16, #tpu.memory_space<vmem>>, vector<16x128xbf16>
    tpu.vector_store %arg9[%c0_16, %c128], %19 {strides = array<i32>} : memref<16x2048xbf16, #tpu.memory_space<vmem>>, vector<16x128xbf16>,
    %21 = vector.extract_strided_slice %14 {offsets = [2, 0, 0], sizes = [1, 16, 128], strides = [1, 1, 1]} : vector<16x16x128xbf16> to vector<1x16x128xbf16>
    %22 = vector.shape_cast %21 : vector<1x16x128xbf16> to vector<16x128xbf16>
    %c0_17 = arith.constant 0 : index
    %c256 = arith.constant 256 : index
    %23 = vector.load %arg9[%c0_17, %c256] : memref<16x2048xbf16, #tpu.memory_space<vmem>>, vector<16x128xbf16>
    tpu.vector_store %arg9[%c0_17, %c256], %22 {strides = array<i32>} : memref<16x2048xbf16, #tpu.memory_space<vmem>>, vector<16x128xbf16>,
    %24 = vector.extract_strided_slice %14 {offsets = [3, 0, 0], sizes = [1, 16, 128], strides = [1, 1, 1]} : vector<16x16x128xbf16> to vector<1x16x128xbf16>
    %25 = vector.shape_cast %24 : vector<1x16x128xbf16> to vector<16x128xbf16>
    %c0_18 = arith.constant 0 : index
    %c384 = arith.constant 384 : index
    %26 = vector.load %arg9[%c0_18, %c384] : memref<16x2048xbf16, #tpu.memory_space<vmem>>, vector<16x128xbf16>
    tpu.vector_store %arg9[%c0_18, %c384], %25 {strides = array<i32>} : memref<16x2048xbf16, #tpu.memory_space<vmem>>, vector<16x128xbf16>,
    %27 = vector.extract_strided_slice %14 {offsets = [4, 0, 0], sizes = [1, 16, 128], strides = [1, 1, 1]} : vector<16x16x128xbf16> to vector<1x16x128xbf16>
    %28 = vector.shape_cast %27 : vector<1x16x128xbf16> to vector<16x128xbf16>
    %c0_19 = arith.constant 0 : index
    %c512 = arith.constant 512 : index
    %29 = vector.load %arg9[%c0_19, %c512] : memref<16x2048xbf16, #tpu.memory_space<vmem>>, vector<16x128xbf16>
    tpu.vector_store %arg9[%c0_19, %c512], %28 {strides = array<i32>} : memref<16x2048xbf16, #tpu.memory_space<vmem>>, vector<16x128xbf16>,
    %30 = vector.extract_strided_slice %14 {offsets = [5, 0, 0], sizes = [1, 16, 128], strides = [1, 1, 1]} : vector<16x16x128xbf16> to vector<1x16x128xbf16>
    %31 = vector.shape_cast %30 : vector<1x16x128xbf16> to vector<16x128xbf16>
    %c0_20 = arith.constant 0 : index
    %c640 = arith.constant 640 : index
    %32 = vector.load %arg9[%c0_20, %c640] : memref<16x2048xbf16, #tpu.memory_space<vmem>>, vector<16x128xbf16>
    tpu.vector_store %arg9[%c0_20, %c640], %31 {strides = array<i32>} : memref<16x2048xbf16, #tpu.memory_space<vmem>>, vector<16x128xbf16>,
    %33 = vector.extract_strided_slice %14 {offsets = [6, 0, 0], sizes = [1, 16, 128], strides = [1, 1, 1]} : vector<16x16x128xbf16> to vector<1x16x128xbf16>
    %34 = vector.shape_cast %33 : vector<1x16x128xbf16> to vector<16x128xbf16>
    %c0_21 = arith.constant 0 : index
    %c768 = arith.constant 768 : index
    %35 = vector.load %arg9[%c0_21, %c768] : memref<16x2048xbf16, #tpu.memory_space<vmem>>, vector<16x128xbf16>
    tpu.vector_store %arg9[%c0_21, %c768], %34 {strides = array<i32>} : memref<16x2048xbf16, #tpu.memory_space<vmem>>, vector<16x128xbf16>,
    %36 = vector.extract_strided_slice %14 {offsets = [7, 0, 0], sizes = [1, 16, 128], strides = [1, 1, 1]} : vector<16x16x128xbf16> to vector<1x16x128xbf16>
    %37 = vector.shape_cast %36 : vector<1x16x128xbf16> to vector<16x128xbf16>
    %c0_22 = arith.constant 0 : index
    %c896 = arith.constant 896 : index
    %38 = vector.load %arg9[%c0_22, %c896] : memref<16x2048xbf16, #tpu.memory_space<vmem>>, vector<16x128xbf16>
    tpu.vector_store %arg9[%c0_22, %c896], %37 {strides = array<i32>} : memref<16x2048xbf16, #tpu.memory_space<vmem>>, vector<16x128xbf16>,
    %39 = vector.extract_strided_slice %14 {offsets = [8, 0, 0], sizes = [1, 16, 128], strides = [1, 1, 1]} : vector<16x16x128xbf16> to vector<1x16x128xbf16>
    %40 = vector.shape_cast %39 : vector<1x16x128xbf16> to vector<16x128xbf16>
    %c0_23 = arith.constant 0 : index
    %c1024 = arith.constant 1024 : index
    %41 = vector.load %arg9[%c0_23, %c1024] : memref<16x2048xbf16, #tpu.memory_space<vmem>>, vector<16x128xbf16>
    tpu.vector_store %arg9[%c0_23, %c1024], %40 {strides = array<i32>} : memref<16x2048xbf16, #tpu.memory_space<vmem>>, vector<16x128xbf16>,
    %42 = vector.extract_strided_slice %14 {offsets = [9, 0, 0], sizes = [1, 16, 128], strides = [1, 1, 1]} : vector<16x16x128xbf16> to vector<1x16x128xbf16>
    %43 = vector.shape_cast %42 : vector<1x16x128xbf16> to vector<16x128xbf16>
    %c0_24 = arith.constant 0 : index
    %c1152 = arith.constant 1152 : index
    %44 = vector.load %arg9[%c0_24, %c1152] : memref<16x2048xbf16, #tpu.memory_space<vmem>>, vector<16x128xbf16>
    tpu.vector_store %arg9[%c0_24, %c1152], %43 {strides = array<i32>} : memref<16x2048xbf16, #tpu.memory_space<vmem>>, vector<16x128xbf16>,
    %45 = vector.extract_strided_slice %14 {offsets = [10, 0, 0], sizes = [1, 16, 128], strides = [1, 1, 1]} : vector<16x16x128xbf16> to vector<1x16x128xbf16>
    %46 = vector.shape_cast %45 : vector<1x16x128xbf16> to vector<16x128xbf16>
    %c0_25 = arith.constant 0 : index
    %c1280 = arith.constant 1280 : index
    %47 = vector.load %arg9[%c0_25, %c1280] : memref<16x2048xbf16, #tpu.memory_space<vmem>>, vector<16x128xbf16>
    tpu.vector_store %arg9[%c0_25, %c1280], %46 {strides = array<i32>} : memref<16x2048xbf16, #tpu.memory_space<vmem>>, vector<16x128xbf16>,
    %48 = vector.extract_strided_slice %14 {offsets = [11, 0, 0], sizes = [1, 16, 128], strides = [1, 1, 1]} : vector<16x16x128xbf16> to vector<1x16x128xbf16>
    %49 = vector.shape_cast %48 : vector<1x16x128xbf16> to vector<16x128xbf16>
    %c0_26 = arith.constant 0 : index
    %c1408 = arith.constant 1408 : index
    %50 = vector.load %arg9[%c0_26, %c1408] : memref<16x2048xbf16, #tpu.memory_space<vmem>>, vector<16x128xbf16>
    tpu.vector_store %arg9[%c0_26, %c1408], %49 {strides = array<i32>} : memref<16x2048xbf16, #tpu.memory_space<vmem>>, vector<16x128xbf16>,
    %51 = vector.extract_strided_slice %14 {offsets = [12, 0, 0], sizes = [1, 16, 128], strides = [1, 1, 1]} : vector<16x16x128xbf16> to vector<1x16x128xbf16>
    %52 = vector.shape_cast %51 : vector<1x16x128xbf16> to vector<16x128xbf16>
    %c0_27 = arith.constant 0 : index
    %c1536 = arith.constant 1536 : index
    %53 = vector.load %arg9[%c0_27, %c1536] : memref<16x2048xbf16, #tpu.memory_space<vmem>>, vector<16x128xbf16>
    tpu.vector_store %arg9[%c0_27, %c1536], %52 {strides = array<i32>} : memref<16x2048xbf16, #tpu.memory_space<vmem>>, vector<16x128xbf16>,
    %54 = vector.extract_strided_slice %14 {offsets = [13, 0, 0], sizes = [1, 16, 128], strides = [1, 1, 1]} : vector<16x16x128xbf16> to vector<1x16x128xbf16>
    %55 = vector.shape_cast %54 : vector<1x16x128xbf16> to vector<16x128xbf16>
    %c0_28 = arith.constant 0 : index
    %c1664 = arith.constant 1664 : index
    %56 = vector.load %arg9[%c0_28, %c1664] : memref<16x2048xbf16, #tpu.memory_space<vmem>>, vector<16x128xbf16>
    tpu.vector_store %arg9[%c0_28, %c1664], %55 {strides = array<i32>} : memref<16x2048xbf16, #tpu.memory_space<vmem>>, vector<16x128xbf16>,
    %57 = vector.extract_strided_slice %14 {offsets = [14, 0, 0], sizes = [1, 16, 128], strides = [1, 1, 1]} : vector<16x16x128xbf16> to vector<1x16x128xbf16>
    %58 = vector.shape_cast %57 : vector<1x16x128xbf16> to vector<16x128xbf16>
    %c0_29 = arith.constant 0 : index
    %c1792 = arith.constant 1792 : index
    %59 = vector.load %arg9[%c0_29, %c1792] : memref<16x2048xbf16, #tpu.memory_space<vmem>>, vector<16x128xbf16>
    tpu.vector_store %arg9[%c0_29, %c1792], %58 {strides = array<i32>} : memref<16x2048xbf16, #tpu.memory_space<vmem>>, vector<16x128xbf16>,
    %60 = vector.extract_strided_slice %14 {offsets = [15, 0, 0], sizes = [1, 16, 128], strides = [1, 1, 1]} : vector<16x16x128xbf16> to vector<1x16x128xbf16>
    %61 = vector.shape_cast %60 : vector<1x16x128xbf16> to vector<16x128xbf16>
    %c0_30 = arith.constant 0 : index
    %c1920 = arith.constant 1920 : index
    %62 = vector.load %arg9[%c0_30, %c1920] : memref<16x2048xbf16, #tpu.memory_space<vmem>>, vector<16x128xbf16>
    tpu.vector_store %arg9[%c0_30, %c1920], %61 {strides = array<i32>} : memref<16x2048xbf16, #tpu.memory_space<vmem>>, vector<16x128xbf16>,
    %c0_31 = arith.constant 0 : index
    %c0_32 = arith.constant 0 : index
    %c0_33 = arith.constant 0 : index
    %63 = vector.load %arg6[%c0_31, %c0_32, %c0_33] : memref<1x32x16xbf16, #tpu.memory_space<vmem>>, vector<1x32x16xbf16>
    %64 = vector.shape_cast %63 : vector<1x32x16xbf16> to vector<32x16xbf16>
    %c0_34 = arith.constant 0 : index
    %c0_35 = arith.constant 0 : index
    %65 = vector.load %arg9[%c0_34, %c0_35] : memref<16x2048xbf16, #tpu.memory_space<vmem>>, vector<16x2048xbf16>
    %cst_36 = arith.constant dense<0.000000e+00> : vector<32x2048xf32>
    %66 = tpu.matmul %64, %65, %cst_36 {dimension_numbers = #tpu.dot_dimension_numbers<[1], [0], [0], [1], [0, 0, 1, 1], [], []>} : vector<32x16xbf16>, vector<16x2048xbf16>, vector<32x2048xf32> -> vector<32x2048xf32>
    %67 = arith.truncf %66 : vector<32x2048xf32> to vector<32x2048xbf16>
    %68 = vector.extract_strided_slice %67 {offsets = [0, 0], sizes = [32, 128], strides = [1, 1]} : vector<32x2048xbf16> to vector<32x128xbf16>
    %c0_37 = arith.constant 0 : index
    %c0_38 = arith.constant 0 : index
    %c0_39 = arith.constant 0 : index
    %c0_40 = arith.constant 0 : index
    %69 = vector.load %arg8[%c0_37, %c0_38, %c0_39, %c0_40] : memref<1x16x32x128xbf16, #tpu.memory_space<vmem>>, vector<1x1x32x128xbf16>
    %70 = vector.shape_cast %69 : vector<1x1x32x128xbf16> to vector<32x128xbf16>
    %71 = vector.shape_cast %68 : vector<32x128xbf16> to vector<1x1x32x128xbf16>
    tpu.vector_store %arg8[%c0_37, %c0_38, %c0_39, %c0_40], %71 {strides = array<i32>} : memref<1x16x32x128xbf16, #tpu.memory_space<vmem>>, vector<1x1x32x128xbf16>,
    %72 = vector.extract_strided_slice %67 {offsets = [0, 128], sizes = [32, 128], strides = [1, 1]} : vector<32x2048xbf16> to vector<32x128xbf16>
    %c0_41 = arith.constant 0 : index
    %c1 = arith.constant 1 : index
    %c0_42 = arith.constant 0 : index
    %c0_43 = arith.constant 0 : index
    %73 = vector.load %arg8[%c0_41, %c1, %c0_42, %c0_43] : memref<1x16x32x128xbf16, #tpu.memory_space<vmem>>, vector<1x1x32x128xbf16>
    %74 = vector.shape_cast %73 : vector<1x1x32x128xbf16> to vector<32x128xbf16>
    %75 = vector.shape_cast %72 : vector<32x128xbf16> to vector<1x1x32x128xbf16>
    tpu.vector_store %arg8[%c0_41, %c1, %c0_42, %c0_43], %75 {strides = array<i32>} : memref<1x16x32x128xbf16, #tpu.memory_space<vmem>>, vector<1x1x32x128xbf16>,
    %76 = vector.extract_strided_slice %67 {offsets = [0, 256], sizes = [32, 128], strides = [1, 1]} : vector<32x2048xbf16> to vector<32x128xbf16>
    %c0_44 = arith.constant 0 : index
    %c2 = arith.constant 2 : index
    %c0_45 = arith.constant 0 : index
    %c0_46 = arith.constant 0 : index
    %77 = vector.load %arg8[%c0_44, %c2, %c0_45, %c0_46] : memref<1x16x32x128xbf16, #tpu.memory_space<vmem>>, vector<1x1x32x128xbf16>
    %78 = vector.shape_cast %77 : vector<1x1x32x128xbf16> to vector<32x128xbf16>
    %79 = vector.shape_cast %76 : vector<32x128xbf16> to vector<1x1x32x128xbf16>
    tpu.vector_store %arg8[%c0_44, %c2, %c0_45, %c0_46], %79 {strides = array<i32>} : memref<1x16x32x128xbf16, #tpu.memory_space<vmem>>, vector<1x1x32x128xbf16>,
    %80 = vector.extract_strided_slice %67 {offsets = [0, 384], sizes = [32, 128], strides = [1, 1]} : vector<32x2048xbf16> to vector<32x128xbf16>
    %c0_47 = arith.constant 0 : index
    %c3 = arith.constant 3 : index
    %c0_48 = arith.constant 0 : index
    %c0_49 = arith.constant 0 : index
    %81 = vector.load %arg8[%c0_47, %c3, %c0_48, %c0_49] : memref<1x16x32x128xbf16, #tpu.memory_space<vmem>>, vector<1x1x32x128xbf16>
    %82 = vector.shape_cast %81 : vector<1x1x32x128xbf16> to vector<32x128xbf16>
    %83 = vector.shape_cast %80 : vector<32x128xbf16> to vector<1x1x32x128xbf16>
    tpu.vector_store %arg8[%c0_47, %c3, %c0_48, %c0_49], %83 {strides = array<i32>} : memref<1x16x32x128xbf16, #tpu.memory_space<vmem>>, vector<1x1x32x128xbf16>,
    %84 = vector.extract_strided_slice %67 {offsets = [0, 512], sizes = [32, 128], strides = [1, 1]} : vector<32x2048xbf16> to vector<32x128xbf16>
    %c0_50 = arith.constant 0 : index
    %c4 = arith.constant 4 : index
    %c0_51 = arith.constant 0 : index
    %c0_52 = arith.constant 0 : index
    %85 = vector.load %arg8[%c0_50, %c4, %c0_51, %c0_52] : memref<1x16x32x128xbf16, #tpu.memory_space<vmem>>, vector<1x1x32x128xbf16>
    %86 = vector.shape_cast %85 : vector<1x1x32x128xbf16> to vector<32x128xbf16>
    %87 = vector.shape_cast %84 : vector<32x128xbf16> to vector<1x1x32x128xbf16>
    tpu.vector_store %arg8[%c0_50, %c4, %c0_51, %c0_52], %87 {strides = array<i32>} : memref<1x16x32x128xbf16, #tpu.memory_space<vmem>>, vector<1x1x32x128xbf16>,
    %88 = vector.extract_strided_slice %67 {offsets = [0, 640], sizes = [32, 128], strides = [1, 1]} : vector<32x2048xbf16> to vector<32x128xbf16>
    %c0_53 = arith.constant 0 : index
    %c5 = arith.constant 5 : index
    %c0_54 = arith.constant 0 : index
    %c0_55 = arith.constant 0 : index
    %89 = vector.load %arg8[%c0_53, %c5, %c0_54, %c0_55] : memref<1x16x32x128xbf16, #tpu.memory_space<vmem>>, vector<1x1x32x128xbf16>
    %90 = vector.shape_cast %89 : vector<1x1x32x128xbf16> to vector<32x128xbf16>
    %91 = vector.shape_cast %88 : vector<32x128xbf16> to vector<1x1x32x128xbf16>
    tpu.vector_store %arg8[%c0_53, %c5, %c0_54, %c0_55], %91 {strides = array<i32>} : memref<1x16x32x128xbf16, #tpu.memory_space<vmem>>, vector<1x1x32x128xbf16>,
    %92 = vector.extract_strided_slice %67 {offsets = [0, 768], sizes = [32, 128], strides = [1, 1]} : vector<32x2048xbf16> to vector<32x128xbf16>
    %c0_56 = arith.constant 0 : index
    %c6 = arith.constant 6 : index
    %c0_57 = arith.constant 0 : index
    %c0_58 = arith.constant 0 : index
    %93 = vector.load %arg8[%c0_56, %c6, %c0_57, %c0_58] : memref<1x16x32x128xbf16, #tpu.memory_space<vmem>>, vector<1x1x32x128xbf16>
    %94 = vector.shape_cast %93 : vector<1x1x32x128xbf16> to vector<32x128xbf16>
    %95 = vector.shape_cast %92 : vector<32x128xbf16> to vector<1x1x32x128xbf16>
    tpu.vector_store %arg8[%c0_56, %c6, %c0_57, %c0_58], %95 {strides = array<i32>} : memref<1x16x32x128xbf16, #tpu.memory_space<vmem>>, vector<1x1x32x128xbf16>,
    %96 = vector.extract_strided_slice %67 {offsets = [0, 896], sizes = [32, 128], strides = [1, 1]} : vector<32x2048xbf16> to vector<32x128xbf16>
    %c0_59 = arith.constant 0 : index
    %c7 = arith.constant 7 : index
    %c0_60 = arith.constant 0 : index
    %c0_61 = arith.constant 0 : index
    %97 = vector.load %arg8[%c0_59, %c7, %c0_60, %c0_61] : memref<1x16x32x128xbf16, #tpu.memory_space<vmem>>, vector<1x1x32x128xbf16>
    %98 = vector.shape_cast %97 : vector<1x1x32x128xbf16> to vector<32x128xbf16>
    %99 = vector.shape_cast %96 : vector<32x128xbf16> to vector<1x1x32x128xbf16>
    tpu.vector_store %arg8[%c0_59, %c7, %c0_60, %c0_61], %99 {strides = array<i32>} : memref<1x16x32x128xbf16, #tpu.memory_space<vmem>>, vector<1x1x32x128xbf16>,
    %100 = vector.extract_strided_slice %67 {offsets = [0, 1024], sizes = [32, 128], strides = [1, 1]} : vector<32x2048xbf16> to vector<32x128xbf16>
    %c0_62 = arith.constant 0 : index
    %c8 = arith.constant 8 : index
    %c0_63 = arith.constant 0 : index
    %c0_64 = arith.constant 0 : index
    %101 = vector.load %arg8[%c0_62, %c8, %c0_63, %c0_64] : memref<1x16x32x128xbf16, #tpu.memory_space<vmem>>, vector<1x1x32x128xbf16>
    %102 = vector.shape_cast %101 : vector<1x1x32x128xbf16> to vector<32x128xbf16>
    %103 = vector.shape_cast %100 : vector<32x128xbf16> to vector<1x1x32x128xbf16>
    tpu.vector_store %arg8[%c0_62, %c8, %c0_63, %c0_64], %103 {strides = array<i32>} : memref<1x16x32x128xbf16, #tpu.memory_space<vmem>>, vector<1x1x32x128xbf16>,
    %104 = vector.extract_strided_slice %67 {offsets = [0, 1152], sizes = [32, 128], strides = [1, 1]} : vector<32x2048xbf16> to vector<32x128xbf16>
    %c0_65 = arith.constant 0 : index
    %c9 = arith.constant 9 : index
    %c0_66 = arith.constant 0 : index
    %c0_67 = arith.constant 0 : index
    %105 = vector.load %arg8[%c0_65, %c9, %c0_66, %c0_67] : memref<1x16x32x128xbf16, #tpu.memory_space<vmem>>, vector<1x1x32x128xbf16>
    %106 = vector.shape_cast %105 : vector<1x1x32x128xbf16> to vector<32x128xbf16>
    %107 = vector.shape_cast %104 : vector<32x128xbf16> to vector<1x1x32x128xbf16>
    tpu.vector_store %arg8[%c0_65, %c9, %c0_66, %c0_67], %107 {strides = array<i32>} : memref<1x16x32x128xbf16, #tpu.memory_space<vmem>>, vector<1x1x32x128xbf16>,
    %108 = vector.extract_strided_slice %67 {offsets = [0, 1280], sizes = [32, 128], strides = [1, 1]} : vector<32x2048xbf16> to vector<32x128xbf16>
    %c0_68 = arith.constant 0 : index
    %c10 = arith.constant 10 : index
    %c0_69 = arith.constant 0 : index
    %c0_70 = arith.constant 0 : index
    %109 = vector.load %arg8[%c0_68, %c10, %c0_69, %c0_70] : memref<1x16x32x128xbf16, #tpu.memory_space<vmem>>, vector<1x1x32x128xbf16>
    %110 = vector.shape_cast %109 : vector<1x1x32x128xbf16> to vector<32x128xbf16>
    %111 = vector.shape_cast %108 : vector<32x128xbf16> to vector<1x1x32x128xbf16>
    tpu.vector_store %arg8[%c0_68, %c10, %c0_69, %c0_70], %111 {strides = array<i32>} : memref<1x16x32x128xbf16, #tpu.memory_space<vmem>>, vector<1x1x32x128xbf16>,
    %112 = vector.extract_strided_slice %67 {offsets = [0, 1408], sizes = [32, 128], strides = [1, 1]} : vector<32x2048xbf16> to vector<32x128xbf16>
    %c0_71 = arith.constant 0 : index
    %c11 = arith.constant 11 : index
    %c0_72 = arith.constant 0 : index
    %c0_73 = arith.constant 0 : index
    %113 = vector.load %arg8[%c0_71, %c11, %c0_72, %c0_73] : memref<1x16x32x128xbf16, #tpu.memory_space<vmem>>, vector<1x1x32x128xbf16>
    %114 = vector.shape_cast %113 : vector<1x1x32x128xbf16> to vector<32x128xbf16>
    %115 = vector.shape_cast %112 : vector<32x128xbf16> to vector<1x1x32x128xbf16>
    tpu.vector_store %arg8[%c0_71, %c11, %c0_72, %c0_73], %115 {strides = array<i32>} : memref<1x16x32x128xbf16, #tpu.memory_space<vmem>>, vector<1x1x32x128xbf16>,
    %116 = vector.extract_strided_slice %67 {offsets = [0, 1536], sizes = [32, 128], strides = [1, 1]} : vector<32x2048xbf16> to vector<32x128xbf16>
    %c0_74 = arith.constant 0 : index
    %c12 = arith.constant 12 : index
    %c0_75 = arith.constant 0 : index
    %c0_76 = arith.constant 0 : index
    %117 = vector.load %arg8[%c0_74, %c12, %c0_75, %c0_76] : memref<1x16x32x128xbf16, #tpu.memory_space<vmem>>, vector<1x1x32x128xbf16>
    %118 = vector.shape_cast %117 : vector<1x1x32x128xbf16> to vector<32x128xbf16>
    %119 = vector.shape_cast %116 : vector<32x128xbf16> to vector<1x1x32x128xbf16>
    tpu.vector_store %arg8[%c0_74, %c12, %c0_75, %c0_76], %119 {strides = array<i32>} : memref<1x16x32x128xbf16, #tpu.memory_space<vmem>>, vector<1x1x32x128xbf16>,
    %120 = vector.extract_strided_slice %67 {offsets = [0, 1664], sizes = [32, 128], strides = [1, 1]} : vector<32x2048xbf16> to vector<32x128xbf16>
    %c0_77 = arith.constant 0 : index
    %c13 = arith.constant 13 : index
    %c0_78 = arith.constant 0 : index
    %c0_79 = arith.constant 0 : index
    %121 = vector.load %arg8[%c0_77, %c13, %c0_78, %c0_79] : memref<1x16x32x128xbf16, #tpu.memory_space<vmem>>, vector<1x1x32x128xbf16>
    %122 = vector.shape_cast %121 : vector<1x1x32x128xbf16> to vector<32x128xbf16>
    %123 = vector.shape_cast %120 : vector<32x128xbf16> to vector<1x1x32x128xbf16>
    tpu.vector_store %arg8[%c0_77, %c13, %c0_78, %c0_79], %123 {strides = array<i32>} : memref<1x16x32x128xbf16, #tpu.memory_space<vmem>>, vector<1x1x32x128xbf16>,
    %124 = vector.extract_strided_slice %67 {offsets = [0, 1792], sizes = [32, 128], strides = [1, 1]} : vector<32x2048xbf16> to vector<32x128xbf16>
    %c0_80 = arith.constant 0 : index
    %c14 = arith.constant 14 : index
    %c0_81 = arith.constant 0 : index
    %c0_82 = arith.constant 0 : index
    %125 = vector.load %arg8[%c0_80, %c14, %c0_81, %c0_82] : memref<1x16x32x128xbf16, #tpu.memory_space<vmem>>, vector<1x1x32x128xbf16>
    %126 = vector.shape_cast %125 : vector<1x1x32x128xbf16> to vector<32x128xbf16>
    %127 = vector.shape_cast %124 : vector<32x128xbf16> to vector<1x1x32x128xbf16>
    tpu.vector_store %arg8[%c0_80, %c14, %c0_81, %c0_82], %127 {strides = array<i32>} : memref<1x16x32x128xbf16, #tpu.memory_space<vmem>>, vector<1x1x32x128xbf16>,
    %128 = vector.extract_strided_slice %67 {offsets = [0, 1920], sizes = [32, 128], strides = [1, 1]} : vector<32x2048xbf16> to vector<32x128xbf16>
    %c0_83 = arith.constant 0 : index
    %c15 = arith.constant 15 : index
    %c0_84 = arith.constant 0 : index
    %c0_85 = arith.constant 0 : index
    %129 = vector.load %arg8[%c0_83, %c15, %c0_84, %c0_85] : memref<1x16x32x128xbf16, #tpu.memory_space<vmem>>, vector<1x1x32x128xbf16>
    %130 = vector.shape_cast %129 : vector<1x1x32x128xbf16> to vector<32x128xbf16>
    %131 = vector.shape_cast %128 : vector<32x128xbf16> to vector<1x1x32x128xbf16>
    tpu.vector_store %arg8[%c0_83, %c15, %c0_84, %c0_85], %131 {strides = array<i32>} : memref<1x16x32x128xbf16, #tpu.memory_space<vmem>>, vector<1x1x32x128xbf16>,
    return
  }
  func.func @transform_0(%arg0: i32, %arg1: i32, %arg2: i32) -> (i32, i32, i32, i32, i32) {
    %c0_i32 = arith.constant 0 : i32
    %c0_i32_0 = arith.constant 0 : i32
    %c0_i32_1 = arith.constant 0 : i32
    %c0_i32_2 = arith.constant 0 : i32
    return %arg0, %c0_i32, %arg1, %c0_i32_0, %c0_i32_1 : i32, i32, i32, i32, i32
  }
  func.func @transform_1(%arg0: i32, %arg1: i32, %arg2: i32) -> (i32, i32, i32) {
    %c0_i32 = arith.constant 0 : i32
    %c0_i32_0 = arith.constant 0 : i32
    %c0_i32_1 = arith.constant 0 : i32
    return %arg2, %c0_i32, %c0_i32_0 : i32, i32, i32
  }
  func.func @transform_2(%arg0: i32, %arg1: i32, %arg2: i32) -> (i32, i32, i32, i32) {
    %c0_i32 = arith.constant 0 : i32
    %c0_i32_0 = arith.constant 0 : i32
    %c0_i32_1 = arith.constant 0 : i32
    %c0_i32_2 = arith.constant 0 : i32
    return %arg2, %c0_i32, %c0_i32_0, %c0_i32_1 : i32, i32, i32, i32
  }
  func.func @transform_3(%arg0: i32, %arg1: i32, %arg2: i32) -> (i32, i32, i32) {
    %c0_i32 = arith.constant 0 : i32
    %c0_i32_0 = arith.constant 0 : i32
    %c0_i32_1 = arith.constant 0 : i32
    return %arg1, %c0_i32, %c0_i32_0 : i32, i32, i32
  }
  func.func @transform_4(%arg0: i32, %arg1: i32, %arg2: i32) -> (i32, i32) {
    %c0_i32 = arith.constant 0 : i32
    %c0_i32_0 = arith.constant 0 : i32
    %c0_i32_1 = arith.constant 0 : i32
    return %c0_i32, %c0_i32_0 : i32, i32
  }
  func.func @transform_5(%arg0: i32, %arg1: i32, %arg2: i32) -> (i32, i32, i32, i32) {
    %c0_i32 = arith.constant 0 : i32
    %c0_i32_0 = arith.constant 0 : i32
    return %arg0, %arg2, %arg1, %c0_i32 : i32, i32, i32, i32
  }
}

</mosaic_0001>

<llo_original>
// kernel: tpu_custom_call.1
$region0: #{tpu_custom_call.1}
  #allocation0 [shape = 'u32[]', space=smem, size = 0x4, offset = 0x4, fixed_abs, tag = 'smem constant byte address 0x4 - core index']
  #allocation1 [shape = 'u32[72,128]{1,0:T(1,128)}', space=vmem, size = 0x9000, scoped, tag = 'internal scratch']
  #allocation2 [shape = 'bf16[16,2048]{1,0:T(8,128)(2,1)}', space=vmem, size = 0x10000, scoped, tag = 'scratch operand']
  #allocation7 [shape = 's32[]', space=sflag, size = 0x4, offset = 0, fixed_abs, tag = 'sflag constant byte address 0x0 - dummy sync flag']
  #allocation9 [shape = 's32[]', space=sflag, size = 0x4, offset = 0, fixed_abs, tag = 'sflag constant byte address 0x0 - dummy sync flag']
  %s0 = inlined_call_operand.hbm [shape: bf16[2,32,2,16,32], index: 0, kind: input, shape index: {}]
  %s1 = inlined_call_operand.vmem [shape: bf16[1,16,32], index: 1, kind: input, shape index: {}]
  %s2 = inlined_call_operand.vmem [shape: f32[1,16,1,1], index: 2, kind: input, shape index: {}]
  %s3 = inlined_call_operand.vmem [shape: bf16[2,32,16], index: 3, kind: input, shape index: {}]
  %s4 = inlined_call_operand.vmem [shape: bf16[32,128], index: 4, kind: input, shape index: {}]
  %s5 = inlined_call_operand.hbm [shape: bf16[2,16,64,128], index: 5, kind: output, shape index: {}]
  %s6 = sld [smem:[#allocation0]]
  $region57: #{tpu_custom_call.1} parent=0
    _
  %s8 = ssub.s32 1, %s6
  %s9 = scalar_select 0, %s8, %s6
  $region1: #{tpu_custom_call.1} parent=0
    #allocation3 [shape = 'u8[262144]{0}', space=vmem, size = 0x40000, scoped, tag = 'input window, operand 0']
    #allocation4 [shape = 's32[2]{0}', space=sflag, size = 0x8, scoped, tag = 'scoped memory for tpu_custom_call.1']
    #allocation5 [shape = 's32[2]{0}', space=sflag, size = 0x8, scoped, tag = 'scoped memory for tpu_custom_call.1']
    #allocation6 [shape = 'u8[262144]{0}', space=vmem, size = 0x40000, scoped, tag = 'output window, operand 0']
    %10 = vsyncpa [#allocation4], 0
    %s11 = scalar_lea.sflag [#allocation4], 1
    %12 = vsyncpa %s11, 0
    %13 = vsyncpa [#allocation5], 0
    %s14 = scalar_lea.sflag [#allocation5], 1
    %15 = vsyncpa %s14, 0
    loop: start=0, step=1, limit=6
    $region2: #{tpu_custom_call.1} parent=1 // loop_pre_header
      _
    $region3: #{tpu_custom_call.1} parent=1 // loop_header
      %s17 = sphi 0, %s21
      %p18 = scmp.ge.s32.totalorder %s17, 6
      %s24 = sphi 0, %s43
      %s25 = sphi 0, %s39
      %s26 = sphi 0, %s35
      %s27 = sphi 0, %s24
      %s28 = sphi 0, %s25
      %s29 = sphi 0, %s26
      %s30 = sphi 0, %s27
      %s31 = sphi 0, %s28
      %s32 = sphi 0, %s29
      %s48 = sphi 0, %s50
      %s51 = sphi 0, %s48
      %s52 = sphi 0, %s51
      %s68 = sphi 0, %s52
      %s74 = sphi 0, %s76
      %s77 = sphi 0, %s74
      %s78 = sphi 0, %s77
      %s94 = sphi 0, %s78
      %s100 = sphi 0, %s102
      %s103 = sphi 0, %s100
      %s104 = sphi 0, %s103
      %s120 = sphi 0, %s104
      %s126 = sphi 0, %s128
      %s129 = sphi 0, %s126
      %s130 = sphi 0, %s129
      %s146 = sphi 0, %s130
      %s150 = sphi 0, %s150
      %s152 = sphi 0, %s150
      %s153 = sphi 0, %s152
      %s167 = sphi 0, %s153
      %s177 = sphi 0, %s179
      %s180 = sphi 0, %s177
      %s181 = sphi 0, %s180
      %s197 = sphi 0, %s181
    $region4: #{tpu_custom_call.1} parent=1 // loop_header_branch
      %20 = sbr.rel (%p18) target = $region8
    $region5: #{tpu_custom_call.1} parent=1 // loop_body
      %s22 = ssub.s32 %s17, 1
      %s23 = ssub.s32 %s17, 2
      %s33 = sadd.s32 1, %s26
      %p34 = scmp.ge.s32.totalorder %s33, 1
      %s35 = scalar_select %p34, 0, %s33
      %s36 = sadd.s32 1, %s25
      %s37 = scalar_select %p34, %s36, %s25
      %p38 = scmp.ge.s32.totalorder %s37, 2
      %s39 = scalar_select %p38, 0, %s37
      %s40 = sadd.s32 1, %s24
      %s41 = scalar_select %p38, %s40, %s24
      %p42 = scmp.ge.s32.totalorder %s41, 2
      %s43 = scalar_select %p42, 0, %s41
      %s44 = ssub.s32 %s24, %s43
      %s45 = ssub.s32 %s25, %s39
      %s46 = sor.u32 %s44, %s45
      %p47 = scmp.eq.s32.totalorder %s46, 0
      %s49 = sadd.s32 %s48, 1
      %s50 = scalar_select %p47, %s48, %s49
      %p53 = pneg %p47
      %p54 = scmp.eq.s32.totalorder %s17, 3
      %p55 = por %p53, %p54
      %p56 = scmp.ne.s32.totalorder %s48, %s51
      %p57 = scmp.eq.s32.totalorder %s17, 0
      %p58 = por %p56, %p57
      %p59 = scmp.ne.s32.totalorder %s48, %s51
      %p60 = scmp.eq.s32.totalorder %s22, 3
      %p61 = por %p59, %p60
      %p62 = scmp.ne.s32.totalorder %s51, %s52
      %p63 = scmp.eq.s32.totalorder %s22, 0
      %p64 = por %p62, %p63
      %p65 = scmp.ne.s32.totalorder %s51, %s52
      %p66 = scmp.eq.s32.totalorder %s23, 3
      %p67 = por %p65, %p66
      %p69 = scmp.ne.s32.totalorder %s52, %s68
      %p70 = scmp.eq.s32.totalorder %s23, 0
      %p71 = por %p69, %p70
      %s72 = ssub.s32 %s26, %s35
      %p73 = scmp.eq.s32.totalorder %s72, 0
      %s75 = sadd.s32 %s74, 1
      %s76 = scalar_select %p73, %s74, %s75
      %p79 = pneg %p73
      %p80 = scmp.eq.s32.totalorder %s17, 3
      %p81 = por %p79, %p80
      %p82 = scmp.ne.s32.totalorder %s74, %s77
      %p83 = scmp.eq.s32.totalorder %s17, 0
      %p84 = por %p82, %p83
      %p85 = scmp.ne.s32.totalorder %s74, %s77
      %p86 = scmp.eq.s32.totalorder %s22, 3
      %p87 = por %p85, %p86
      %p88 = scmp.ne.s32.totalorder %s77, %s78
      %p89 = scmp.eq.s32.totalorder %s22, 0
      %p90 = por %p88, %p89
      %p91 = scmp.ne.s32.totalorder %s77, %s78
      %p92 = scmp.eq.s32.totalorder %s23, 3
      %p93 = por %p91, %p92
      %p95 = scmp.ne.s32.totalorder %s78, %s94
      %p96 = scmp.eq.s32.totalorder %s23, 0
      %p97 = por %p95, %p96
      %s98 = ssub.s32 %s26, %s35
      %p99 = scmp.eq.s32.totalorder %s98, 0
      %s101 = sadd.s32 %s100, 1
      %s102 = scalar_select %p99, %s100, %s101
      %p105 = pneg %p99
      %p106 = scmp.eq.s32.totalorder %s17, 3
      %p107 = por %p105, %p106
      %p108 = scmp.ne.s32.totalorder %s100, %s103
      %p109 = scmp.eq.s32.totalorder %s17, 0
      %p110 = por %p108, %p109
      %p111 = scmp.ne.s32.totalorder %s100, %s103
      %p112 = scmp.eq.s32.totalorder %s22, 3
      %p113 = por %p111, %p112
      %p114 = scmp.ne.s32.totalorder %s103, %s104
      %p115 = scmp.eq.s32.totalorder %s22, 0
      %p116 = por %p114, %p115
      %p117 = scmp.ne.s32.totalorder %s103, %s104
      %p118 = scmp.eq.s32.totalorder %s23, 3
      %p119 = por %p117, %p118
      %p121 = scmp.ne.s32.totalorder %s104, %s120
      %p122 = scmp.eq.s32.totalorder %s23, 0
      %p123 = por %p121, %p122
      %s124 = ssub.s32 %s25, %s39
      %p125 = scmp.eq.s32.totalorder %s124, 0
      %s127 = sadd.s32 %s126, 1
      %s128 = scalar_select %p125, %s126, %s127
      %p131 = pneg %p125
      %p132 = scmp.eq.s32.totalorder %s17, 3
      %p133 = por %p131, %p132
      %p134 = scmp.ne.s32.totalorder %s126, %s129
      %p135 = scmp.eq.s32.totalorder %s17, 0
      %p136 = por %p134, %p135
      %p137 = scmp.ne.s32.totalorder %s126, %s129
      %p138 = scmp.eq.s32.totalorder %s22, 3
      %p139 = por %p137, %p138
      %p140 = scmp.ne.s32.totalorder %s129, %s130
      %p141 = scmp.eq.s32.totalorder %s22, 0
      %p142 = por %p140, %p141
      %p143 = scmp.ne.s32.totalorder %s129, %s130
      %p144 = scmp.eq.s32.totalorder %s23, 3
      %p145 = por %p143, %p144
      %p147 = scmp.ne.s32.totalorder %s130, %s146
      %p148 = scmp.eq.s32.totalorder %s23, 0
      %p149 = por %p147, %p148
      %s151 = sadd.s32 %s150, 1
      %p154 = scmp.eq.s32.totalorder %s17, 3
      %p155 = scmp.ne.s32.totalorder %s150, %s152
      %p156 = scmp.eq.s32.totalorder %s17, 0
      %p157 = por %p155, %p156
      %p158 = scmp.ne.s32.totalorder %s150, %s152
      %p159 = scmp.eq.s32.totalorder %s22, 3
      %p160 = por %p158, %p159
      %p161 = scmp.ne.s32.totalorder %s152, %s153
      %p162 = scmp.eq.s32.totalorder %s22, 0
      %p163 = por %p161, %p162
      %p164 = scmp.ne.s32.totalorder %s152, %s153
      %p165 = scmp.eq.s32.totalorder %s23, 3
      %p166 = por %p164, %p165
      %p168 = scmp.ne.s32.totalorder %s153, %s167
      %p169 = scmp.eq.s32.totalorder %s23, 0
      %p170 = por %p168, %p169
      %s171 = ssub.s32 %s24, %s43
      %s172 = ssub.s32 %s26, %s35
      %s173 = sor.u32 %s171, %s172
      %s174 = ssub.s32 %s25, %s39
      %s175 = sor.u32 %s173, %s174
      %p176 = scmp.eq.s32.totalorder %s175, 0
      %s178 = sadd.s32 %s177, 1
      %s179 = scalar_select %p176, %s177, %s178
      %p182 = pneg %p176
      %p183 = scmp.eq.s32.totalorder %s17, 3
      %p184 = por %p182, %p183
      %p185 = scmp.ne.s32.totalorder %s177, %s180
      %p186 = scmp.eq.s32.totalorder %s17, 0
      %p187 = por %p185, %p186
      %p188 = scmp.ne.s32.totalorder %s177, %s180
      %p189 = scmp.eq.s32.totalorder %s22, 3
      %p190 = por %p188, %p189
      %p191 = scmp.ne.s32.totalorder %s180, %s181
      %p192 = scmp.eq.s32.totalorder %s22, 0
      %p193 = por %p191, %p192
      %p194 = scmp.ne.s32.totalorder %s180, %s181
      %p195 = scmp.eq.s32.totalorder %s23, 3
      %p196 = por %p194, %p195
      %p198 = scmp.ne.s32.totalorder %s181, %s197
      %p199 = scmp.eq.s32.totalorder %s23, 0
      %p200 = por %p198, %p199
      %p201 = scmp.le.s32.totalorder 1, %s17
      %p202 = scmp.lt.s32.totalorder %s17, 5
      %p203 = pnand %p201, %p202
      %p204 = pneg %p203
      // Predicated region
      $region9: #{tpu_custom_call.1} parent=5 // pred_check
        _
      $region10: #{tpu_custom_call.1} parent=5 // pred_check_branch
        %206 = sbr.rel (%p203) target = $region12
      $region11: #{tpu_custom_call.1} parent=5 // pred_region
        %s207 = ssub.s32 %s17, 1
        // Predicated region
        $region13: #{tpu_custom_call.1} parent=11 // pred_check
          %p208 = pneg %p90
        $region14: #{tpu_custom_call.1} parent=11 // pred_check_branch
          %210 = sbr.rel (%p208) target = $region16
        $region15: #{tpu_custom_call.1} parent=11 // pred_region
          %p211 = scmp.lt.s32.totalorder %s29, 0
          %s212 = scalar_select %p211, %s29, 0
          %s213 = smul.addr %s212, 2
          %s214 = smul.addr %s213, 4
          %s215 = scalar_lea.vmem %s1, %s214
        $region16: #{tpu_custom_call.1} parent=11 // pred_fallthru
          _
        // Predicated region
        $region17: #{tpu_custom_call.1} parent=11 // pred_check
          %p216 = pneg %p116
        $region18: #{tpu_custom_call.1} parent=11 // pred_check_branch
          %218 = sbr.rel (%p216) target = $region20
        $region19: #{tpu_custom_call.1} parent=11 // pred_region
          %p219 = scmp.lt.s32.totalorder %s29, 0
          %s220 = scalar_select %p219, %s29, 0
          %s221 = smul.addr %s220, 16
          %s222 = scalar_lea.vmem %s2, %s221
        $region20: #{tpu_custom_call.1} parent=11 // pred_fallthru
          _
        // Predicated region
        $region21: #{tpu_custom_call.1} parent=11 // pred_check
          %p223 = pneg %p163
        $region22: #{tpu_custom_call.1} parent=11 // pred_check_branch
          %225 = sbr.rel (%p223) target = $region24
        $region23: #{tpu_custom_call.1} parent=11 // pred_region
          _
        $region24: #{tpu_custom_call.1} parent=11 // pred_fallthru
          _
      $region12: #{tpu_custom_call.1} parent=5 // pred_fallthru
        _
      %p226 = scmp.lt.s32.totalorder %s17, 4
      // Predicated region
      $region25: #{tpu_custom_call.1} parent=5 // pred_check
        %p227 = pneg %p226
      $region26: #{tpu_custom_call.1} parent=5 // pred_check_branch
        %229 = sbr.rel (%p227) target = $region28
      $region27: #{tpu_custom_call.1} parent=5 // pred_region
        // Predicated region
        $region29: #{tpu_custom_call.1} parent=27 // pred_check
          %p230 = pneg %p58
        $region30: #{tpu_custom_call.1} parent=27 // pred_check_branch
          %232 = sbr.rel (%p230) target = $region32
        $region31: #{tpu_custom_call.1} parent=27 // pred_region
          #allocation8 [shape = 'u32[6]{0}', space=smem, size = 0x18, scoped, tag = 'DMA stride descriptor']
          %s233 = sand.u32 %s48, 1
          %s234 = scalar_lea.sflag [#allocation4], %s233
          %s235 = sand.u32 %s48, 1
          %s236 = smul.addr %s235, 256
          %s237 = scalar_lea.vmem [#allocation3], %s236
          %239 = vsyncadd %s234, 0
          %s240 = smul.addr %s25, 2
          %s241 = smul.addr %s24, 128
          %s242 = sadd.s32 %s240, %s241
          %s243 = smul.addr %s242, 4
          %s244 = scalar_lea.hbm %s0, %s243
          %s246 = sshll.u32 1, 14
          %s247 = sxor.u32 4294967295, %s246
          %s249 = sld [smem:[#allocation0]]
          %s250 = sadd.s32 2, %s249
          %s252 = sshll.u32 7, 26
          %s253 = sxor.u32 4294967295, %s252
          %s254 = sand.u32 0, %s253
          %s255 = sshll.u32 %s250, 26
          %s256 = sor.u32 %s254, %s255
          %s257 = sshll.u32 %s244, 4
          %s258 = int_to_ptr.hbm [resolvable:$true] %s257
          %s259 = sshll.u32 %s237, 4
          %s260 = int_to_ptr.vmem [resolvable:$true] %s259
          %266 = sst [smem:[#allocation8]] 256
          %s267 = scalar_lea.smem [#allocation8], 1
          %268 = sst [smem:[%s267]] 128
          %s269 = scalar_lea.smem [#allocation8], 2
          %270 = sst [smem:[%s269]] 2
          %s271 = scalar_lea.smem [#allocation8], 3
          %272 = sst [smem:[%s271]] 64
          %s273 = scalar_lea.smem [#allocation8], 4
          %274 = sst [smem:[%s273]] 64
          %s275 = scalar_lea.smem [#allocation8], 5
          %276 = sst [smem:[%s275]] 4
          %278 = dma.general %s258, 4096, %s260, %s234, [#allocation7], [#allocation8], %s256, 0
        $region32: #{tpu_custom_call.1} parent=27 // pred_fallthru
          _
        // Predicated region
        $region33: #{tpu_custom_call.1} parent=27 // pred_check
          %p279 = pneg %p136
        $region34: #{tpu_custom_call.1} parent=27 // pred_check_branch
          %281 = sbr.rel (%p279) target = $region36
        $region35: #{tpu_custom_call.1} parent=27 // pred_region
          %p282 = scmp.lt.s32.totalorder %s25, 1
          %s283 = scalar_select %p282, %s25, 1
          %s284 = smul.addr %s283, 4
          %s285 = smul.addr %s284, 4
          %s286 = scalar_lea.vmem %s3, %s285
        $region36: #{tpu_custom_call.1} parent=27 // pred_fallthru
          _
      $region28: #{tpu_custom_call.1} parent=5 // pred_fallthru
        _
      %p287 = scmp.le.s32.totalorder 1, %s17
      %p288 = scmp.lt.s32.totalorder %s17, 5
      %p289 = pnand %p287, %p288
      %p290 = pneg %p289
      // Predicated region
      $region37: #{tpu_custom_call.1} parent=5 // pred_check
        _
      $region38: #{tpu_custom_call.1} parent=5 // pred_check_branch
        %292 = sbr.rel (%p289) target = $region40
      $region39: #{tpu_custom_call.1} parent=5 // pred_region
        %s293 = ssub.s32 %s17, 1
        %s294 = sand.u32 %s51, 1
        %s295 = scalar_lea.sflag [#allocation4], %s294
        %s296 = sand.u32 %s51, 1
        %s297 = smul.addr %s296, 256
        %s298 = scalar_lea.vmem [#allocation3], %s297
        // Predicated region
        $region41: #{tpu_custom_call.1} parent=39 // pred_check
          %p299 = pneg %p64
        $region42: #{tpu_custom_call.1} parent=39 // pred_check_branch
          %301 = sbr.rel (%p299) target = $region44
        $region43: #{tpu_custom_call.1} parent=39 // pred_region
          %303 = dma.done %s295, 4096
        $region44: #{tpu_custom_call.1} parent=39 // pred_fallthru
          _
        %s304 = sand.u32 %s51, 1
        %s305 = scalar_lea.sflag [#allocation4], %s304
        %s306 = sand.u32 %s51, 1
        %s307 = smul.addr %s306, 256
        %s308 = scalar_lea.vmem [#allocation3], %s307
        %p309 = pneg %p64
        %p310 = pneg %p61
        %p311 = scmp.lt.s32.totalorder %s29, 0
        %s312 = scalar_select %p311, %s29, 0
        %s313 = smul.addr %s312, 2
        %s314 = smul.addr %s313, 4
        %s315 = scalar_lea.vmem %s1, %s314
        %p316 = pneg %p90
        %p317 = pneg %p87
        %p318 = scmp.lt.s32.totalorder %s29, 0
        %s319 = scalar_select %p318, %s29, 0
        %s320 = smul.addr %s319, 16
        %s321 = scalar_lea.vmem %s2, %s320
        %p322 = pneg %p116
        %p323 = pneg %p113
        %p324 = scmp.lt.s32.totalorder %s28, 1
        %s325 = scalar_select %p324, %s28, 1
        %s326 = smul.addr %s325, 4
        %s327 = smul.addr %s326, 4
        %s328 = scalar_lea.vmem %s3, %s327
        %p329 = pneg %p142
        %p330 = pneg %p139
        %p331 = pneg %p163
        %p332 = pneg %p160
        %p333 = pneg %p193
        %p334 = pneg %p190
        %s335 = sand.u32 %s180, 1
        %s336 = scalar_lea.sflag [#allocation5], %s335
        %s337 = sand.u32 %s180, 1
        %s338 = smul.addr %s337, 256
        %s339 = scalar_lea.vmem [#allocation6], %s338
        %p340 = scmp.lt.s32.totalorder %s29, 0
        %s341 = scalar_select %p340, %s29, 0
        %s342 = smul.addr %s341, 2
        %s343 = smul.addr %s342, 4
        %s344 = scalar_lea.vmem %s1, %s343
        %p345 = scmp.lt.s32.totalorder %s29, 0
        %s346 = scalar_select %p345, %s29, 0
        %s347 = smul.addr %s346, 16
        %s348 = scalar_lea.vmem %s2, %s347
        %p349 = scmp.lt.s32.totalorder %s28, 1
        %s350 = scalar_select %p349, %s28, 1
        %s351 = smul.addr %s350, 4
        %s352 = smul.addr %s351, 4
        %s353 = scalar_lea.vmem %s3, %s352
        %s354 = smul.u32 16, %s29
        %s355 = smul.u32 4, %s28
        %v357 = vld [vmem:[%s298] sm:$0xf]
        %v358 = vld [vmem:[%s298 + $0x4] sm:$0xf]
        %v359 = vld [vmem:[%s298 + $0x8] sm:$0xf]
        %v360 = vld [vmem:[%s298 + $0xc] sm:$0xf]
        %v361 = vld [vmem:[%s298 + $0x10] sm:$0xf]
        %v362 = vld [vmem:[%s298 + $0x14] sm:$0xf]
        %v363 = vld [vmem:[%s298 + $0x18] sm:$0xf]
        %v364 = vld [vmem:[%s298 + $0x1c] sm:$0xf]
        %v365 = vld [vmem:[%s298 + $0x20] sm:$0xf]
        %v366 = vld [vmem:[%s298 + $0x24] sm:$0xf]
        %v367 = vld [vmem:[%s298 + $0x28] sm:$0xf]
        %v368 = vld [vmem:[%s298 + $0x2c] sm:$0xf]
        %v369 = vld [vmem:[%s298 + $0x30] sm:$0xf]
        %v370 = vld [vmem:[%s298 + $0x34] sm:$0xf]
        %v371 = vld [vmem:[%s298 + $0x38] sm:$0xf]
        %v372 = vld [vmem:[%s298 + $0x3c] sm:$0xf]
        %v373 = vld [vmem:[%s298 + $0x40] sm:$0xf]
        %v374 = vld [vmem:[%s298 + $0x44] sm:$0xf]
        %v375 = vld [vmem:[%s298 + $0x48] sm:$0xf]
        %v376 = vld [vmem:[%s298 + $0x4c] sm:$0xf]
        %v377 = vld [vmem:[%s298 + $0x50] sm:$0xf]
        %v378 = vld [vmem:[%s298 + $0x54] sm:$0xf]
        %v379 = vld [vmem:[%s298 + $0x58] sm:$0xf]
        %v380 = vld [vmem:[%s298 + $0x5c] sm:$0xf]
        %v381 = vld [vmem:[%s298 + $0x60] sm:$0xf]
        %v382 = vld [vmem:[%s298 + $0x64] sm:$0xf]
        %v383 = vld [vmem:[%s298 + $0x68] sm:$0xf]
        %v384 = vld [vmem:[%s298 + $0x6c] sm:$0xf]
        %v385 = vld [vmem:[%s298 + $0x70] sm:$0xf]
        %v386 = vld [vmem:[%s298 + $0x74] sm:$0xf]
        %v387 = vld [vmem:[%s298 + $0x78] sm:$0xf]
        %v388 = vld [vmem:[%s298 + $0x7c] sm:$0xf]
        %v389 = vld [vmem:[%s298 + $0x80] sm:$0xf]
        %v390 = vld [vmem:[%s298 + $0x84] sm:$0xf]
        %v391 = vld [vmem:[%s298 + $0x88] sm:$0xf]
        %v392 = vld [vmem:[%s298 + $0x8c] sm:$0xf]
        %v393 = vld [vmem:[%s298 + $0x90] sm:$0xf]
        %v394 = vld [vmem:[%s298 + $0x94] sm:$0xf]
        %v395 = vld [vmem:[%s298 + $0x98] sm:$0xf]
        %v396 = vld [vmem:[%s298 + $0x9c] sm:$0xf]
        %v397 = vld [vmem:[%s298 + $0xa0] sm:$0xf]
        %v398 = vld [vmem:[%s298 + $0xa4] sm:$0xf]
        %v399 = vld [vmem:[%s298 + $0xa8] sm:$0xf]
        %v400 = vld [vmem:[%s298 + $0xac] sm:$0xf]
        %v401 = vld [vmem:[%s298 + $0xb0] sm:$0xf]
        %v402 = vld [vmem:[%s298 + $0xb4] sm:$0xf]
        %v403 = vld [vmem:[%s298 + $0xb8] sm:$0xf]
        %v404 = vld [vmem:[%s298 + $0xbc] sm:$0xf]
        %v405 = vld [vmem:[%s298 + $0xc0] sm:$0xf]
        %v406 = vld [vmem:[%s298 + $0xc4] sm:$0xf]
        %v407 = vld [vmem:[%s298 + $0xc8] sm:$0xf]
        %v408 = vld [vmem:[%s298 + $0xcc] sm:$0xf]
        %v409 = vld [vmem:[%s298 + $0xd0] sm:$0xf]
        %v410 = vld [vmem:[%s298 + $0xd4] sm:$0xf]
        %v411 = vld [vmem:[%s298 + $0xd8] sm:$0xf]
        %v412 = vld [vmem:[%s298 + $0xdc] sm:$0xf]
        %v413 = vld [vmem:[%s298 + $0xe0] sm:$0xf]
        %v414 = vld [vmem:[%s298 + $0xe4] sm:$0xf]
        %v415 = vld [vmem:[%s298 + $0xe8] sm:$0xf]
        %v416 = vld [vmem:[%s298 + $0xec] sm:$0xf]
        %v417 = vld [vmem:[%s298 + $0xf0] sm:$0xf]
        %v418 = vld [vmem:[%s298 + $0xf4] sm:$0xf]
        %v419 = vld [vmem:[%s298 + $0xf8] sm:$0xf]
        %v420 = vld [vmem:[%s298 + $0xfc] sm:$0xf]
        %v421 = vld [vmem:[%s344] sm:$0xf]
        %v422 = vld [vmem:[%s344 + $0x4] sm:$0xf]
        %v423 = vld [vmem:[%s348] sm:$0x1]
        %v424 = vld [vmem:[%s348 + $0x1] sm:$0x1]
        %v425 = vld [vmem:[%s348 + $0x2] sm:$0x1]
        %v426 = vld [vmem:[%s348 + $0x3] sm:$0x1]
        %v427 = vld [vmem:[%s348 + $0x4] sm:$0x1]
        %v428 = vld [vmem:[%s348 + $0x5] sm:$0x1]
        %v429 = vld [vmem:[%s348 + $0x6] sm:$0x1]
        %v430 = vld [vmem:[%s348 + $0x7] sm:$0x1]
        %v431 = vld [vmem:[%s348 + $0x8] sm:$0x1]
        %v432 = vld [vmem:[%s348 + $0x9] sm:$0x1]
        %v433 = vld [vmem:[%s348 + $0xa] sm:$0x1]
        %v434 = vld [vmem:[%s348 + $0xb] sm:$0x1]
        %v435 = vld [vmem:[%s348 + $0xc] sm:$0x1]
        %v436 = vld [vmem:[%s348 + $0xd] sm:$0x1]
        %v437 = vld [vmem:[%s348 + $0xe] sm:$0x1]
        %v438 = vld [vmem:[%s348 + $0xf] sm:$0x1]
        %v455 = vperm.slane %v423, 0
        %v456 = vperm.slane %v424, 0
        %v457 = vperm.slane %v425, 0
        %v458 = vperm.slane %v426, 0
        %v459 = vperm.slane %v427, 0
        %v460 = vperm.slane %v428, 0
        %v461 = vperm.slane %v429, 0
        %v462 = vperm.slane %v430, 0
        %v463 = vperm.slane %v431, 0
        %v464 = vperm.slane %v432, 0
        %v465 = vperm.slane %v433, 0
        %v466 = vperm.slane %v434, 0
        %v467 = vperm.slane %v435, 0
        %v468 = vperm.slane %v436, 0
        %v469 = vperm.slane %v437, 0
        %v470 = vperm.slane %v438, 0
        %471 = vset.pattern.permute.xlu0 0
        %472 = vperm.xlu0 %471, %v455
        %v473 = vpop.permute.xlu0 %472
        %475 = vset.pattern.permute.xlu0 0
        %476 = vperm.xlu0 %475, %v456
        %v477 = vpop.permute.xlu0 %476
        %479 = vset.pattern.permute.xlu0 0
        %480 = vperm.xlu0 %479, %v457
        %v481 = vpop.permute.xlu0 %480
        %483 = vset.pattern.permute.xlu0 0
        %484 = vperm.xlu0 %483, %v458
        %v485 = vpop.permute.xlu0 %484
        %487 = vset.pattern.permute.xlu0 0
        %488 = vperm.xlu0 %487, %v459
        %v489 = vpop.permute.xlu0 %488
        %491 = vset.pattern.permute.xlu0 0
        %492 = vperm.xlu0 %491, %v460
        %v493 = vpop.permute.xlu0 %492
        %495 = vset.pattern.permute.xlu0 0
        %496 = vperm.xlu0 %495, %v461
        %v497 = vpop.permute.xlu0 %496
        %499 = vset.pattern.permute.xlu0 0
        %500 = vperm.xlu0 %499, %v462
        %v501 = vpop.permute.xlu0 %500
        %503 = vset.pattern.permute.xlu0 0
        %504 = vperm.xlu0 %503, %v463
        %v505 = vpop.permute.xlu0 %504
        %507 = vset.pattern.permute.xlu0 0
        %508 = vperm.xlu0 %507, %v464
        %v509 = vpop.permute.xlu0 %508
        %511 = vset.pattern.permute.xlu0 0
        %512 = vperm.xlu0 %511, %v465
        %v513 = vpop.permute.xlu0 %512
        %515 = vset.pattern.permute.xlu0 0
        %516 = vperm.xlu0 %515, %v466
        %v517 = vpop.permute.xlu0 %516
        %519 = vset.pattern.permute.xlu0 0
        %520 = vperm.xlu0 %519, %v467
        %v521 = vpop.permute.xlu0 %520
        %523 = vset.pattern.permute.xlu0 0
        %524 = vperm.xlu0 %523, %v468
        %v525 = vpop.permute.xlu0 %524
        %527 = vset.pattern.permute.xlu0 0
        %528 = vperm.xlu0 %527, %v469
        %v529 = vpop.permute.xlu0 %528
        %531 = vset.pattern.permute.xlu0 0
        %532 = vperm.xlu0 %531, %v470
        %v533 = vpop.permute.xlu0 %532
        %v535 = vrot.slane %v365, 4
        %vm536 = vcmask 1047556
        %v537 = vsel %vm536, %v535, %v357
        %v539 = vunpack.c.l.s4 1983009808
        %v540 = vunpack.c.0.s8 %v539
        %v541 = vperm.slane %v537, %v540
        %v542 = vrot.slane %v369, 4
        %v543 = vsel %vm536, %v542, %v361
        %v545 = vunpack.c.l.s4 1983009808
        %v546 = vunpack.c.0.s8 %v545
        %v547 = vperm.slane %v543, %v546
        %v548 = vrot.slane %v547, 4
        %v549 = vsel %vm536, %v548, %v541
        %v550 = vrot.slane %v541, 4
        %v551 = vsel %vm536, %v547, %v550
        %v553 = vunpack.c.l.s4 1934713408
        %v554 = vunpack.c.0.s8 %v553
        %v555 = vperm.slane %v549, %v554
        %v557 = vunpack.c.l.s4 1934713408
        %v558 = vunpack.c.0.s8 %v557
        %v559 = vperm.slane %v551, %v558
        %v560 = vrot.slane %v555, 4
        %v561 = vsel %vm536, 0, %v560
        %v562 = vrot.slane %v559, 4
        %v563 = vsel %vm536, 0, %v562
        %v564 = vrot.slane %v367, 4
        %v565 = vsel %vm536, %v564, %v359
        %v567 = vunpack.c.l.s4 1983009808
        %v568 = vunpack.c.0.s8 %v567
        %v569 = vperm.slane %v565, %v568
        %v570 = vrot.slane %v371, 4
        %v571 = vsel %vm536, %v570, %v363
        %v573 = vunpack.c.l.s4 1983009808
        %v574 = vunpack.c.0.s8 %v573
        %v575 = vperm.slane %v571, %v574
        %v576 = vrot.slane %v575, 4
        %v577 = vsel %vm536, %v576, %v569
        %v578 = vrot.slane %v569, 4
        %v579 = vsel %vm536, %v575, %v578
        %v581 = vunpack.c.l.s4 1934713408
        %v582 = vunpack.c.0.s8 %v581
        %v583 = vperm.slane %v577, %v582
        %v585 = vunpack.c.l.s4 1934713408
        %v586 = vunpack.c.0.s8 %v585
        %v587 = vperm.slane %v579, %v586
        %v588 = vrot.slane %v583, 4
        %v589 = vsel %vm536, 0, %v588
        %v590 = vrot.slane %v587, 4
        %v591 = vsel %vm536, 0, %v590
        %v592 = vrot.slane %v381, 4
        %v593 = vsel %vm536, %v592, %v373
        %v595 = vunpack.c.l.s4 1983009808
        %v596 = vunpack.c.0.s8 %v595
        %v597 = vperm.slane %v593, %v596
        %v598 = vrot.slane %v385, 4
        %v599 = vsel %vm536, %v598, %v377
        %v601 = vunpack.c.l.s4 1983009808
        %v602 = vunpack.c.0.s8 %v601
        %v603 = vperm.slane %v599, %v602
        %v604 = vrot.slane %v603, 4
        %v605 = vsel %vm536, %v604, %v597
        %v606 = vrot.slane %v597, 4
        %v607 = vsel %vm536, %v603, %v606
        %v609 = vunpack.c.l.s4 1934713408
        %v610 = vunpack.c.0.s8 %v609
        %v611 = vperm.slane %v605, %v610
        %v613 = vunpack.c.l.s4 1934713408
        %v614 = vunpack.c.0.s8 %v613
        %v615 = vperm.slane %v607, %v614
        %v616 = vrot.slane %v611, 4
        %v617 = vsel %vm536, 0, %v616
        %v618 = vrot.slane %v615, 4
        %v619 = vsel %vm536, 0, %v618
        %v620 = vrot.slane %v383, 4
        %v621 = vsel %vm536, %v620, %v375
        %v623 = vunpack.c.l.s4 1983009808
        %v624 = vunpack.c.0.s8 %v623
        %v625 = vperm.slane %v621, %v624
        %v626 = vrot.slane %v387, 4
        %v627 = vsel %vm536, %v626, %v379
        %v629 = vunpack.c.l.s4 1983009808
        %v630 = vunpack.c.0.s8 %v629
        %v631 = vperm.slane %v627, %v630
        %v632 = vrot.slane %v631, 4
        %v633 = vsel %vm536, %v632, %v625
        %v634 = vrot.slane %v625, 4
        %v635 = vsel %vm536, %v631, %v634
        %v637 = vunpack.c.l.s4 1934713408
        %v638 = vunpack.c.0.s8 %v637
        %v639 = vperm.slane %v633, %v638
        %v641 = vunpack.c.l.s4 1934713408
        %v642 = vunpack.c.0.s8 %v641
        %v643 = vperm.slane %v635, %v642
        %v644 = vrot.slane %v639, 4
        %v645 = vsel %vm536, 0, %v644
        %v646 = vrot.slane %v643, 4
        %v647 = vsel %vm536, 0, %v646
        %v648 = vrot.slane %v397, 4
        %v649 = vsel %vm536, %v648, %v389
        %v651 = vunpack.c.l.s4 1983009808
        %v652 = vunpack.c.0.s8 %v651
        %v653 = vperm.slane %v649, %v652
        %v654 = vrot.slane %v401, 4
        %v655 = vsel %vm536, %v654, %v393
        %v657 = vunpack.c.l.s4 1983009808
        %v658 = vunpack.c.0.s8 %v657
        %v659 = vperm.slane %v655, %v658
        %v660 = vrot.slane %v659, 4
        %v661 = vsel %vm536, %v660, %v653
        %v662 = vrot.slane %v653, 4
        %v663 = vsel %vm536, %v659, %v662
        %v665 = vunpack.c.l.s4 1934713408
        %v666 = vunpack.c.0.s8 %v665
        %v667 = vperm.slane %v661, %v666
        %v669 = vunpack.c.l.s4 1934713408
        %v670 = vunpack.c.0.s8 %v669
        %v671 = vperm.slane %v663, %v670
        %v672 = vrot.slane %v667, 4
        %v673 = vsel %vm536, 0, %v672
        %v674 = vrot.slane %v671, 4
        %v675 = vsel %vm536, 0, %v674
        %v676 = vrot.slane %v399, 4
        %v677 = vsel %vm536, %v676, %v391
        %v679 = vunpack.c.l.s4 1983009808
        %v680 = vunpack.c.0.s8 %v679
        %v681 = vperm.slane %v677, %v680
        %v682 = vrot.slane %v403, 4
        %v683 = vsel %vm536, %v682, %v395
        %v685 = vunpack.c.l.s4 1983009808
        %v686 = vunpack.c.0.s8 %v685
        %v687 = vperm.slane %v683, %v686
        %v688 = vrot.slane %v687, 4
        %v689 = vsel %vm536, %v688, %v681
        %v690 = vrot.slane %v681, 4
        %v691 = vsel %vm536, %v687, %v690
        %v693 = vunpack.c.l.s4 1934713408
        %v694 = vunpack.c.0.s8 %v693
        %v695 = vperm.slane %v689, %v694
        %v697 = vunpack.c.l.s4 1934713408
        %v698 = vunpack.c.0.s8 %v697
        %v699 = vperm.slane %v691, %v698
        %v700 = vrot.slane %v695, 4
        %v701 = vsel %vm536, 0, %v700
        %v702 = vrot.slane %v699, 4
        %v703 = vsel %vm536, 0, %v702
        %v704 = vrot.slane %v413, 4
        %v705 = vsel %vm536, %v704, %v405
        %v707 = vunpack.c.l.s4 1983009808
        %v708 = vunpack.c.0.s8 %v707
        %v709 = vperm.slane %v705, %v708
        %v710 = vrot.slane %v417, 4
        %v711 = vsel %vm536, %v710, %v409
        %v713 = vunpack.c.l.s4 1983009808
        %v714 = vunpack.c.0.s8 %v713
        %v715 = vperm.slane %v711, %v714
        %v716 = vrot.slane %v715, 4
        %v717 = vsel %vm536, %v716, %v709
        %v718 = vrot.slane %v709, 4
        %v719 = vsel %vm536, %v715, %v718
        %v721 = vunpack.c.l.s4 1934713408
        %v722 = vunpack.c.0.s8 %v721
        %v723 = vperm.slane %v717, %v722
        %v725 = vunpack.c.l.s4 1934713408
        %v726 = vunpack.c.0.s8 %v725
        %v727 = vperm.slane %v719, %v726
        %v728 = vrot.slane %v723, 4
        %v729 = vsel %vm536, 0, %v728
        %v730 = vrot.slane %v727, 4
        %v731 = vsel %vm536, 0, %v730
        %v732 = vrot.slane %v415, 4
        %v733 = vsel %vm536, %v732, %v407
        %v735 = vunpack.c.l.s4 1983009808
        %v736 = vunpack.c.0.s8 %v735
        %v737 = vperm.slane %v733, %v736
        %v738 = vrot.slane %v419, 4
        %v739 = vsel %vm536, %v738, %v411
        %v741 = vunpack.c.l.s4 1983009808
        %v742 = vunpack.c.0.s8 %v741
        %v743 = vperm.slane %v739, %v742
        %v744 = vrot.slane %v743, 4
        %v745 = vsel %vm536, %v744, %v737
        %v746 = vrot.slane %v737, 4
        %v747 = vsel %vm536, %v743, %v746
        %v749 = vunpack.c.l.s4 1934713408
        %v750 = vunpack.c.0.s8 %v749
        %v751 = vperm.slane %v745, %v750
        %v753 = vunpack.c.l.s4 1934713408
        %v754 = vunpack.c.0.s8 %v753
        %v755 = vperm.slane %v747, %v754
        %v756 = vrot.slane %v751, 4
        %v757 = vsel %vm536, 0, %v756
        %v758 = vrot.slane %v755, 4
        %v759 = vsel %vm536, 0, %v758
        %v760 = vrot.slane %v366, 4
        %v761 = vsel %vm536, %v760, %v358
        %v763 = vunpack.c.l.s4 1983009808
        %v764 = vunpack.c.0.s8 %v763
        %v765 = vperm.slane %v761, %v764
        %v766 = vrot.slane %v370, 4
        %v767 = vsel %vm536, %v766, %v362
        %v769 = vunpack.c.l.s4 1983009808
        %v770 = vunpack.c.0.s8 %v769
        %v771 = vperm.slane %v767, %v770
        %v772 = vrot.slane %v771, 4
        %v773 = vsel %vm536, %v772, %v765
        %v774 = vrot.slane %v765, 4
        %v775 = vsel %vm536, %v771, %v774
        %v777 = vunpack.c.l.s4 1934713408
        %v778 = vunpack.c.0.s8 %v777
        %v779 = vperm.slane %v773, %v778
        %v781 = vunpack.c.l.s4 1934713408
        %v782 = vunpack.c.0.s8 %v781
        %v783 = vperm.slane %v775, %v782
        %v784 = vrot.slane %v779, 4
        %v785 = vsel %vm536, 0, %v784
        %v786 = vrot.slane %v783, 4
        %v787 = vsel %vm536, 0, %v786
        %v788 = vrot.slane %v368, 4
        %v789 = vsel %vm536, %v788, %v360
        %v791 = vunpack.c.l.s4 1983009808
        %v792 = vunpack.c.0.s8 %v791
        %v793 = vperm.slane %v789, %v792
        %v794 = vrot.slane %v372, 4
        %v795 = vsel %vm536, %v794, %v364
        %v797 = vunpack.c.l.s4 1983009808
        %v798 = vunpack.c.0.s8 %v797
        %v799 = vperm.slane %v795, %v798
        %v800 = vrot.slane %v799, 4
        %v801 = vsel %vm536, %v800, %v793
        %v802 = vrot.slane %v793, 4
        %v803 = vsel %vm536, %v799, %v802
        %v805 = vunpack.c.l.s4 1934713408
        %v806 = vunpack.c.0.s8 %v805
        %v807 = vperm.slane %v801, %v806
        %v809 = vunpack.c.l.s4 1934713408
        %v810 = vunpack.c.0.s8 %v809
        %v811 = vperm.slane %v803, %v810
        %v812 = vrot.slane %v807, 4
        %v813 = vsel %vm536, 0, %v812
        %v814 = vrot.slane %v811, 4
        %v815 = vsel %vm536, 0, %v814
        %v816 = vrot.slane %v382, 4
        %v817 = vsel %vm536, %v816, %v374
        %v819 = vunpack.c.l.s4 1983009808
        %v820 = vunpack.c.0.s8 %v819
        %v821 = vperm.slane %v817, %v820
        %v822 = vrot.slane %v386, 4
        %v823 = vsel %vm536, %v822, %v378
        %v825 = vunpack.c.l.s4 1983009808
        %v826 = vunpack.c.0.s8 %v825
        %v827 = vperm.slane %v823, %v826
        %v828 = vrot.slane %v827, 4
        %v829 = vsel %vm536, %v828, %v821
        %v830 = vrot.slane %v821, 4
        %v831 = vsel %vm536, %v827, %v830
        %v833 = vunpack.c.l.s4 1934713408
        %v834 = vunpack.c.0.s8 %v833
        %v835 = vperm.slane %v829, %v834
        %v837 = vunpack.c.l.s4 1934713408
        %v838 = vunpack.c.0.s8 %v837
        %v839 = vperm.slane %v831, %v838
        %v840 = vrot.slane %v835, 4
        %v841 = vsel %vm536, 0, %v840
        %v842 = vrot.slane %v839, 4
        %v843 = vsel %vm536, 0, %v842
        %v844 = vrot.slane %v384, 4
        %v845 = vsel %vm536, %v844, %v376
        %v847 = vunpack.c.l.s4 1983009808
        %v848 = vunpack.c.0.s8 %v847
        %v849 = vperm.slane %v845, %v848
        %v850 = vrot.slane %v388, 4
        %v851 = vsel %vm536, %v850, %v380
        %v853 = vunpack.c.l.s4 1983009808
        %v854 = vunpack.c.0.s8 %v853
        %v855 = vperm.slane %v851, %v854
        %v856 = vrot.slane %v855, 4
        %v857 = vsel %vm536, %v856, %v849
        %v858 = vrot.slane %v849, 4
        %v859 = vsel %vm536, %v855, %v858
        %v861 = vunpack.c.l.s4 1934713408
        %v862 = vunpack.c.0.s8 %v861
        %v863 = vperm.slane %v857, %v862
        %v865 = vunpack.c.l.s4 1934713408
        %v866 = vunpack.c.0.s8 %v865
        %v867 = vperm.slane %v859, %v866
        %v868 = vrot.slane %v863, 4
        %v869 = vsel %vm536, 0, %v868
        %v870 = vrot.slane %v867, 4
        %v871 = vsel %vm536, 0, %v870
        %v872 = vrot.slane %v398, 4
        %v873 = vsel %vm536, %v872, %v390
        %v875 = vunpack.c.l.s4 1983009808
        %v876 = vunpack.c.0.s8 %v875
        %v877 = vperm.slane %v873, %v876
        %v878 = vrot.slane %v402, 4
        %v879 = vsel %vm536, %v878, %v394
        %v881 = vunpack.c.l.s4 1983009808
        %v882 = vunpack.c.0.s8 %v881
        %v883 = vperm.slane %v879, %v882
        %v884 = vrot.slane %v883, 4
        %v885 = vsel %vm536, %v884, %v877
        %v886 = vrot.slane %v877, 4
        %v887 = vsel %vm536, %v883, %v886
        %v889 = vunpack.c.l.s4 1934713408
        %v890 = vunpack.c.0.s8 %v889
        %v891 = vperm.slane %v885, %v890
        %v893 = vunpack.c.l.s4 1934713408
        %v894 = vunpack.c.0.s8 %v893
        %v895 = vperm.slane %v887, %v894
        %v896 = vrot.slane %v891, 4
        %v897 = vsel %vm536, 0, %v896
        %v898 = vrot.slane %v895, 4
        %v899 = vsel %vm536, 0, %v898
        %v900 = vrot.slane %v400, 4
        %v901 = vsel %vm536, %v900, %v392
        %v903 = vunpack.c.l.s4 1983009808
        %v904 = vunpack.c.0.s8 %v903
        %v905 = vperm.slane %v901, %v904
        %v906 = vrot.slane %v404, 4
        %v907 = vsel %vm536, %v906, %v396
        %v909 = vunpack.c.l.s4 1983009808
        %v910 = vunpack.c.0.s8 %v909
        %v911 = vperm.slane %v907, %v910
        %v912 = vrot.slane %v911, 4
        %v913 = vsel %vm536, %v912, %v905
        %v914 = vrot.slane %v905, 4
        %v915 = vsel %vm536, %v911, %v914
        %v917 = vunpack.c.l.s4 1934713408
        %v918 = vunpack.c.0.s8 %v917
        %v919 = vperm.slane %v913, %v918
        %v921 = vunpack.c.l.s4 1934713408
        %v922 = vunpack.c.0.s8 %v921
        %v923 = vperm.slane %v915, %v922
        %v924 = vrot.slane %v919, 4
        %v925 = vsel %vm536, 0, %v924
        %v926 = vrot.slane %v923, 4
        %v927 = vsel %vm536, 0, %v926
        %v928 = vrot.slane %v414, 4
        %v929 = vsel %vm536, %v928, %v406
        %v931 = vunpack.c.l.s4 1983009808
        %v932 = vunpack.c.0.s8 %v931
        %v933 = vperm.slane %v929, %v932
        %v934 = vrot.slane %v418, 4
        %v935 = vsel %vm536, %v934, %v410
        %v937 = vunpack.c.l.s4 1983009808
        %v938 = vunpack.c.0.s8 %v937
        %v939 = vperm.slane %v935, %v938
        %v940 = vrot.slane %v939, 4
        %v941 = vsel %vm536, %v940, %v933
        %v942 = vrot.slane %v933, 4
        %v943 = vsel %vm536, %v939, %v942
        %v945 = vunpack.c.l.s4 1934713408
        %v946 = vunpack.c.0.s8 %v945
        %v947 = vperm.slane %v941, %v946
        %v949 = vunpack.c.l.s4 1934713408
        %v950 = vunpack.c.0.s8 %v949
        %v951 = vperm.slane %v943, %v950
        %v952 = vrot.slane %v947, 4
        %v953 = vsel %vm536, 0, %v952
        %v954 = vrot.slane %v951, 4
        %v955 = vsel %vm536, 0, %v954
        %v956 = vrot.slane %v416, 4
        %v957 = vsel %vm536, %v956, %v408
        %v959 = vunpack.c.l.s4 1983009808
        %v960 = vunpack.c.0.s8 %v959
        %v961 = vperm.slane %v957, %v960
        %v962 = vrot.slane %v420, 4
        %v963 = vsel %vm536, %v962, %v412
        %v965 = vunpack.c.l.s4 1983009808
        %v966 = vunpack.c.0.s8 %v965
        %v967 = vperm.slane %v963, %v966
        %v968 = vrot.slane %v967, 4
        %v969 = vsel %vm536, %v968, %v961
        %v970 = vrot.slane %v961, 4
        %v971 = vsel %vm536, %v967, %v970
        %v973 = vunpack.c.l.s4 1934713408
        %v974 = vunpack.c.0.s8 %v973
        %v975 = vperm.slane %v969, %v974
        %v977 = vunpack.c.l.s4 1934713408
        %v978 = vunpack.c.0.s8 %v977
        %v979 = vperm.slane %v971, %v978
        %v980 = vrot.slane %v975, 4
        %v981 = vsel %vm536, 0, %v980
        %v982 = vrot.slane %v979, 4
        %v983 = vsel %vm536, 0, %v982
        %v986 = vpack.i.b16 %v583, %v555
        %v987 = vshrl.u32 %v555, 16
        %v988 = vshrl.u32 %v583, 16
        %v989 = vpack.i.b16 %v988, %v987
        %v992 = vpack.i.b16 %v589, %v561
        %v993 = vshrl.u32 %v561, 16
        %v994 = vshrl.u32 %v589, 16
        %v995 = vpack.i.b16 %v994, %v993
        %v998 = vpack.i.b16 %v587, %v559
        %v999 = vshrl.u32 %v559, 16
        %v1000 = vshrl.u32 %v587, 16
        %v1001 = vpack.i.b16 %v1000, %v999
        %v1004 = vpack.i.b16 %v591, %v563
        %v1005 = vshrl.u32 %v563, 16
        %v1006 = vshrl.u32 %v591, 16
        %v1007 = vpack.i.b16 %v1006, %v1005
        %v1010 = vpack.i.b16 %v807, %v779
        %v1011 = vshrl.u32 %v779, 16
        %v1012 = vshrl.u32 %v807, 16
        %v1013 = vpack.i.b16 %v1012, %v1011
        %v1016 = vpack.i.b16 %v813, %v785
        %v1017 = vshrl.u32 %v785, 16
        %v1018 = vshrl.u32 %v813, 16
        %v1019 = vpack.i.b16 %v1018, %v1017
        %v1022 = vpack.i.b16 %v811, %v783
        %v1023 = vshrl.u32 %v783, 16
        %v1024 = vshrl.u32 %v811, 16
        %v1025 = vpack.i.b16 %v1024, %v1023
        %v1028 = vpack.i.b16 %v815, %v787
        %v1029 = vshrl.u32 %v787, 16
        %v1030 = vshrl.u32 %v815, 16
        %v1031 = vpack.i.b16 %v1030, %v1029
        %v1034 = vpack.i.b16 %v639, %v611
        %v1035 = vshrl.u32 %v611, 16
        %v1036 = vshrl.u32 %v639, 16
        %v1037 = vpack.i.b16 %v1036, %v1035
        %v1040 = vpack.i.b16 %v645, %v617
        %v1041 = vshrl.u32 %v617, 16
        %v1042 = vshrl.u32 %v645, 16
        %v1043 = vpack.i.b16 %v1042, %v1041
        %v1046 = vpack.i.b16 %v643, %v615
        %v1047 = vshrl.u32 %v615, 16
        %v1048 = vshrl.u32 %v643, 16
        %v1049 = vpack.i.b16 %v1048, %v1047
        %v1052 = vpack.i.b16 %v647, %v619
        %v1053 = vshrl.u32 %v619, 16
        %v1054 = vshrl.u32 %v647, 16
        %v1055 = vpack.i.b16 %v1054, %v1053
        %v1058 = vpack.i.b16 %v863, %v835
        %v1059 = vshrl.u32 %v835, 16
        %v1060 = vshrl.u32 %v863, 16
        %v1061 = vpack.i.b16 %v1060, %v1059
        %v1064 = vpack.i.b16 %v869, %v841
        %v1065 = vshrl.u32 %v841, 16
        %v1066 = vshrl.u32 %v869, 16
        %v1067 = vpack.i.b16 %v1066, %v1065
        %v1070 = vpack.i.b16 %v867, %v839
        %v1071 = vshrl.u32 %v839, 16
        %v1072 = vshrl.u32 %v867, 16
        %v1073 = vpack.i.b16 %v1072, %v1071
        %v1076 = vpack.i.b16 %v871, %v843
        %v1077 = vshrl.u32 %v843, 16
        %v1078 = vshrl.u32 %v871, 16
        %v1079 = vpack.i.b16 %v1078, %v1077
        %v1082 = vpack.i.b16 %v695, %v667
        %v1083 = vshrl.u32 %v667, 16
        %v1084 = vshrl.u32 %v695, 16
        %v1085 = vpack.i.b16 %v1084, %v1083
        %v1088 = vpack.i.b16 %v701, %v673
        %v1089 = vshrl.u32 %v673, 16
        %v1090 = vshrl.u32 %v701, 16
        %v1091 = vpack.i.b16 %v1090, %v1089
        %v1094 = vpack.i.b16 %v699, %v671
        %v1095 = vshrl.u32 %v671, 16
        %v1096 = vshrl.u32 %v699, 16
        %v1097 = vpack.i.b16 %v1096, %v1095
        %v1100 = vpack.i.b16 %v703, %v675
        %v1101 = vshrl.u32 %v675, 16
        %v1102 = vshrl.u32 %v703, 16
        %v1103 = vpack.i.b16 %v1102, %v1101
        %v1106 = vpack.i.b16 %v919, %v891
        %v1107 = vshrl.u32 %v891, 16
        %v1108 = vshrl.u32 %v919, 16
        %v1109 = vpack.i.b16 %v1108, %v1107
        %v1112 = vpack.i.b16 %v925, %v897
        %v1113 = vshrl.u32 %v897, 16
        %v1114 = vshrl.u32 %v925, 16
        %v1115 = vpack.i.b16 %v1114, %v1113
        %v1118 = vpack.i.b16 %v923, %v895
        %v1119 = vshrl.u32 %v895, 16
        %v1120 = vshrl.u32 %v923, 16
        %v1121 = vpack.i.b16 %v1120, %v1119
        %v1124 = vpack.i.b16 %v927, %v899
        %v1125 = vshrl.u32 %v899, 16
        %v1126 = vshrl.u32 %v927, 16
        %v1127 = vpack.i.b16 %v1126, %v1125
        %v1130 = vpack.i.b16 %v751, %v723
        %v1131 = vshrl.u32 %v723, 16
        %v1132 = vshrl.u32 %v751, 16
        %v1133 = vpack.i.b16 %v1132, %v1131
        %v1136 = vpack.i.b16 %v757, %v729
        %v1137 = vshrl.u32 %v729, 16
        %v1138 = vshrl.u32 %v757, 16
        %v1139 = vpack.i.b16 %v1138, %v1137
        %v1142 = vpack.i.b16 %v755, %v727
        %v1143 = vshrl.u32 %v727, 16
        %v1144 = vshrl.u32 %v755, 16
        %v1145 = vpack.i.b16 %v1144, %v1143
        %v1148 = vpack.i.b16 %v759, %v731
        %v1149 = vshrl.u32 %v731, 16
        %v1150 = vshrl.u32 %v759, 16
        %v1151 = vpack.i.b16 %v1150, %v1149
        %v1154 = vpack.i.b16 %v975, %v947
        %v1155 = vshrl.u32 %v947, 16
        %v1156 = vshrl.u32 %v975, 16
        %v1157 = vpack.i.b16 %v1156, %v1155
        %v1160 = vpack.i.b16 %v981, %v953
        %v1161 = vshrl.u32 %v953, 16
        %v1162 = vshrl.u32 %v981, 16
        %v1163 = vpack.i.b16 %v1162, %v1161
        %v1166 = vpack.i.b16 %v979, %v951
        %v1167 = vshrl.u32 %v951, 16
        %v1168 = vshrl.u32 %v979, 16
        %v1169 = vpack.i.b16 %v1168, %v1167
        %v1172 = vpack.i.b16 %v983, %v955
        %v1173 = vshrl.u32 %v955, 16
        %v1174 = vshrl.u32 %v983, 16
        %v1175 = vpack.i.b16 %v1174, %v1173
        %v1176 = vunpack.c.l.b16 %v986
        %v1177 = vunpack.c.l.b16 %v1034
        %v1178 = vunpack.c.l.b16 %v1082
        %v1179 = vunpack.c.l.b16 %v1130
        %v1180 = vpack.c.b16 %v1177, %v1176
        %v1181 = vpack.c.b16 %v1179, %v1178
        %v1182 = vunpack.c.l.b16 %v989
        %v1183 = vunpack.c.l.b16 %v1037
        %v1184 = vunpack.c.l.b16 %v1085
        %v1185 = vunpack.c.l.b16 %v1133
        %v1186 = vpack.c.b16 %v1183, %v1182
        %v1187 = vpack.c.b16 %v1185, %v1184
        %1188 = vrot.lane.b32.xlu0 %v1186, 32
        %v1189 = vpop.permute.xlu0 %1188
        %1190 = vrot.lane.b32.xlu0 %v1187, 32
        %v1191 = vpop.permute.xlu0 %1190
        %v1192 = vunpack.c.l.b16 %v992
        %v1193 = vunpack.c.l.b16 %v1040
        %v1194 = vunpack.c.l.b16 %v1088
        %v1195 = vunpack.c.l.b16 %v1136
        %v1196 = vpack.c.b16 %v1193, %v1192
        %v1197 = vpack.c.b16 %v1195, %v1194
        %1198 = vrot.lane.b32.xlu0 %v1196, 64
        %v1199 = vpop.permute.xlu0 %1198
        %1200 = vrot.lane.b32.xlu0 %v1197, 64
        %v1201 = vpop.permute.xlu0 %1200
        %v1202 = vunpack.c.l.b16 %v995
        %v1203 = vunpack.c.l.b16 %v1043
        %v1204 = vunpack.c.l.b16 %v1091
        %v1205 = vunpack.c.l.b16 %v1139
        %v1206 = vpack.c.b16 %v1203, %v1202
        %v1207 = vpack.c.b16 %v1205, %v1204
        %1208 = vrot.lane.b32.xlu0 %v1206, 96
        %v1209 = vpop.permute.xlu0 %1208
        %1210 = vrot.lane.b32.xlu0 %v1207, 96
        %v1211 = vpop.permute.xlu0 %1210
        %v1212 = vunpack.c.l.b16 %v998
        %v1213 = vunpack.c.l.b16 %v1046
        %v1214 = vunpack.c.l.b16 %v1094
        %v1215 = vunpack.c.l.b16 %v1142
        %v1216 = vpack.c.b16 %v1213, %v1212
        %v1217 = vpack.c.b16 %v1215, %v1214
        %v1218 = vunpack.c.l.b16 %v1001
        %v1219 = vunpack.c.l.b16 %v1049
        %v1220 = vunpack.c.l.b16 %v1097
        %v1221 = vunpack.c.l.b16 %v1145
        %v1222 = vpack.c.b16 %v1219, %v1218
        %v1223 = vpack.c.b16 %v1221, %v1220
        %1224 = vrot.lane.b32.xlu0 %v1222, 32
        %v1225 = vpop.permute.xlu0 %1224
        %1226 = vrot.lane.b32.xlu0 %v1223, 32
        %v1227 = vpop.permute.xlu0 %1226
        %v1228 = vunpack.c.l.b16 %v1004
        %v1229 = vunpack.c.l.b16 %v1052
        %v1230 = vunpack.c.l.b16 %v1100
        %v1231 = vunpack.c.l.b16 %v1148
        %v1232 = vpack.c.b16 %v1229, %v1228
        %v1233 = vpack.c.b16 %v1231, %v1230
        %1234 = vrot.lane.b32.xlu0 %v1232, 64
        %v1235 = vpop.permute.xlu0 %1234
        %1236 = vrot.lane.b32.xlu0 %v1233, 64
        %v1237 = vpop.permute.xlu0 %1236
        %v1238 = vunpack.c.l.b16 %v1007
        %v1239 = vunpack.c.l.b16 %v1055
        %v1240 = vunpack.c.l.b16 %v1103
        %v1241 = vunpack.c.l.b16 %v1151
        %v1242 = vpack.c.b16 %v1239, %v1238
        %v1243 = vpack.c.b16 %v1241, %v1240
        %1244 = vrot.lane.b32.xlu0 %v1242, 96
        %v1245 = vpop.permute.xlu0 %1244
        %1246 = vrot.lane.b32.xlu0 %v1243, 96
        %v1247 = vpop.permute.xlu0 %1246
        %v1248 = vunpack.c.l.b16 %v1010
        %v1249 = vunpack.c.l.b16 %v1058
        %v1250 = vunpack.c.l.b16 %v1106
        %v1251 = vunpack.c.l.b16 %v1154
        %v1252 = vpack.c.b16 %v1249, %v1248
        %v1253 = vpack.c.b16 %v1251, %v1250
        %v1254 = vunpack.c.l.b16 %v1013
        %v1255 = vunpack.c.l.b16 %v1061
        %v1256 = vunpack.c.l.b16 %v1109
        %v1257 = vunpack.c.l.b16 %v1157
        %v1258 = vpack.c.b16 %v1255, %v1254
        %v1259 = vpack.c.b16 %v1257, %v1256
        %1260 = vrot.lane.b32.xlu0 %v1258, 32
        %v1261 = vpop.permute.xlu0 %1260
        %1262 = vrot.lane.b32.xlu0 %v1259, 32
        %v1263 = vpop.permute.xlu0 %1262
        %v1264 = vunpack.c.l.b16 %v1016
        %v1265 = vunpack.c.l.b16 %v1064
        %v1266 = vunpack.c.l.b16 %v1112
        %v1267 = vunpack.c.l.b16 %v1160
        %v1268 = vpack.c.b16 %v1265, %v1264
        %v1269 = vpack.c.b16 %v1267, %v1266
        %1270 = vrot.lane.b32.xlu0 %v1268, 64
        %v1271 = vpop.permute.xlu0 %1270
        %1272 = vrot.lane.b32.xlu0 %v1269, 64
        %v1273 = vpop.permute.xlu0 %1272
        %v1274 = vunpack.c.l.b16 %v1019
        %v1275 = vunpack.c.l.b16 %v1067
        %v1276 = vunpack.c.l.b16 %v1115
        %v1277 = vunpack.c.l.b16 %v1163
        %v1278 = vpack.c.b16 %v1275, %v1274
        %v1279 = vpack.c.b16 %v1277, %v1276
        %1280 = vrot.lane.b32.xlu0 %v1278, 96
        %v1281 = vpop.permute.xlu0 %1280
        %1282 = vrot.lane.b32.xlu0 %v1279, 96
        %v1283 = vpop.permute.xlu0 %1282
        %v1284 = vunpack.c.l.b16 %v1022
        %v1285 = vunpack.c.l.b16 %v1070
        %v1286 = vunpack.c.l.b16 %v1118
        %v1287 = vunpack.c.l.b16 %v1166
        %v1288 = vpack.c.b16 %v1285, %v1284
        %v1289 = vpack.c.b16 %v1287, %v1286
        %v1290 = vunpack.c.l.b16 %v1025
        %v1291 = vunpack.c.l.b16 %v1073
        %v1292 = vunpack.c.l.b16 %v1121
        %v1293 = vunpack.c.l.b16 %v1169
        %v1294 = vpack.c.b16 %v1291, %v1290
        %v1295 = vpack.c.b16 %v1293, %v1292
        %1296 = vrot.lane.b32.xlu0 %v1294, 32
        %v1297 = vpop.permute.xlu0 %1296
        %1298 = vrot.lane.b32.xlu0 %v1295, 32
        %v1299 = vpop.permute.xlu0 %1298
        %v1300 = vunpack.c.l.b16 %v1028
        %v1301 = vunpack.c.l.b16 %v1076
        %v1302 = vunpack.c.l.b16 %v1124
        %v1303 = vunpack.c.l.b16 %v1172
        %v1304 = vpack.c.b16 %v1301, %v1300
        %v1305 = vpack.c.b16 %v1303, %v1302
        %1306 = vrot.lane.b32.xlu0 %v1304, 64
        %v1307 = vpop.permute.xlu0 %1306
        %1308 = vrot.lane.b32.xlu0 %v1305, 64
        %v1309 = vpop.permute.xlu0 %1308
        %v1310 = vunpack.c.l.b16 %v1031
        %v1311 = vunpack.c.l.b16 %v1079
        %v1312 = vunpack.c.l.b16 %v1127
        %v1313 = vunpack.c.l.b16 %v1175
        %v1314 = vpack.c.b16 %v1311, %v1310
        %v1315 = vpack.c.b16 %v1313, %v1312
        %1316 = vrot.lane.b32.xlu0 %v1314, 96
        %v1317 = vpop.permute.xlu0 %1316
        %1318 = vrot.lane.b32.xlu0 %v1315, 96
        %v1319 = vpop.permute.xlu0 %1318
        %vm1320 = vcmask 261120
        %v1323 = vsel %vm1320, %v1180, %v1189
        %v1326 = vsel %vm1320, %v1181, %v1191
        %vm1327 = vcmask 523264
        %v1329 = vsel %vm1327, %v1323, %v1199
        %v1331 = vsel %vm1327, %v1326, %v1201
        %vm1332 = vcmask 785408
        %v1334 = vsel %vm1332, %v1329, %v1209
        %v1337 = vsel %vm1332, %v1331, %v1211
        %v1341 = vsel %vm1320, %v1216, %v1225
        %v1344 = vsel %vm1320, %v1217, %v1227
        %v1346 = vsel %vm1327, %v1341, %v1235
        %v1348 = vsel %vm1327, %v1344, %v1237
        %v1350 = vsel %vm1332, %v1346, %v1245
        %v1353 = vsel %vm1332, %v1348, %v1247
        %v1357 = vsel %vm1320, %v1252, %v1261
        %v1360 = vsel %vm1320, %v1253, %v1263
        %v1362 = vsel %vm1327, %v1357, %v1271
        %v1364 = vsel %vm1327, %v1360, %v1273
        %v1366 = vsel %vm1332, %v1362, %v1281
        %v1369 = vsel %vm1332, %v1364, %v1283
        %v1373 = vsel %vm1320, %v1288, %v1297
        %v1376 = vsel %vm1320, %v1289, %v1299
        %v1378 = vsel %vm1327, %v1373, %v1307
        %v1380 = vsel %vm1327, %v1376, %v1309
        %v1382 = vsel %vm1332, %v1378, %v1317
        %v1385 = vsel %vm1332, %v1380, %v1319
        %v1387 = vrot.slane %v481, 4
        %vm1388 = vcmask 1047556
        %v1389 = vsel %vm1388, %v1387, %v473
        %v1390 = vrot.slane %v473, 4
        %v1391 = vsel %vm1388, %v481, %v1390
        %v1393 = vunpack.c.l.s4 1983009808
        %v1394 = vunpack.c.0.s8 %v1393
        %v1395 = vperm.slane %v1389, %v1394
        %v1397 = vunpack.c.l.s4 1983009808
        %v1398 = vunpack.c.0.s8 %v1397
        %v1399 = vperm.slane %v1391, %v1398
        %v1400 = vrot.slane %v485, 4
        %v1401 = vsel %vm1388, %v1400, %v477
        %v1402 = vrot.slane %v477, 4
        %v1403 = vsel %vm1388, %v485, %v1402
        %v1405 = vunpack.c.l.s4 1983009808
        %v1406 = vunpack.c.0.s8 %v1405
        %v1407 = vperm.slane %v1401, %v1406
        %v1409 = vunpack.c.l.s4 1983009808
        %v1410 = vunpack.c.0.s8 %v1409
        %v1411 = vperm.slane %v1403, %v1410
        %v1412 = vrot.slane %v497, 4
        %v1413 = vsel %vm1388, %v1412, %v489
        %v1414 = vrot.slane %v489, 4
        %v1415 = vsel %vm1388, %v497, %v1414
        %v1417 = vunpack.c.l.s4 1983009808
        %v1418 = vunpack.c.0.s8 %v1417
        %v1419 = vperm.slane %v1413, %v1418
        %v1421 = vunpack.c.l.s4 1983009808
        %v1422 = vunpack.c.0.s8 %v1421
        %v1423 = vperm.slane %v1415, %v1422
        %v1424 = vrot.slane %v501, 4
        %v1425 = vsel %vm1388, %v1424, %v493
        %v1426 = vrot.slane %v493, 4
        %v1427 = vsel %vm1388, %v501, %v1426
        %v1429 = vunpack.c.l.s4 1983009808
        %v1430 = vunpack.c.0.s8 %v1429
        %v1431 = vperm.slane %v1425, %v1430
        %v1433 = vunpack.c.l.s4 1983009808
        %v1434 = vunpack.c.0.s8 %v1433
        %v1435 = vperm.slane %v1427, %v1434
        %v1436 = vrot.slane %v1407, 4
        %v1437 = vsel %vm1388, %v1436, %v1395
        %v1438 = vrot.slane %v1395, 4
        %v1439 = vsel %vm1388, %v1407, %v1438
        %v1441 = vunpack.c.l.s4 1934713408
        %v1442 = vunpack.c.0.s8 %v1441
        %v1443 = vperm.slane %v1437, %v1442
        %v1445 = vunpack.c.l.s4 1934713408
        %v1446 = vunpack.c.0.s8 %v1445
        %v1447 = vperm.slane %v1439, %v1446
        %v1448 = vrot.slane %v1411, 4
        %v1449 = vsel %vm1388, %v1448, %v1399
        %v1450 = vrot.slane %v1399, 4
        %v1451 = vsel %vm1388, %v1411, %v1450
        %v1453 = vunpack.c.l.s4 1934713408
        %v1454 = vunpack.c.0.s8 %v1453
        %v1455 = vperm.slane %v1449, %v1454
        %v1457 = vunpack.c.l.s4 1934713408
        %v1458 = vunpack.c.0.s8 %v1457
        %v1459 = vperm.slane %v1451, %v1458
        %v1460 = vrot.slane %v1431, 4
        %v1461 = vsel %vm1388, %v1460, %v1419
        %v1462 = vrot.slane %v1419, 4
        %v1463 = vsel %vm1388, %v1431, %v1462
        %v1465 = vunpack.c.l.s4 1934713408
        %v1466 = vunpack.c.0.s8 %v1465
        %v1467 = vperm.slane %v1461, %v1466
        %v1469 = vunpack.c.l.s4 1934713408
        %v1470 = vunpack.c.0.s8 %v1469
        %v1471 = vperm.slane %v1463, %v1470
        %v1472 = vrot.slane %v1435, 4
        %v1473 = vsel %vm1388, %v1472, %v1423
        %v1474 = vrot.slane %v1423, 4
        %v1475 = vsel %vm1388, %v1435, %v1474
        %v1477 = vunpack.c.l.s4 1934713408
        %v1478 = vunpack.c.0.s8 %v1477
        %v1479 = vperm.slane %v1473, %v1478
        %v1481 = vunpack.c.l.s4 1934713408
        %v1482 = vunpack.c.0.s8 %v1481
        %v1483 = vperm.slane %v1475, %v1482
        %v1484 = vrot.slane %v1467, 4
        %v1485 = vsel %vm1388, %v1484, %v1443
        %v1486 = vrot.slane %v1443, 4
        %v1487 = vsel %vm1388, %v1467, %v1486
        %v1488 = vrot.slane %v1471, 4
        %v1489 = vsel %vm1388, %v1488, %v1447
        %v1490 = vrot.slane %v1447, 4
        %v1491 = vsel %vm1388, %v1471, %v1490
        %v1492 = vrot.slane %v1479, 4
        %v1493 = vsel %vm1388, %v1492, %v1455
        %v1494 = vrot.slane %v1455, 4
        %v1495 = vsel %vm1388, %v1479, %v1494
        %v1496 = vrot.slane %v1483, 4
        %v1497 = vsel %vm1388, %v1496, %v1459
        %v1498 = vrot.slane %v1459, 4
        %v1499 = vsel %vm1388, %v1483, %v1498
        %v1500 = vrot.slane %v513, 4
        %v1501 = vsel %vm1388, %v1500, %v505
        %v1502 = vrot.slane %v505, 4
        %v1503 = vsel %vm1388, %v513, %v1502
        %v1505 = vunpack.c.l.s4 1983009808
        %v1506 = vunpack.c.0.s8 %v1505
        %v1507 = vperm.slane %v1501, %v1506
        %v1509 = vunpack.c.l.s4 1983009808
        %v1510 = vunpack.c.0.s8 %v1509
        %v1511 = vperm.slane %v1503, %v1510
        %v1512 = vrot.slane %v517, 4
        %v1513 = vsel %vm1388, %v1512, %v509
        %v1514 = vrot.slane %v509, 4
        %v1515 = vsel %vm1388, %v517, %v1514
        %v1517 = vunpack.c.l.s4 1983009808
        %v1518 = vunpack.c.0.s8 %v1517
        %v1519 = vperm.slane %v1513, %v1518
        %v1521 = vunpack.c.l.s4 1983009808
        %v1522 = vunpack.c.0.s8 %v1521
        %v1523 = vperm.slane %v1515, %v1522
        %v1524 = vrot.slane %v529, 4
        %v1525 = vsel %vm1388, %v1524, %v521
        %v1526 = vrot.slane %v521, 4
        %v1527 = vsel %vm1388, %v529, %v1526
        %v1529 = vunpack.c.l.s4 1983009808
        %v1530 = vunpack.c.0.s8 %v1529
        %v1531 = vperm.slane %v1525, %v1530
        %v1533 = vunpack.c.l.s4 1983009808
        %v1534 = vunpack.c.0.s8 %v1533
        %v1535 = vperm.slane %v1527, %v1534
        %v1536 = vrot.slane %v533, 4
        %v1537 = vsel %vm1388, %v1536, %v525
        %v1538 = vrot.slane %v525, 4
        %v1539 = vsel %vm1388, %v533, %v1538
        %v1541 = vunpack.c.l.s4 1983009808
        %v1542 = vunpack.c.0.s8 %v1541
        %v1543 = vperm.slane %v1537, %v1542
        %v1545 = vunpack.c.l.s4 1983009808
        %v1546 = vunpack.c.0.s8 %v1545
        %v1547 = vperm.slane %v1539, %v1546
        %v1548 = vrot.slane %v1519, 4
        %v1549 = vsel %vm1388, %v1548, %v1507
        %v1550 = vrot.slane %v1507, 4
        %v1551 = vsel %vm1388, %v1519, %v1550
        %v1553 = vunpack.c.l.s4 1934713408
        %v1554 = vunpack.c.0.s8 %v1553
        %v1555 = vperm.slane %v1549, %v1554
        %v1557 = vunpack.c.l.s4 1934713408
        %v1558 = vunpack.c.0.s8 %v1557
        %v1559 = vperm.slane %v1551, %v1558
        %v1560 = vrot.slane %v1523, 4
        %v1561 = vsel %vm1388, %v1560, %v1511
        %v1562 = vrot.slane %v1511, 4
        %v1563 = vsel %vm1388, %v1523, %v1562
        %v1565 = vunpack.c.l.s4 1934713408
        %v1566 = vunpack.c.0.s8 %v1565
        %v1567 = vperm.slane %v1561, %v1566
        %v1569 = vunpack.c.l.s4 1934713408
        %v1570 = vunpack.c.0.s8 %v1569
        %v1571 = vperm.slane %v1563, %v1570
        %v1572 = vrot.slane %v1543, 4
        %v1573 = vsel %vm1388, %v1572, %v1531
        %v1574 = vrot.slane %v1531, 4
        %v1575 = vsel %vm1388, %v1543, %v1574
        %v1577 = vunpack.c.l.s4 1934713408
        %v1578 = vunpack.c.0.s8 %v1577
        %v1579 = vperm.slane %v1573, %v1578
        %v1581 = vunpack.c.l.s4 1934713408
        %v1582 = vunpack.c.0.s8 %v1581
        %v1583 = vperm.slane %v1575, %v1582
        %v1584 = vrot.slane %v1547, 4
        %v1585 = vsel %vm1388, %v1584, %v1535
        %v1586 = vrot.slane %v1535, 4
        %v1587 = vsel %vm1388, %v1547, %v1586
        %v1589 = vunpack.c.l.s4 1934713408
        %v1590 = vunpack.c.0.s8 %v1589
        %v1591 = vperm.slane %v1585, %v1590
        %v1593 = vunpack.c.l.s4 1934713408
        %v1594 = vunpack.c.0.s8 %v1593
        %v1595 = vperm.slane %v1587, %v1594
        %v1596 = vrot.slane %v1579, 4
        %v1597 = vsel %vm1388, %v1596, %v1555
        %v1598 = vrot.slane %v1555, 4
        %v1599 = vsel %vm1388, %v1579, %v1598
        %v1600 = vrot.slane %v1583, 4
        %v1601 = vsel %vm1388, %v1600, %v1559
        %v1602 = vrot.slane %v1559, 4
        %v1603 = vsel %vm1388, %v1583, %v1602
        %v1604 = vrot.slane %v1591, 4
        %v1605 = vsel %vm1388, %v1604, %v1567
        %v1606 = vrot.slane %v1567, 4
        %v1607 = vsel %vm1388, %v1591, %v1606
        %v1608 = vrot.slane %v1595, 4
        %v1609 = vsel %vm1388, %v1608, %v1571
        %v1610 = vrot.slane %v1571, 4
        %v1611 = vsel %vm1388, %v1595, %v1610
        %1614 = vrot.lane.b32.xlu0 %v1487, 32
        %v1615 = vpop.permute.xlu0 %1614
        %1616 = vrot.lane.b32.xlu0 %v1599, 32
        %v1617 = vpop.permute.xlu0 %1616
        %1622 = vrot.lane.b32.xlu0 %v1489, 64
        %v1623 = vpop.permute.xlu0 %1622
        %1624 = vrot.lane.b32.xlu0 %v1601, 64
        %v1625 = vpop.permute.xlu0 %1624
        %1630 = vrot.lane.b32.xlu0 %v1491, 96
        %v1631 = vpop.permute.xlu0 %1630
        %1632 = vrot.lane.b32.xlu0 %v1603, 96
        %v1633 = vpop.permute.xlu0 %1632
        %1638 = vrot.lane.b32.xlu0 %v1495, 32
        %v1639 = vpop.permute.xlu0 %1638
        %1640 = vrot.lane.b32.xlu0 %v1607, 32
        %v1641 = vpop.permute.xlu0 %1640
        %1646 = vrot.lane.b32.xlu0 %v1497, 64
        %v1647 = vpop.permute.xlu0 %1646
        %1648 = vrot.lane.b32.xlu0 %v1609, 64
        %v1649 = vpop.permute.xlu0 %1648
        %1654 = vrot.lane.b32.xlu0 %v1499, 96
        %v1655 = vpop.permute.xlu0 %1654
        %1656 = vrot.lane.b32.xlu0 %v1611, 96
        %v1657 = vpop.permute.xlu0 %1656
        %v1660 = vsel %vm1320, %v1485, %v1615
        %v1661 = vsel %vm1320, %v1597, %v1617
        %v1662 = vsel %vm1327, %v1660, %v1623
        %v1663 = vsel %vm1327, %v1661, %v1625
        %v1664 = vsel %vm1332, %v1662, %v1631
        %v1665 = vsel %vm1332, %v1663, %v1633
        %v1666 = vsel %vm1320, %v1493, %v1639
        %v1667 = vsel %vm1320, %v1605, %v1641
        %v1668 = vsel %vm1327, %v1666, %v1647
        %v1669 = vsel %vm1327, %v1667, %v1649
        %v1670 = vsel %vm1332, %v1668, %v1655
        %v1671 = vsel %vm1332, %v1669, %v1657
        %v1674 = vunpack.c.l.b16 %v421
        %v1675 = vunpack.c.l.b16 %v422
        %v1676 = vpack.c.b16 %v1675, %v1674
        %v1678 = vsel %vm1320, %v1676, 0
        %1680 = vmatpush.bf16.msra.mxu0 0
        %1681 = vmatpush.bf16.msra.mxu0 0
        %1682 = vmatpush.bf16.msra.mxu0 0
        %1683 = vmatpush.bf16.msra.mxu0 0
        %1684 = vmatpush.bf16.msra.mxu0 0
        %1685 = vmatpush.bf16.msra.mxu0 0
        %1686 = vmatpush.bf16.msra.mxu0 %v1337
        %1687 = vmatpush.bf16.msra.mxu0 %v1334
        %1688 = vmatmul.bf16.gmra.mxu0 %v1678
        %v1689 = vpop.f32.mrf.mxu0
        %v1690 = vadd.f32 %v1664, %v1689
        %v1691 = vpop.f32.mrf.mxu0
        %v1692 = vadd.f32 %v1665, %v1691
        %1693 = vdwg.mxu0
        %1694 = vmatpush.bf16.msra.mxu0 0
        %1695 = vmatpush.bf16.msra.mxu0 0
        %1696 = vmatpush.bf16.msra.mxu0 0
        %1697 = vmatpush.bf16.msra.mxu0 0
        %1698 = vmatpush.bf16.msra.mxu0 0
        %1699 = vmatpush.bf16.msra.mxu0 0
        %1700 = vmatpush.bf16.msra.mxu0 %v1353
        %1701 = vmatpush.bf16.msra.mxu0 %v1350
        %1702 = vmatmul.bf16.gmra.mxu0 %v1678
        %v1703 = vpop.f32.mrf.mxu0
        %v1704 = vadd.f32 %v1670, %v1703
        %v1705 = vpop.f32.mrf.mxu0
        %v1706 = vadd.f32 %v1671, %v1705
        %1707 = vdwg.mxu0
        %1708 = vmatpush.bf16.msra.mxu0 0
        %1709 = vmatpush.bf16.msra.mxu0 0
        %1710 = vmatpush.bf16.msra.mxu0 0
        %1711 = vmatpush.bf16.msra.mxu0 0
        %1712 = vmatpush.bf16.msra.mxu0 0
        %1713 = vmatpush.bf16.msra.mxu0 0
        %1714 = vmatpush.bf16.msra.mxu0 %v1369
        %1715 = vmatpush.bf16.msra.mxu0 %v1366
        %1716 = vmatmul.bf16.gmra.mxu0 %v1678
        %v1717 = vpop.f32.mrf.mxu0
        %v1718 = vadd.f32 %v1664, %v1717
        %v1719 = vpop.f32.mrf.mxu0
        %v1720 = vadd.f32 %v1665, %v1719
        %1721 = vdwg.mxu0
        %1722 = vmatpush.bf16.msra.mxu0 0
        %1723 = vmatpush.bf16.msra.mxu0 0
        %1724 = vmatpush.bf16.msra.mxu0 0
        %1725 = vmatpush.bf16.msra.mxu0 0
        %1726 = vmatpush.bf16.msra.mxu0 0
        %1727 = vmatpush.bf16.msra.mxu0 0
        %1728 = vmatpush.bf16.msra.mxu0 %v1385
        %1729 = vmatpush.bf16.msra.mxu0 %v1382
        %1730 = vmatmul.bf16.gmra.mxu0 %v1678
        %v1731 = vpop.f32.mrf.mxu0
        %v1732 = vadd.f32 %v1670, %v1731
        %v1733 = vpop.f32.mrf.mxu0
        %v1734 = vadd.f32 %v1671, %v1733
        %1735 = vdwg.mxu0
        %1738 = vrot.lane.b32.xlu0 %v1690, 96
        %v1739 = vpop.permute.xlu0 %1738
        %1740 = vrot.lane.b32.xlu0 %v1692, 96
        %v1741 = vpop.permute.xlu0 %1740
        %1744 = vrot.lane.b32.xlu0 %v1690, 64
        %v1745 = vpop.permute.xlu0 %1744
        %1746 = vrot.lane.b32.xlu0 %v1692, 64
        %v1747 = vpop.permute.xlu0 %1746
        %1750 = vrot.lane.b32.xlu0 %v1690, 32
        %v1751 = vpop.permute.xlu0 %1750
        %1752 = vrot.lane.b32.xlu0 %v1692, 32
        %v1753 = vpop.permute.xlu0 %1752
        %1758 = vrot.lane.b32.xlu0 %v1704, 96
        %v1759 = vpop.permute.xlu0 %1758
        %1760 = vrot.lane.b32.xlu0 %v1706, 96
        %v1761 = vpop.permute.xlu0 %1760
        %1764 = vrot.lane.b32.xlu0 %v1704, 64
        %v1765 = vpop.permute.xlu0 %1764
        %1766 = vrot.lane.b32.xlu0 %v1706, 64
        %v1767 = vpop.permute.xlu0 %1766
        %1770 = vrot.lane.b32.xlu0 %v1704, 32
        %v1771 = vpop.permute.xlu0 %1770
        %1772 = vrot.lane.b32.xlu0 %v1706, 32
        %v1773 = vpop.permute.xlu0 %1772
        %1778 = vrot.lane.b32.xlu0 %v1718, 96
        %v1779 = vpop.permute.xlu0 %1778
        %1780 = vrot.lane.b32.xlu0 %v1720, 96
        %v1781 = vpop.permute.xlu0 %1780
        %1784 = vrot.lane.b32.xlu0 %v1718, 64
        %v1785 = vpop.permute.xlu0 %1784
        %1786 = vrot.lane.b32.xlu0 %v1720, 64
        %v1787 = vpop.permute.xlu0 %1786
        %1790 = vrot.lane.b32.xlu0 %v1718, 32
        %v1791 = vpop.permute.xlu0 %1790
        %1792 = vrot.lane.b32.xlu0 %v1720, 32
        %v1793 = vpop.permute.xlu0 %1792
        %1798 = vrot.lane.b32.xlu0 %v1732, 96
        %v1799 = vpop.permute.xlu0 %1798
        %1800 = vrot.lane.b32.xlu0 %v1734, 96
        %v1801 = vpop.permute.xlu0 %1800
        %1804 = vrot.lane.b32.xlu0 %v1732, 64
        %v1805 = vpop.permute.xlu0 %1804
        %1806 = vrot.lane.b32.xlu0 %v1734, 64
        %v1807 = vpop.permute.xlu0 %1806
        %1810 = vrot.lane.b32.xlu0 %v1732, 32
        %v1811 = vpop.permute.xlu0 %1810
        %1812 = vrot.lane.b32.xlu0 %v1734, 32
        %v1813 = vpop.permute.xlu0 %1812
        %v1816 = vrot.slane %v1745, 4
        %v1817 = vsel %vm1388, %v1816, %v1690
        %v1818 = vrot.slane %v1690, 4
        %v1819 = vsel %vm1388, %v1745, %v1818
        %v1821 = vunpack.c.l.s4 1983009808
        %v1822 = vunpack.c.0.s8 %v1821
        %v1823 = vperm.slane %v1817, %v1822
        %v1825 = vunpack.c.l.s4 1983009808
        %v1826 = vunpack.c.0.s8 %v1825
        %v1827 = vperm.slane %v1819, %v1826
        %v1828 = vrot.slane %v1751, 4
        %v1829 = vsel %vm1388, %v1828, %v1739
        %v1830 = vrot.slane %v1739, 4
        %v1831 = vsel %vm1388, %v1751, %v1830
        %v1833 = vunpack.c.l.s4 1983009808
        %v1834 = vunpack.c.0.s8 %v1833
        %v1835 = vperm.slane %v1829, %v1834
        %v1837 = vunpack.c.l.s4 1983009808
        %v1838 = vunpack.c.0.s8 %v1837
        %v1839 = vperm.slane %v1831, %v1838
        %v1840 = vrot.slane %v1765, 4
        %v1841 = vsel %vm1388, %v1840, %v1704
        %v1842 = vrot.slane %v1704, 4
        %v1843 = vsel %vm1388, %v1765, %v1842
        %v1845 = vunpack.c.l.s4 1983009808
        %v1846 = vunpack.c.0.s8 %v1845
        %v1847 = vperm.slane %v1841, %v1846
        %v1849 = vunpack.c.l.s4 1983009808
        %v1850 = vunpack.c.0.s8 %v1849
        %v1851 = vperm.slane %v1843, %v1850
        %v1852 = vrot.slane %v1771, 4
        %v1853 = vsel %vm1388, %v1852, %v1759
        %v1854 = vrot.slane %v1759, 4
        %v1855 = vsel %vm1388, %v1771, %v1854
        %v1857 = vunpack.c.l.s4 1983009808
        %v1858 = vunpack.c.0.s8 %v1857
        %v1859 = vperm.slane %v1853, %v1858
        %v1861 = vunpack.c.l.s4 1983009808
        %v1862 = vunpack.c.0.s8 %v1861
        %v1863 = vperm.slane %v1855, %v1862
        %v1864 = vrot.slane %v1835, 4
        %v1865 = vsel %vm1388, %v1864, %v1823
        %v1866 = vrot.slane %v1823, 4
        %v1867 = vsel %vm1388, %v1835, %v1866
        %v1869 = vunpack.c.l.s4 1934713408
        %v1870 = vunpack.c.0.s8 %v1869
        %v1871 = vperm.slane %v1865, %v1870
        %v1873 = vunpack.c.l.s4 1934713408
        %v1874 = vunpack.c.0.s8 %v1873
        %v1875 = vperm.slane %v1867, %v1874
        %v1876 = vrot.slane %v1839, 4
        %v1877 = vsel %vm1388, %v1876, %v1827
        %v1878 = vrot.slane %v1827, 4
        %v1879 = vsel %vm1388, %v1839, %v1878
        %v1881 = vunpack.c.l.s4 1934713408
        %v1882 = vunpack.c.0.s8 %v1881
        %v1883 = vperm.slane %v1877, %v1882
        %v1885 = vunpack.c.l.s4 1934713408
        %v1886 = vunpack.c.0.s8 %v1885
        %v1887 = vperm.slane %v1879, %v1886
        %v1888 = vrot.slane %v1859, 4
        %v1889 = vsel %vm1388, %v1888, %v1847
        %v1890 = vrot.slane %v1847, 4
        %v1891 = vsel %vm1388, %v1859, %v1890
        %v1893 = vunpack.c.l.s4 1934713408
        %v1894 = vunpack.c.0.s8 %v1893
        %v1895 = vperm.slane %v1889, %v1894
        %v1897 = vunpack.c.l.s4 1934713408
        %v1898 = vunpack.c.0.s8 %v1897
        %v1899 = vperm.slane %v1891, %v1898
        %v1900 = vrot.slane %v1863, 4
        %v1901 = vsel %vm1388, %v1900, %v1851
        %v1902 = vrot.slane %v1851, 4
        %v1903 = vsel %vm1388, %v1863, %v1902
        %v1905 = vunpack.c.l.s4 1934713408
        %v1906 = vunpack.c.0.s8 %v1905
        %v1907 = vperm.slane %v1901, %v1906
        %v1909 = vunpack.c.l.s4 1934713408
        %v1910 = vunpack.c.0.s8 %v1909
        %v1911 = vperm.slane %v1903, %v1910
        %v1912 = vrot.slane %v1895, 4
        %v1913 = vsel %vm1388, %v1912, %v1871
        %v1914 = vrot.slane %v1871, 4
        %v1915 = vsel %vm1388, %v1895, %v1914
        %v1916 = vrot.slane %v1899, 4
        %v1917 = vsel %vm1388, %v1916, %v1875
        %v1918 = vrot.slane %v1875, 4
        %v1919 = vsel %vm1388, %v1899, %v1918
        %v1920 = vrot.slane %v1907, 4
        %v1921 = vsel %vm1388, %v1920, %v1883
        %v1922 = vrot.slane %v1883, 4
        %v1923 = vsel %vm1388, %v1907, %v1922
        %v1924 = vrot.slane %v1911, 4
        %v1925 = vsel %vm1388, %v1924, %v1887
        %v1926 = vrot.slane %v1887, 4
        %v1927 = vsel %vm1388, %v1911, %v1926
        %v1928 = vrot.slane %v1785, 4
        %v1929 = vsel %vm1388, %v1928, %v1718
        %v1930 = vrot.slane %v1718, 4
        %v1931 = vsel %vm1388, %v1785, %v1930
        %v1933 = vunpack.c.l.s4 1983009808
        %v1934 = vunpack.c.0.s8 %v1933
        %v1935 = vperm.slane %v1929, %v1934
        %v1937 = vunpack.c.l.s4 1983009808
        %v1938 = vunpack.c.0.s8 %v1937
        %v1939 = vperm.slane %v1931, %v1938
        %v1940 = vrot.slane %v1791, 4
        %v1941 = vsel %vm1388, %v1940, %v1779
        %v1942 = vrot.slane %v1779, 4
        %v1943 = vsel %vm1388, %v1791, %v1942
        %v1945 = vunpack.c.l.s4 1983009808
        %v1946 = vunpack.c.0.s8 %v1945
        %v1947 = vperm.slane %v1941, %v1946
        %v1949 = vunpack.c.l.s4 1983009808
        %v1950 = vunpack.c.0.s8 %v1949
        %v1951 = vperm.slane %v1943, %v1950
        %v1952 = vrot.slane %v1805, 4
        %v1953 = vsel %vm1388, %v1952, %v1732
        %v1954 = vrot.slane %v1732, 4
        %v1955 = vsel %vm1388, %v1805, %v1954
        %v1957 = vunpack.c.l.s4 1983009808
        %v1958 = vunpack.c.0.s8 %v1957
        %v1959 = vperm.slane %v1953, %v1958
        %v1961 = vunpack.c.l.s4 1983009808
        %v1962 = vunpack.c.0.s8 %v1961
        %v1963 = vperm.slane %v1955, %v1962
        %v1964 = vrot.slane %v1811, 4
        %v1965 = vsel %vm1388, %v1964, %v1799
        %v1966 = vrot.slane %v1799, 4
        %v1967 = vsel %vm1388, %v1811, %v1966
        %v1969 = vunpack.c.l.s4 1983009808
        %v1970 = vunpack.c.0.s8 %v1969
        %v1971 = vperm.slane %v1965, %v1970
        %v1973 = vunpack.c.l.s4 1983009808
        %v1974 = vunpack.c.0.s8 %v1973
        %v1975 = vperm.slane %v1967, %v1974
        %v1976 = vrot.slane %v1947, 4
        %v1977 = vsel %vm1388, %v1976, %v1935
        %v1978 = vrot.slane %v1935, 4
        %v1979 = vsel %vm1388, %v1947, %v1978
        %v1981 = vunpack.c.l.s4 1934713408
        %v1982 = vunpack.c.0.s8 %v1981
        %v1983 = vperm.slane %v1977, %v1982
        %v1985 = vunpack.c.l.s4 1934713408
        %v1986 = vunpack.c.0.s8 %v1985
        %v1987 = vperm.slane %v1979, %v1986
        %v1988 = vrot.slane %v1951, 4
        %v1989 = vsel %vm1388, %v1988, %v1939
        %v1990 = vrot.slane %v1939, 4
        %v1991 = vsel %vm1388, %v1951, %v1990
        %v1993 = vunpack.c.l.s4 1934713408
        %v1994 = vunpack.c.0.s8 %v1993
        %v1995 = vperm.slane %v1989, %v1994
        %v1997 = vunpack.c.l.s4 1934713408
        %v1998 = vunpack.c.0.s8 %v1997
        %v1999 = vperm.slane %v1991, %v1998
        %v2000 = vrot.slane %v1971, 4
        %v2001 = vsel %vm1388, %v2000, %v1959
        %v2002 = vrot.slane %v1959, 4
        %v2003 = vsel %vm1388, %v1971, %v2002
        %v2005 = vunpack.c.l.s4 1934713408
        %v2006 = vunpack.c.0.s8 %v2005
        %v2007 = vperm.slane %v2001, %v2006
        %v2009 = vunpack.c.l.s4 1934713408
        %v2010 = vunpack.c.0.s8 %v2009
        %v2011 = vperm.slane %v2003, %v2010
        %v2012 = vrot.slane %v1975, 4
        %v2013 = vsel %vm1388, %v2012, %v1963
        %v2014 = vrot.slane %v1963, 4
        %v2015 = vsel %vm1388, %v1975, %v2014
        %v2017 = vunpack.c.l.s4 1934713408
        %v2018 = vunpack.c.0.s8 %v2017
        %v2019 = vperm.slane %v2013, %v2018
        %v2021 = vunpack.c.l.s4 1934713408
        %v2022 = vunpack.c.0.s8 %v2021
        %v2023 = vperm.slane %v2015, %v2022
        %v2024 = vrot.slane %v2007, 4
        %v2025 = vsel %vm1388, %v2024, %v1983
        %v2026 = vrot.slane %v1983, 4
        %v2027 = vsel %vm1388, %v2007, %v2026
        %v2028 = vrot.slane %v2011, 4
        %v2029 = vsel %vm1388, %v2028, %v1987
        %v2030 = vrot.slane %v1987, 4
        %v2031 = vsel %vm1388, %v2011, %v2030
        %v2032 = vrot.slane %v2019, 4
        %v2033 = vsel %vm1388, %v2032, %v1995
        %v2034 = vrot.slane %v1995, 4
        %v2035 = vsel %vm1388, %v2019, %v2034
        %v2036 = vrot.slane %v2023, 4
        %v2037 = vsel %vm1388, %v2036, %v1999
        %v2038 = vrot.slane %v1999, 4
        %v2039 = vsel %vm1388, %v2023, %v2038
        %v2040 = vrot.slane %v1747, 4
        %v2041 = vsel %vm1388, %v2040, %v1692
        %v2042 = vrot.slane %v1692, 4
        %v2043 = vsel %vm1388, %v1747, %v2042
        %v2045 = vunpack.c.l.s4 1983009808
        %v2046 = vunpack.c.0.s8 %v2045
        %v2047 = vperm.slane %v2041, %v2046
        %v2049 = vunpack.c.l.s4 1983009808
        %v2050 = vunpack.c.0.s8 %v2049
        %v2051 = vperm.slane %v2043, %v2050
        %v2052 = vrot.slane %v1753, 4
        %v2053 = vsel %vm1388, %v2052, %v1741
        %v2054 = vrot.slane %v1741, 4
        %v2055 = vsel %vm1388, %v1753, %v2054
        %v2057 = vunpack.c.l.s4 1983009808
        %v2058 = vunpack.c.0.s8 %v2057
        %v2059 = vperm.slane %v2053, %v2058
        %v2061 = vunpack.c.l.s4 1983009808
        %v2062 = vunpack.c.0.s8 %v2061
        %v2063 = vperm.slane %v2055, %v2062
        %v2064 = vrot.slane %v1767, 4
        %v2065 = vsel %vm1388, %v2064, %v1706
        %v2066 = vrot.slane %v1706, 4
        %v2067 = vsel %vm1388, %v1767, %v2066
        %v2069 = vunpack.c.l.s4 1983009808
        %v2070 = vunpack.c.0.s8 %v2069
        %v2071 = vperm.slane %v2065, %v2070
        %v2073 = vunpack.c.l.s4 1983009808
        %v2074 = vunpack.c.0.s8 %v2073
        %v2075 = vperm.slane %v2067, %v2074
        %v2076 = vrot.slane %v1773, 4
        %v2077 = vsel %vm1388, %v2076, %v1761
        %v2078 = vrot.slane %v1761, 4
        %v2079 = vsel %vm1388, %v1773, %v2078
        %v2081 = vunpack.c.l.s4 1983009808
        %v2082 = vunpack.c.0.s8 %v2081
        %v2083 = vperm.slane %v2077, %v2082
        %v2085 = vunpack.c.l.s4 1983009808
        %v2086 = vunpack.c.0.s8 %v2085
        %v2087 = vperm.slane %v2079, %v2086
        %v2088 = vrot.slane %v2059, 4
        %v2089 = vsel %vm1388, %v2088, %v2047
        %v2090 = vrot.slane %v2047, 4
        %v2091 = vsel %vm1388, %v2059, %v2090
        %v2093 = vunpack.c.l.s4 1934713408
        %v2094 = vunpack.c.0.s8 %v2093
        %v2095 = vperm.slane %v2089, %v2094
        %v2097 = vunpack.c.l.s4 1934713408
        %v2098 = vunpack.c.0.s8 %v2097
        %v2099 = vperm.slane %v2091, %v2098
        %v2100 = vrot.slane %v2063, 4
        %v2101 = vsel %vm1388, %v2100, %v2051
        %v2102 = vrot.slane %v2051, 4
        %v2103 = vsel %vm1388, %v2063, %v2102
        %v2105 = vunpack.c.l.s4 1934713408
        %v2106 = vunpack.c.0.s8 %v2105
        %v2107 = vperm.slane %v2101, %v2106
        %v2109 = vunpack.c.l.s4 1934713408
        %v2110 = vunpack.c.0.s8 %v2109
        %v2111 = vperm.slane %v2103, %v2110
        %v2112 = vrot.slane %v2083, 4
        %v2113 = vsel %vm1388, %v2112, %v2071
        %v2114 = vrot.slane %v2071, 4
        %v2115 = vsel %vm1388, %v2083, %v2114
        %v2117 = vunpack.c.l.s4 1934713408
        %v2118 = vunpack.c.0.s8 %v2117
        %v2119 = vperm.slane %v2113, %v2118
        %v2121 = vunpack.c.l.s4 1934713408
        %v2122 = vunpack.c.0.s8 %v2121
        %v2123 = vperm.slane %v2115, %v2122
        %v2124 = vrot.slane %v2087, 4
        %v2125 = vsel %vm1388, %v2124, %v2075
        %v2126 = vrot.slane %v2075, 4
        %v2127 = vsel %vm1388, %v2087, %v2126
        %v2129 = vunpack.c.l.s4 1934713408
        %v2130 = vunpack.c.0.s8 %v2129
        %v2131 = vperm.slane %v2125, %v2130
        %v2133 = vunpack.c.l.s4 1934713408
        %v2134 = vunpack.c.0.s8 %v2133
        %v2135 = vperm.slane %v2127, %v2134
        %v2136 = vrot.slane %v2119, 4
        %v2137 = vsel %vm1388, %v2136, %v2095
        %v2138 = vrot.slane %v2095, 4
        %v2139 = vsel %vm1388, %v2119, %v2138
        %v2140 = vrot.slane %v2123, 4
        %v2141 = vsel %vm1388, %v2140, %v2099
        %v2142 = vrot.slane %v2099, 4
        %v2143 = vsel %vm1388, %v2123, %v2142
        %v2144 = vrot.slane %v2131, 4
        %v2145 = vsel %vm1388, %v2144, %v2107
        %v2146 = vrot.slane %v2107, 4
        %v2147 = vsel %vm1388, %v2131, %v2146
        %v2148 = vrot.slane %v2135, 4
        %v2149 = vsel %vm1388, %v2148, %v2111
        %v2150 = vrot.slane %v2111, 4
        %v2151 = vsel %vm1388, %v2135, %v2150
        %v2152 = vrot.slane %v1787, 4
        %v2153 = vsel %vm1388, %v2152, %v1720
        %v2154 = vrot.slane %v1720, 4
        %v2155 = vsel %vm1388, %v1787, %v2154
        %v2157 = vunpack.c.l.s4 1983009808
        %v2158 = vunpack.c.0.s8 %v2157
        %v2159 = vperm.slane %v2153, %v2158
        %v2161 = vunpack.c.l.s4 1983009808
        %v2162 = vunpack.c.0.s8 %v2161
        %v2163 = vperm.slane %v2155, %v2162
        %v2164 = vrot.slane %v1793, 4
        %v2165 = vsel %vm1388, %v2164, %v1781
        %v2166 = vrot.slane %v1781, 4
        %v2167 = vsel %vm1388, %v1793, %v2166
        %v2169 = vunpack.c.l.s4 1983009808
        %v2170 = vunpack.c.0.s8 %v2169
        %v2171 = vperm.slane %v2165, %v2170
        %v2173 = vunpack.c.l.s4 1983009808
        %v2174 = vunpack.c.0.s8 %v2173
        %v2175 = vperm.slane %v2167, %v2174
        %v2176 = vrot.slane %v1807, 4
        %v2177 = vsel %vm1388, %v2176, %v1734
        %v2178 = vrot.slane %v1734, 4
        %v2179 = vsel %vm1388, %v1807, %v2178
        %v2181 = vunpack.c.l.s4 1983009808
        %v2182 = vunpack.c.0.s8 %v2181
        %v2183 = vperm.slane %v2177, %v2182
        %v2185 = vunpack.c.l.s4 1983009808
        %v2186 = vunpack.c.0.s8 %v2185
        %v2187 = vperm.slane %v2179, %v2186
        %v2188 = vrot.slane %v1813, 4
        %v2189 = vsel %vm1388, %v2188, %v1801
        %v2190 = vrot.slane %v1801, 4
        %v2191 = vsel %vm1388, %v1813, %v2190
        %v2193 = vunpack.c.l.s4 1983009808
        %v2194 = vunpack.c.0.s8 %v2193
        %v2195 = vperm.slane %v2189, %v2194
        %v2197 = vunpack.c.l.s4 1983009808
        %v2198 = vunpack.c.0.s8 %v2197
        %v2199 = vperm.slane %v2191, %v2198
        %v2200 = vrot.slane %v2171, 4
        %v2201 = vsel %vm1388, %v2200, %v2159
        %v2202 = vrot.slane %v2159, 4
        %v2203 = vsel %vm1388, %v2171, %v2202
        %v2205 = vunpack.c.l.s4 1934713408
        %v2206 = vunpack.c.0.s8 %v2205
        %v2207 = vperm.slane %v2201, %v2206
        %v2209 = vunpack.c.l.s4 1934713408
        %v2210 = vunpack.c.0.s8 %v2209
        %v2211 = vperm.slane %v2203, %v2210
        %v2212 = vrot.slane %v2175, 4
        %v2213 = vsel %vm1388, %v2212, %v2163
        %v2214 = vrot.slane %v2163, 4
        %v2215 = vsel %vm1388, %v2175, %v2214
        %v2217 = vunpack.c.l.s4 1934713408
        %v2218 = vunpack.c.0.s8 %v2217
        %v2219 = vperm.slane %v2213, %v2218
        %v2221 = vunpack.c.l.s4 1934713408
        %v2222 = vunpack.c.0.s8 %v2221
        %v2223 = vperm.slane %v2215, %v2222
        %v2224 = vrot.slane %v2195, 4
        %v2225 = vsel %vm1388, %v2224, %v2183
        %v2226 = vrot.slane %v2183, 4
        %v2227 = vsel %vm1388, %v2195, %v2226
        %v2229 = vunpack.c.l.s4 1934713408
        %v2230 = vunpack.c.0.s8 %v2229
        %v2231 = vperm.slane %v2225, %v2230
        %v2233 = vunpack.c.l.s4 1934713408
        %v2234 = vunpack.c.0.s8 %v2233
        %v2235 = vperm.slane %v2227, %v2234
        %v2236 = vrot.slane %v2199, 4
        %v2237 = vsel %vm1388, %v2236, %v2187
        %v2238 = vrot.slane %v2187, 4
        %v2239 = vsel %vm1388, %v2199, %v2238
        %v2241 = vunpack.c.l.s4 1934713408
        %v2242 = vunpack.c.0.s8 %v2241
        %v2243 = vperm.slane %v2237, %v2242
        %v2245 = vunpack.c.l.s4 1934713408
        %v2246 = vunpack.c.0.s8 %v2245
        %v2247 = vperm.slane %v2239, %v2246
        %v2248 = vrot.slane %v2231, 4
        %v2249 = vsel %vm1388, %v2248, %v2207
        %v2250 = vrot.slane %v2207, 4
        %v2251 = vsel %vm1388, %v2231, %v2250
        %v2252 = vrot.slane %v2235, 4
        %v2253 = vsel %vm1388, %v2252, %v2211
        %v2254 = vrot.slane %v2211, 4
        %v2255 = vsel %vm1388, %v2235, %v2254
        %v2256 = vrot.slane %v2243, 4
        %v2257 = vsel %vm1388, %v2256, %v2219
        %v2258 = vrot.slane %v2219, 4
        %v2259 = vsel %vm1388, %v2243, %v2258
        %v2260 = vrot.slane %v2247, 4
        %v2261 = vsel %vm1388, %v2260, %v2223
        %v2262 = vrot.slane %v2223, 4
        %v2263 = vsel %vm1388, %v2247, %v2262
        %v2264 = vpack.c.bf16 %v1913, %v1913
        %v2265 = vpack.c.bf16 %v2025, %v2025
        %v2266 = vpack.c.bf16 %v1915, %v1915
        %v2267 = vpack.c.bf16 %v2027, %v2027
        %v2268 = vpack.c.bf16 %v1917, %v1917
        %v2269 = vpack.c.bf16 %v2029, %v2029
        %v2270 = vpack.c.bf16 %v1919, %v1919
        %v2271 = vpack.c.bf16 %v2031, %v2031
        %v2272 = vpack.c.bf16 %v1921, %v1921
        %v2273 = vpack.c.bf16 %v2033, %v2033
        %v2274 = vpack.c.bf16 %v1923, %v1923
        %v2275 = vpack.c.bf16 %v2035, %v2035
        %v2276 = vpack.c.bf16 %v1925, %v1925
        %v2277 = vpack.c.bf16 %v2037, %v2037
        %v2278 = vpack.c.bf16 %v1927, %v1927
        %v2279 = vpack.c.bf16 %v2039, %v2039
        %v2280 = vpack.c.bf16 %v2137, %v2137
        %v2281 = vpack.c.bf16 %v2249, %v2249
        %v2282 = vpack.c.bf16 %v2139, %v2139
        %v2283 = vpack.c.bf16 %v2251, %v2251
        %v2284 = vpack.c.bf16 %v2141, %v2141
        %v2285 = vpack.c.bf16 %v2253, %v2253
        %v2286 = vpack.c.bf16 %v2143, %v2143
        %v2287 = vpack.c.bf16 %v2255, %v2255
        %v2288 = vpack.c.bf16 %v2145, %v2145
        %v2289 = vpack.c.bf16 %v2257, %v2257
        %v2290 = vpack.c.bf16 %v2147, %v2147
        %v2291 = vpack.c.bf16 %v2259, %v2259
        %v2292 = vpack.c.bf16 %v2149, %v2149
        %v2293 = vpack.c.bf16 %v2261, %v2261
        %v2294 = vpack.c.bf16 %v2151, %v2151
        %v2295 = vpack.c.bf16 %v2263, %v2263
        %v2296 = vld [vmem:[%s4] sm:$0xf]
        %v2297 = vld [vmem:[%s4 + $0x4] sm:$0xf]
        %v2298 = vld [vmem:[%s4 + $0x8] sm:$0xf]
        %v2299 = vld [vmem:[%s4 + $0xc] sm:$0xf]
        %v2332 = vunpack.c.l.b16 %v2264
        %v2333 = vunpack.c.l.b16 %v2265
        %v2334 = vunpack.c.l.b16 %v2266
        %v2335 = vunpack.c.l.b16 %v2267
        %v2336 = vunpack.c.l.b16 %v2268
        %v2337 = vunpack.c.l.b16 %v2269
        %v2338 = vunpack.c.l.b16 %v2270
        %v2339 = vunpack.c.l.b16 %v2271
        %v2340 = vunpack.c.l.b16 %v2272
        %v2341 = vunpack.c.l.b16 %v2273
        %v2342 = vunpack.c.l.b16 %v2274
        %v2343 = vunpack.c.l.b16 %v2275
        %v2344 = vunpack.c.l.b16 %v2276
        %v2345 = vunpack.c.l.b16 %v2277
        %v2346 = vunpack.c.l.b16 %v2278
        %v2347 = vunpack.c.l.b16 %v2279
        %v2348 = vunpack.c.l.b16 %v2280
        %v2349 = vunpack.c.l.b16 %v2281
        %v2350 = vunpack.c.l.b16 %v2282
        %v2351 = vunpack.c.l.b16 %v2283
        %v2352 = vunpack.c.l.b16 %v2284
        %v2353 = vunpack.c.l.b16 %v2285
        %v2354 = vunpack.c.l.b16 %v2286
        %v2355 = vunpack.c.l.b16 %v2287
        %v2356 = vunpack.c.l.b16 %v2288
        %v2357 = vunpack.c.l.b16 %v2289
        %v2358 = vunpack.c.l.b16 %v2290
        %v2359 = vunpack.c.l.b16 %v2291
        %v2360 = vunpack.c.l.b16 %v2292
        %v2361 = vunpack.c.l.b16 %v2293
        %v2362 = vunpack.c.l.b16 %v2294
        %v2363 = vunpack.c.l.b16 %v2295
        %v2364 = vpack.c.b16 %v2333, %v2332
        %v2365 = vpack.c.b16 %v2335, %v2334
        %v2366 = vpack.c.b16 %v2337, %v2336
        %v2367 = vpack.c.b16 %v2339, %v2338
        %v2368 = vpack.c.b16 %v2341, %v2340
        %v2369 = vpack.c.b16 %v2343, %v2342
        %v2370 = vpack.c.b16 %v2345, %v2344
        %v2371 = vpack.c.b16 %v2347, %v2346
        %v2372 = vpack.c.b16 %v2349, %v2348
        %v2373 = vpack.c.b16 %v2351, %v2350
        %v2374 = vpack.c.b16 %v2353, %v2352
        %v2375 = vpack.c.b16 %v2355, %v2354
        %v2376 = vpack.c.b16 %v2357, %v2356
        %v2377 = vpack.c.b16 %v2359, %v2358
        %v2378 = vpack.c.b16 %v2361, %v2360
        %v2379 = vpack.c.b16 %v2363, %v2362
        %v2384 = vunpack.c.l.b16 %v2296
        %v2385 = vunpack.c.l.b16 %v2297
        %v2386 = vunpack.c.l.b16 %v2298
        %v2387 = vunpack.c.l.b16 %v2299
        %v2388 = vpack.c.b16 %v2385, %v2384
        %v2389 = vpack.c.b16 %v2387, %v2386
        %v2393 = vsel %vm1320, %v2364, 0
        %v2396 = vsel %vm1320, %v2365, 0
        %v2399 = vsel %vm1320, %v2366, 0
        %v2402 = vsel %vm1320, %v2367, 0
        %v2405 = vsel %vm1320, %v2368, 0
        %v2408 = vsel %vm1320, %v2369, 0
        %v2411 = vsel %vm1320, %v2370, 0
        %v2414 = vsel %vm1320, %v2371, 0
        %v2417 = vsel %vm1320, %v2372, 0
        %v2420 = vsel %vm1320, %v2373, 0
        %v2423 = vsel %vm1320, %v2374, 0
        %v2426 = vsel %vm1320, %v2375, 0
        %v2429 = vsel %vm1320, %v2376, 0
        %v2432 = vsel %vm1320, %v2377, 0
        %v2435 = vsel %vm1320, %v2378, 0
        %v2438 = vsel %vm1320, %v2379, 0
        %2440 = vmatpush.bf16.msra.mxu0 0
        %2441 = vmatpush.bf16.msra.mxu0 0
        %2442 = vmatpush.bf16.msra.mxu0 0
        %2443 = vmatpush.bf16.msra.mxu0 0
        %2444 = vmatpush.bf16.msra.mxu0 0
        %2445 = vmatpush.bf16.msra.mxu0 0
        %2446 = vmatpush.bf16.msra.mxu0 %v2389
        %2447 = vmatpush.bf16.msra.mxu0 %v2388
        %2448 = vmatmul.bf16.gmra.mxu0 %v2393
        %v2449 = vpop.f32.mrf.mxu0
        %v2450 = vadd.f32 0.0, %v2449
        %v2451 = vpop.f32.mrf.mxu0
        %v2452 = vadd.f32 0.0, %v2451
        %2453 = vmatmul.bf16.gmra.mxu0 %v2396
        %v2454 = vpop.f32.mrf.mxu0
        %v2455 = vadd.f32 0.0, %v2454
        %v2456 = vpop.f32.mrf.mxu0
        %v2457 = vadd.f32 0.0, %v2456
        %2458 = vmatmul.bf16.gmra.mxu0 %v2399
        %v2459 = vpop.f32.mrf.mxu0
        %v2460 = vadd.f32 0.0, %v2459
        %v2461 = vpop.f32.mrf.mxu0
        %v2462 = vadd.f32 0.0, %v2461
        %2463 = vmatmul.bf16.gmra.mxu0 %v2402
        %v2464 = vpop.f32.mrf.mxu0
        %v2465 = vadd.f32 0.0, %v2464
        %v2466 = vpop.f32.mrf.mxu0
        %v2467 = vadd.f32 0.0, %v2466
        %2468 = vmatmul.bf16.gmra.mxu0 %v2405
        %v2469 = vpop.f32.mrf.mxu0
        %v2470 = vadd.f32 0.0, %v2469
        %v2471 = vpop.f32.mrf.mxu0
        %v2472 = vadd.f32 0.0, %v2471
        %2473 = vmatmul.bf16.gmra.mxu0 %v2408
        %v2474 = vpop.f32.mrf.mxu0
        %v2475 = vadd.f32 0.0, %v2474
        %v2476 = vpop.f32.mrf.mxu0
        %v2477 = vadd.f32 0.0, %v2476
        %2478 = vmatmul.bf16.gmra.mxu0 %v2411
        %v2479 = vpop.f32.mrf.mxu0
        %v2480 = vadd.f32 0.0, %v2479
        %v2481 = vpop.f32.mrf.mxu0
        %v2482 = vadd.f32 0.0, %v2481
        %2483 = vmatmul.bf16.gmra.mxu0 %v2414
        %v2484 = vpop.f32.mrf.mxu0
        %v2485 = vadd.f32 0.0, %v2484
        %v2486 = vpop.f32.mrf.mxu0
        %v2487 = vadd.f32 0.0, %v2486
        %2488 = vmatmul.bf16.gmra.mxu0 %v2417
        %v2489 = vpop.f32.mrf.mxu0
        %v2490 = vadd.f32 0.0, %v2489
        %v2491 = vpop.f32.mrf.mxu0
        %v2492 = vadd.f32 0.0, %v2491
        %2493 = vmatmul.bf16.gmra.mxu0 %v2420
        %v2494 = vpop.f32.mrf.mxu0
        %v2495 = vadd.f32 0.0, %v2494
        %v2496 = vpop.f32.mrf.mxu0
        %v2497 = vadd.f32 0.0, %v2496
        %2498 = vmatmul.bf16.gmra.mxu0 %v2423
        %v2499 = vpop.f32.mrf.mxu0
        %v2500 = vadd.f32 0.0, %v2499
        %v2501 = vpop.f32.mrf.mxu0
        %v2502 = vadd.f32 0.0, %v2501
        %2503 = vmatmul.bf16.gmra.mxu0 %v2426
        %v2504 = vpop.f32.mrf.mxu0
        %v2505 = vadd.f32 0.0, %v2504
        %v2506 = vpop.f32.mrf.mxu0
        %v2507 = vadd.f32 0.0, %v2506
        %2508 = vmatmul.bf16.gmra.mxu0 %v2429
        %v2509 = vpop.f32.mrf.mxu0
        %v2510 = vadd.f32 0.0, %v2509
        %v2511 = vpop.f32.mrf.mxu0
        %v2512 = vadd.f32 0.0, %v2511
        %2513 = vmatmul.bf16.gmra.mxu0 %v2432
        %v2514 = vpop.f32.mrf.mxu0
        %v2515 = vadd.f32 0.0, %v2514
        %v2516 = vpop.f32.mrf.mxu0
        %v2517 = vadd.f32 0.0, %v2516
        %2518 = vmatmul.bf16.gmra.mxu0 %v2435
        %v2519 = vpop.f32.mrf.mxu0
        %v2520 = vadd.f32 0.0, %v2519
        %v2521 = vpop.f32.mrf.mxu0
        %v2522 = vadd.f32 0.0, %v2521
        %2523 = vmatmul.bf16.gmra.mxu0 %v2438
        %v2524 = vpop.f32.mrf.mxu0
        %v2525 = vadd.f32 0.0, %v2524
        %v2526 = vpop.f32.mrf.mxu0
        %v2527 = vadd.f32 0.0, %v2526
        %2528 = vdwg.mxu0
        %v2529 = vpack.c.bf16 %v2450, %v2450
        %v2530 = vpack.c.bf16 %v2452, %v2452
        %v2531 = vpack.c.bf16 %v2455, %v2455
        %v2532 = vpack.c.bf16 %v2457, %v2457
        %v2533 = vpack.c.bf16 %v2460, %v2460
        %v2534 = vpack.c.bf16 %v2462, %v2462
        %v2535 = vpack.c.bf16 %v2465, %v2465
        %v2536 = vpack.c.bf16 %v2467, %v2467
        %v2537 = vpack.c.bf16 %v2470, %v2470
        %v2538 = vpack.c.bf16 %v2472, %v2472
        %v2539 = vpack.c.bf16 %v2475, %v2475
        %v2540 = vpack.c.bf16 %v2477, %v2477
        %v2541 = vpack.c.bf16 %v2480, %v2480
        %v2542 = vpack.c.bf16 %v2482, %v2482
        %v2543 = vpack.c.bf16 %v2485, %v2485
        %v2544 = vpack.c.bf16 %v2487, %v2487
        %v2545 = vpack.c.bf16 %v2490, %v2490
        %v2546 = vpack.c.bf16 %v2492, %v2492
        %v2547 = vpack.c.bf16 %v2495, %v2495
        %v2548 = vpack.c.bf16 %v2497, %v2497
        %v2549 = vpack.c.bf16 %v2500, %v2500
        %v2550 = vpack.c.bf16 %v2502, %v2502
        %v2551 = vpack.c.bf16 %v2505, %v2505
        %v2552 = vpack.c.bf16 %v2507, %v2507
        %v2553 = vpack.c.bf16 %v2510, %v2510
        %v2554 = vpack.c.bf16 %v2512, %v2512
        %v2555 = vpack.c.bf16 %v2515, %v2515
        %v2556 = vpack.c.bf16 %v2517, %v2517
        %v2557 = vpack.c.bf16 %v2520, %v2520
        %v2558 = vpack.c.bf16 %v2522, %v2522
        %v2559 = vpack.c.bf16 %v2525, %v2525
        %v2560 = vpack.c.bf16 %v2527, %v2527
        %2561 = vst [vmem:[#allocation2] sm:$0xf] %v2529
        %2562 = vst [vmem:[#allocation2 + $0x40] sm:$0xf] %v2530
        %2563 = vst [vmem:[#allocation2 + $0x4] sm:$0xf] %v2531
        %2564 = vst [vmem:[#allocation2 + $0x44] sm:$0xf] %v2532
        %2565 = vst [vmem:[#allocation2 + $0x8] sm:$0xf] %v2533
        %2566 = vst [vmem:[#allocation2 + $0x48] sm:$0xf] %v2534
        %2567 = vst [vmem:[#allocation2 + $0xc] sm:$0xf] %v2535
        %2568 = vst [vmem:[#allocation2 + $0x4c] sm:$0xf] %v2536
        %2569 = vst [vmem:[#allocation2 + $0x10] sm:$0xf] %v2537
        %2570 = vst [vmem:[#allocation2 + $0x50] sm:$0xf] %v2538
        %2571 = vst [vmem:[#allocation2 + $0x14] sm:$0xf] %v2539
        %2572 = vst [vmem:[#allocation2 + $0x54] sm:$0xf] %v2540
        %2573 = vst [vmem:[#allocation2 + $0x18] sm:$0xf] %v2541
        %2574 = vst [vmem:[#allocation2 + $0x58] sm:$0xf] %v2542
        %2575 = vst [vmem:[#allocation2 + $0x1c] sm:$0xf] %v2543
        %2576 = vst [vmem:[#allocation2 + $0x5c] sm:$0xf] %v2544
        %2577 = vst [vmem:[#allocation2 + $0x20] sm:$0xf] %v2545
        %2578 = vst [vmem:[#allocation2 + $0x60] sm:$0xf] %v2546
        %2579 = vst [vmem:[#allocation2 + $0x24] sm:$0xf] %v2547
        %2580 = vst [vmem:[#allocation2 + $0x64] sm:$0xf] %v2548
        %2581 = vst [vmem:[#allocation2 + $0x28] sm:$0xf] %v2549
        %2582 = vst [vmem:[#allocation2 + $0x68] sm:$0xf] %v2550
        %2583 = vst [vmem:[#allocation2 + $0x2c] sm:$0xf] %v2551
        %2584 = vst [vmem:[#allocation2 + $0x6c] sm:$0xf] %v2552
        %2585 = vst [vmem:[#allocation2 + $0x30] sm:$0xf] %v2553
        %2586 = vst [vmem:[#allocation2 + $0x70] sm:$0xf] %v2554
        %2587 = vst [vmem:[#allocation2 + $0x34] sm:$0xf] %v2555
        %2588 = vst [vmem:[#allocation2 + $0x74] sm:$0xf] %v2556
        %2589 = vst [vmem:[#allocation2 + $0x38] sm:$0xf] %v2557
        %2590 = vst [vmem:[#allocation2 + $0x78] sm:$0xf] %v2558
        %2591 = vst [vmem:[#allocation2 + $0x3c] sm:$0xf] %v2559
        %2592 = vst [vmem:[#allocation2 + $0x7c] sm:$0xf] %v2560
        %v2593 = vld [vmem:[%s353] sm:$0xf]
        %v2594 = vld [vmem:[%s353 + $0x4] sm:$0xf]
        %v2595 = vld [vmem:[%s353 + $0x8] sm:$0xf]
        %v2596 = vld [vmem:[%s353 + $0xc] sm:$0xf]
        %v2597 = vld [vmem:[#allocation2] sm:$0xff]
        %v2598 = vld [vmem:[#allocation2 + $0x8] sm:$0xff]
        %v2599 = vld [vmem:[#allocation2 + $0x10] sm:$0xff]
        %v2600 = vld [vmem:[#allocation2 + $0x18] sm:$0xff]
        %v2601 = vld [vmem:[#allocation2 + $0x20] sm:$0xff]
        %v2602 = vld [vmem:[#allocation2 + $0x28] sm:$0xff]
        %v2603 = vld [vmem:[#allocation2 + $0x30] sm:$0xff]
        %v2604 = vld [vmem:[#allocation2 + $0x38] sm:$0xff]
        %v2605 = vld [vmem:[#allocation2 + $0x40] sm:$0xff]
        %v2606 = vld [vmem:[#allocation2 + $0x48] sm:$0xff]
        %v2607 = vld [vmem:[#allocation2 + $0x50] sm:$0xff]
        %v2608 = vld [vmem:[#allocation2 + $0x58] sm:$0xff]
        %v2609 = vld [vmem:[#allocation2 + $0x60] sm:$0xff]
        %v2610 = vld [vmem:[#allocation2 + $0x68] sm:$0xff]
        %v2611 = vld [vmem:[#allocation2 + $0x70] sm:$0xff]
        %v2612 = vld [vmem:[#allocation2 + $0x78] sm:$0xff]
        %v2617 = vunpack.c.l.b16 %v2593
        %v2618 = vunpack.c.l.b16 %v2594
        %v2619 = vunpack.c.l.b16 %v2595
        %v2620 = vunpack.c.l.b16 %v2596
        %v2621 = vpack.c.b16 %v2618, %v2617
        %v2622 = vpack.c.b16 %v2620, %v2619
        %v2639 = vunpack.c.l.b16 %v2597
        %v2640 = vunpack.c.h.b16 %v2597
        %v2641 = vunpack.c.l.b16 %v2598
        %v2642 = vunpack.c.h.b16 %v2598
        %v2643 = vunpack.c.l.b16 %v2599
        %v2644 = vunpack.c.h.b16 %v2599
        %v2645 = vunpack.c.l.b16 %v2600
        %v2646 = vunpack.c.h.b16 %v2600
        %v2647 = vunpack.c.l.b16 %v2601
        %v2648 = vunpack.c.h.b16 %v2601
        %v2649 = vunpack.c.l.b16 %v2602
        %v2650 = vunpack.c.h.b16 %v2602
        %v2651 = vunpack.c.l.b16 %v2603
        %v2652 = vunpack.c.h.b16 %v2603
        %v2653 = vunpack.c.l.b16 %v2604
        %v2654 = vunpack.c.h.b16 %v2604
        %v2655 = vunpack.c.l.b16 %v2605
        %v2656 = vunpack.c.h.b16 %v2605
        %v2657 = vunpack.c.l.b16 %v2606
        %v2658 = vunpack.c.h.b16 %v2606
        %v2659 = vunpack.c.l.b16 %v2607
        %v2660 = vunpack.c.h.b16 %v2607
        %v2661 = vunpack.c.l.b16 %v2608
        %v2662 = vunpack.c.h.b16 %v2608
        %v2663 = vunpack.c.l.b16 %v2609
        %v2664 = vunpack.c.h.b16 %v2609
        %v2665 = vunpack.c.l.b16 %v2610
        %v2666 = vunpack.c.h.b16 %v2610
        %v2667 = vunpack.c.l.b16 %v2611
        %v2668 = vunpack.c.h.b16 %v2611
        %v2669 = vunpack.c.l.b16 %v2612
        %v2670 = vunpack.c.h.b16 %v2612
        %v2671 = vpack.c.b16 %v2655, %v2639
        %v2672 = vpack.c.b16 %v2656, %v2640
        %v2673 = vpack.c.b16 %v2657, %v2641
        %v2674 = vpack.c.b16 %v2658, %v2642
        %v2675 = vpack.c.b16 %v2659, %v2643
        %v2676 = vpack.c.b16 %v2660, %v2644
        %v2677 = vpack.c.b16 %v2661, %v2645
        %v2678 = vpack.c.b16 %v2662, %v2646
        %v2679 = vpack.c.b16 %v2663, %v2647
        %v2680 = vpack.c.b16 %v2664, %v2648
        %v2681 = vpack.c.b16 %v2665, %v2649
        %v2682 = vpack.c.b16 %v2666, %v2650
        %v2683 = vpack.c.b16 %v2667, %v2651
        %v2684 = vpack.c.b16 %v2668, %v2652
        %v2685 = vpack.c.b16 %v2669, %v2653
        %v2686 = vpack.c.b16 %v2670, %v2654
        %vm2703 = vcmask 130048
        %v2705 = vsel %vm2703, %v2621, 0
        %v2708 = vsel %vm2703, %v2622, 0
        %2710 = vmatpush.bf16.msra.mxu0 0
        %2711 = vmatpush.bf16.msra.mxu0 0
        %2712 = vmatpush.bf16.msra.mxu0 0
        %2713 = vmatpush.bf16.msra.mxu0 0
        %2714 = vmatpush.bf16.msra.mxu0 0
        %2715 = vmatpush.bf16.msra.mxu0 0
        %2716 = vmatpush.bf16.msra.mxu0 0
        %2717 = vmatpush.bf16.msra.mxu0 %v2671
        %2718 = vmatmul.bf16.gmra.mxu0 %v2705
        %v2719 = vpop.f32.mrf.mxu0
        %v2720 = vadd.f32 0.0, %v2719
        %v2721 = vpop.f32.mrf.mxu0
        %v2722 = vadd.f32 0.0, %v2721
        %2723 = vmatmul.bf16.gmra.mxu0 %v2708
        %v2724 = vpop.f32.mrf.mxu0
        %v2725 = vadd.f32 0.0, %v2724
        %v2726 = vpop.f32.mrf.mxu0
        %v2727 = vadd.f32 0.0, %v2726
        %2728 = vdwg.mxu0
        %2729 = vmatpush.bf16.msra.mxu0 0
        %2730 = vmatpush.bf16.msra.mxu0 0
        %2731 = vmatpush.bf16.msra.mxu0 0
        %2732 = vmatpush.bf16.msra.mxu0 0
        %2733 = vmatpush.bf16.msra.mxu0 0
        %2734 = vmatpush.bf16.msra.mxu0 0
        %2735 = vmatpush.bf16.msra.mxu0 0
        %2736 = vmatpush.bf16.msra.mxu0 %v2672
        %2737 = vmatmul.bf16.gmra.mxu0 %v2705
        %v2738 = vpop.f32.mrf.mxu0
        %v2739 = vadd.f32 0.0, %v2738
        %v2740 = vpop.f32.mrf.mxu0
        %v2741 = vadd.f32 0.0, %v2740
        %2742 = vmatmul.bf16.gmra.mxu0 %v2708
        %v2743 = vpop.f32.mrf.mxu0
        %v2744 = vadd.f32 0.0, %v2743
        %v2745 = vpop.f32.mrf.mxu0
        %v2746 = vadd.f32 0.0, %v2745
        %2747 = vdwg.mxu0
        %2748 = vmatpush.bf16.msra.mxu0 0
        %2749 = vmatpush.bf16.msra.mxu0 0
        %2750 = vmatpush.bf16.msra.mxu0 0
        %2751 = vmatpush.bf16.msra.mxu0 0
        %2752 = vmatpush.bf16.msra.mxu0 0
        %2753 = vmatpush.bf16.msra.mxu0 0
        %2754 = vmatpush.bf16.msra.mxu0 0
        %2755 = vmatpush.bf16.msra.mxu0 %v2673
        %2756 = vmatmul.bf16.gmra.mxu0 %v2705
        %v2757 = vpop.f32.mrf.mxu0
        %v2758 = vadd.f32 0.0, %v2757
        %v2759 = vpop.f32.mrf.mxu0
        %v2760 = vadd.f32 0.0, %v2759
        %2761 = vmatmul.bf16.gmra.mxu0 %v2708
        %v2762 = vpop.f32.mrf.mxu0
        %v2763 = vadd.f32 0.0, %v2762
        %v2764 = vpop.f32.mrf.mxu0
        %v2765 = vadd.f32 0.0, %v2764
        %2766 = vdwg.mxu0
        %2767 = vmatpush.bf16.msra.mxu0 0
        %2768 = vmatpush.bf16.msra.mxu0 0
        %2769 = vmatpush.bf16.msra.mxu0 0
        %2770 = vmatpush.bf16.msra.mxu0 0
        %2771 = vmatpush.bf16.msra.mxu0 0
        %2772 = vmatpush.bf16.msra.mxu0 0
        %2773 = vmatpush.bf16.msra.mxu0 0
        %2774 = vmatpush.bf16.msra.mxu0 %v2674
        %2775 = vmatmul.bf16.gmra.mxu0 %v2705
        %v2776 = vpop.f32.mrf.mxu0
        %v2777 = vadd.f32 0.0, %v2776
        %v2778 = vpop.f32.mrf.mxu0
        %v2779 = vadd.f32 0.0, %v2778
        %2780 = vmatmul.bf16.gmra.mxu0 %v2708
        %v2781 = vpop.f32.mrf.mxu0
        %v2782 = vadd.f32 0.0, %v2781
        %v2783 = vpop.f32.mrf.mxu0
        %v2784 = vadd.f32 0.0, %v2783
        %2785 = vdwg.mxu0
        %2786 = vmatpush.bf16.msra.mxu0 0
        %2787 = vmatpush.bf16.msra.mxu0 0
        %2788 = vmatpush.bf16.msra.mxu0 0
        %2789 = vmatpush.bf16.msra.mxu0 0
        %2790 = vmatpush.bf16.msra.mxu0 0
        %2791 = vmatpush.bf16.msra.mxu0 0
        %2792 = vmatpush.bf16.msra.mxu0 0
        %2793 = vmatpush.bf16.msra.mxu0 %v2675
        %2794 = vmatmul.bf16.gmra.mxu0 %v2705
        %v2795 = vpop.f32.mrf.mxu0
        %v2796 = vadd.f32 0.0, %v2795
        %v2797 = vpop.f32.mrf.mxu0
        %v2798 = vadd.f32 0.0, %v2797
        %2799 = vmatmul.bf16.gmra.mxu0 %v2708
        %v2800 = vpop.f32.mrf.mxu0
        %v2801 = vadd.f32 0.0, %v2800
        %v2802 = vpop.f32.mrf.mxu0
        %v2803 = vadd.f32 0.0, %v2802
        %2804 = vdwg.mxu0
        %2805 = vmatpush.bf16.msra.mxu0 0
        %2806 = vmatpush.bf16.msra.mxu0 0
        %2807 = vmatpush.bf16.msra.mxu0 0
        %2808 = vmatpush.bf16.msra.mxu0 0
        %2809 = vmatpush.bf16.msra.mxu0 0
        %2810 = vmatpush.bf16.msra.mxu0 0
        %2811 = vmatpush.bf16.msra.mxu0 0
        %2812 = vmatpush.bf16.msra.mxu0 %v2676
        %2813 = vmatmul.bf16.gmra.mxu0 %v2705
        %v2814 = vpop.f32.mrf.mxu0
        %v2815 = vadd.f32 0.0, %v2814
        %v2816 = vpop.f32.mrf.mxu0
        %v2817 = vadd.f32 0.0, %v2816
        %2818 = vmatmul.bf16.gmra.mxu0 %v2708
        %v2819 = vpop.f32.mrf.mxu0
        %v2820 = vadd.f32 0.0, %v2819
        %v2821 = vpop.f32.mrf.mxu0
        %v2822 = vadd.f32 0.0, %v2821
        %2823 = vdwg.mxu0
        %2824 = vmatpush.bf16.msra.mxu0 0
        %2825 = vmatpush.bf16.msra.mxu0 0
        %2826 = vmatpush.bf16.msra.mxu0 0
        %2827 = vmatpush.bf16.msra.mxu0 0
        %2828 = vmatpush.bf16.msra.mxu0 0
        %2829 = vmatpush.bf16.msra.mxu0 0
        %2830 = vmatpush.bf16.msra.mxu0 0
        %2831 = vmatpush.bf16.msra.mxu0 %v2677
        %2832 = vmatmul.bf16.gmra.mxu0 %v2705
        %v2833 = vpop.f32.mrf.mxu0
        %v2834 = vadd.f32 0.0, %v2833
        %v2835 = vpop.f32.mrf.mxu0
        %v2836 = vadd.f32 0.0, %v2835
        %2837 = vmatmul.bf16.gmra.mxu0 %v2708
        %v2838 = vpop.f32.mrf.mxu0
        %v2839 = vadd.f32 0.0, %v2838
        %v2840 = vpop.f32.mrf.mxu0
        %v2841 = vadd.f32 0.0, %v2840
        %2842 = vdwg.mxu0
        %2843 = vmatpush.bf16.msra.mxu0 0
        %2844 = vmatpush.bf16.msra.mxu0 0
        %2845 = vmatpush.bf16.msra.mxu0 0
        %2846 = vmatpush.bf16.msra.mxu0 0
        %2847 = vmatpush.bf16.msra.mxu0 0
        %2848 = vmatpush.bf16.msra.mxu0 0
        %2849 = vmatpush.bf16.msra.mxu0 0
        %2850 = vmatpush.bf16.msra.mxu0 %v2678
        %2851 = vmatmul.bf16.gmra.mxu0 %v2705
        %v2852 = vpop.f32.mrf.mxu0
        %v2853 = vadd.f32 0.0, %v2852
        %v2854 = vpop.f32.mrf.mxu0
        %v2855 = vadd.f32 0.0, %v2854
        %2856 = vmatmul.bf16.gmra.mxu0 %v2708
        %v2857 = vpop.f32.mrf.mxu0
        %v2858 = vadd.f32 0.0, %v2857
        %v2859 = vpop.f32.mrf.mxu0
        %v2860 = vadd.f32 0.0, %v2859
        %2861 = vdwg.mxu0
        %2862 = vmatpush.bf16.msra.mxu0 0
        %2863 = vmatpush.bf16.msra.mxu0 0
        %2864 = vmatpush.bf16.msra.mxu0 0
        %2865 = vmatpush.bf16.msra.mxu0 0
        %2866 = vmatpush.bf16.msra.mxu0 0
        %2867 = vmatpush.bf16.msra.mxu0 0
        %2868 = vmatpush.bf16.msra.mxu0 0
        %2869 = vmatpush.bf16.msra.mxu0 %v2679
        %2870 = vmatmul.bf16.gmra.mxu0 %v2705
        %v2871 = vpop.f32.mrf.mxu0
        %v2872 = vadd.f32 0.0, %v2871
        %v2873 = vpop.f32.mrf.mxu0
        %v2874 = vadd.f32 0.0, %v2873
        %2875 = vmatmul.bf16.gmra.mxu0 %v2708
        %v2876 = vpop.f32.mrf.mxu0
        %v2877 = vadd.f32 0.0, %v2876
        %v2878 = vpop.f32.mrf.mxu0
        %v2879 = vadd.f32 0.0, %v2878
        %2880 = vdwg.mxu0
        %2881 = vmatpush.bf16.msra.mxu0 0
        %2882 = vmatpush.bf16.msra.mxu0 0
        %2883 = vmatpush.bf16.msra.mxu0 0
        %2884 = vmatpush.bf16.msra.mxu0 0
        %2885 = vmatpush.bf16.msra.mxu0 0
        %2886 = vmatpush.bf16.msra.mxu0 0
        %2887 = vmatpush.bf16.msra.mxu0 0
        %2888 = vmatpush.bf16.msra.mxu0 %v2680
        %2889 = vmatmul.bf16.gmra.mxu0 %v2705
        %v2890 = vpop.f32.mrf.mxu0
        %v2891 = vadd.f32 0.0, %v2890
        %v2892 = vpop.f32.mrf.mxu0
        %v2893 = vadd.f32 0.0, %v2892
        %2894 = vmatmul.bf16.gmra.mxu0 %v2708
        %v2895 = vpop.f32.mrf.mxu0
        %v2896 = vadd.f32 0.0, %v2895
        %v2897 = vpop.f32.mrf.mxu0
        %v2898 = vadd.f32 0.0, %v2897
        %2899 = vdwg.mxu0
        %2900 = vmatpush.bf16.msra.mxu0 0
        %2901 = vmatpush.bf16.msra.mxu0 0
        %2902 = vmatpush.bf16.msra.mxu0 0
        %2903 = vmatpush.bf16.msra.mxu0 0
        %2904 = vmatpush.bf16.msra.mxu0 0
        %2905 = vmatpush.bf16.msra.mxu0 0
        %2906 = vmatpush.bf16.msra.mxu0 0
        %2907 = vmatpush.bf16.msra.mxu0 %v2681
        %2908 = vmatmul.bf16.gmra.mxu0 %v2705
        %v2909 = vpop.f32.mrf.mxu0
        %v2910 = vadd.f32 0.0, %v2909
        %v2911 = vpop.f32.mrf.mxu0
        %v2912 = vadd.f32 0.0, %v2911
        %2913 = vmatmul.bf16.gmra.mxu0 %v2708
        %v2914 = vpop.f32.mrf.mxu0
        %v2915 = vadd.f32 0.0, %v2914
        %v2916 = vpop.f32.mrf.mxu0
        %v2917 = vadd.f32 0.0, %v2916
        %2918 = vdwg.mxu0
        %2919 = vmatpush.bf16.msra.mxu0 0
        %2920 = vmatpush.bf16.msra.mxu0 0
        %2921 = vmatpush.bf16.msra.mxu0 0
        %2922 = vmatpush.bf16.msra.mxu0 0
        %2923 = vmatpush.bf16.msra.mxu0 0
        %2924 = vmatpush.bf16.msra.mxu0 0
        %2925 = vmatpush.bf16.msra.mxu0 0
        %2926 = vmatpush.bf16.msra.mxu0 %v2682
        %2927 = vmatmul.bf16.gmra.mxu0 %v2705
        %v2928 = vpop.f32.mrf.mxu0
        %v2929 = vadd.f32 0.0, %v2928
        %v2930 = vpop.f32.mrf.mxu0
        %v2931 = vadd.f32 0.0, %v2930
        %2932 = vmatmul.bf16.gmra.mxu0 %v2708
        %v2933 = vpop.f32.mrf.mxu0
        %v2934 = vadd.f32 0.0, %v2933
        %v2935 = vpop.f32.mrf.mxu0
        %v2936 = vadd.f32 0.0, %v2935
        %2937 = vdwg.mxu0
        %2938 = vmatpush.bf16.msra.mxu0 0
        %2939 = vmatpush.bf16.msra.mxu0 0
        %2940 = vmatpush.bf16.msra.mxu0 0
        %2941 = vmatpush.bf16.msra.mxu0 0
        %2942 = vmatpush.bf16.msra.mxu0 0
        %2943 = vmatpush.bf16.msra.mxu0 0
        %2944 = vmatpush.bf16.msra.mxu0 0
        %2945 = vmatpush.bf16.msra.mxu0 %v2683
        %2946 = vmatmul.bf16.gmra.mxu0 %v2705
        %v2947 = vpop.f32.mrf.mxu0
        %v2948 = vadd.f32 0.0, %v2947
        %v2949 = vpop.f32.mrf.mxu0
        %v2950 = vadd.f32 0.0, %v2949
        %2951 = vmatmul.bf16.gmra.mxu0 %v2708
        %v2952 = vpop.f32.mrf.mxu0
        %v2953 = vadd.f32 0.0, %v2952
        %v2954 = vpop.f32.mrf.mxu0
        %v2955 = vadd.f32 0.0, %v2954
        %2956 = vdwg.mxu0
        %2957 = vmatpush.bf16.msra.mxu0 0
        %2958 = vmatpush.bf16.msra.mxu0 0
        %2959 = vmatpush.bf16.msra.mxu0 0
        %2960 = vmatpush.bf16.msra.mxu0 0
        %2961 = vmatpush.bf16.msra.mxu0 0
        %2962 = vmatpush.bf16.msra.mxu0 0
        %2963 = vmatpush.bf16.msra.mxu0 0
        %2964 = vmatpush.bf16.msra.mxu0 %v2684
        %2965 = vmatmul.bf16.gmra.mxu0 %v2705
        %v2966 = vpop.f32.mrf.mxu0
        %v2967 = vadd.f32 0.0, %v2966
        %v2968 = vpop.f32.mrf.mxu0
        %v2969 = vadd.f32 0.0, %v2968
        %2970 = vmatmul.bf16.gmra.mxu0 %v2708
        %v2971 = vpop.f32.mrf.mxu0
        %v2972 = vadd.f32 0.0, %v2971
        %v2973 = vpop.f32.mrf.mxu0
        %v2974 = vadd.f32 0.0, %v2973
        %2975 = vdwg.mxu0
        %2976 = vmatpush.bf16.msra.mxu0 0
        %2977 = vmatpush.bf16.msra.mxu0 0
        %2978 = vmatpush.bf16.msra.mxu0 0
        %2979 = vmatpush.bf16.msra.mxu0 0
        %2980 = vmatpush.bf16.msra.mxu0 0
        %2981 = vmatpush.bf16.msra.mxu0 0
        %2982 = vmatpush.bf16.msra.mxu0 0
        %2983 = vmatpush.bf16.msra.mxu0 %v2685
        %2984 = vmatmul.bf16.gmra.mxu0 %v2705
        %v2985 = vpop.f32.mrf.mxu0
        %v2986 = vadd.f32 0.0, %v2985
        %v2987 = vpop.f32.mrf.mxu0
        %v2988 = vadd.f32 0.0, %v2987
        %2989 = vmatmul.bf16.gmra.mxu0 %v2708
        %v2990 = vpop.f32.mrf.mxu0
        %v2991 = vadd.f32 0.0, %v2990
        %v2992 = vpop.f32.mrf.mxu0
        %v2993 = vadd.f32 0.0, %v2992
        %2994 = vdwg.mxu0
        %2995 = vmatpush.bf16.msra.mxu0 0
        %2996 = vmatpush.bf16.msra.mxu0 0
        %2997 = vmatpush.bf16.msra.mxu0 0
        %2998 = vmatpush.bf16.msra.mxu0 0
        %2999 = vmatpush.bf16.msra.mxu0 0
        %3000 = vmatpush.bf16.msra.mxu0 0
        %3001 = vmatpush.bf16.msra.mxu0 0
        %3002 = vmatpush.bf16.msra.mxu0 %v2686
        %3003 = vmatmul.bf16.gmra.mxu0 %v2705
        %v3004 = vpop.f32.mrf.mxu0
        %v3005 = vadd.f32 0.0, %v3004
        %v3006 = vpop.f32.mrf.mxu0
        %v3007 = vadd.f32 0.0, %v3006
        %3008 = vmatmul.bf16.gmra.mxu0 %v2708
        %v3009 = vpop.f32.mrf.mxu0
        %v3010 = vadd.f32 0.0, %v3009
        %v3011 = vpop.f32.mrf.mxu0
        %v3012 = vadd.f32 0.0, %v3011
        %3013 = vdwg.mxu0
        %v3014 = vpack.c.bf16 %v2739, %v2720
        %v3015 = vpack.c.bf16 %v2777, %v2758
        %v3016 = vpack.c.bf16 %v2815, %v2796
        %v3017 = vpack.c.bf16 %v2853, %v2834
        %v3018 = vpack.c.bf16 %v2891, %v2872
        %v3019 = vpack.c.bf16 %v2929, %v2910
        %v3020 = vpack.c.bf16 %v2967, %v2948
        %v3021 = vpack.c.bf16 %v3005, %v2986
        %v3022 = vpack.c.bf16 %v2741, %v2722
        %v3023 = vpack.c.bf16 %v2779, %v2760
        %v3024 = vpack.c.bf16 %v2817, %v2798
        %v3025 = vpack.c.bf16 %v2855, %v2836
        %v3026 = vpack.c.bf16 %v2893, %v2874
        %v3027 = vpack.c.bf16 %v2931, %v2912
        %v3028 = vpack.c.bf16 %v2969, %v2950
        %v3029 = vpack.c.bf16 %v3007, %v2988
        %v3030 = vpack.c.bf16 %v2744, %v2725
        %v3031 = vpack.c.bf16 %v2782, %v2763
        %v3032 = vpack.c.bf16 %v2820, %v2801
        %v3033 = vpack.c.bf16 %v2858, %v2839
        %v3034 = vpack.c.bf16 %v2896, %v2877
        %v3035 = vpack.c.bf16 %v2934, %v2915
        %v3036 = vpack.c.bf16 %v2972, %v2953
        %v3037 = vpack.c.bf16 %v3010, %v2991
        %v3038 = vpack.c.bf16 %v2746, %v2727
        %v3039 = vpack.c.bf16 %v2784, %v2765
        %v3040 = vpack.c.bf16 %v2822, %v2803
        %v3041 = vpack.c.bf16 %v2860, %v2841
        %v3042 = vpack.c.bf16 %v2898, %v2879
        %v3043 = vpack.c.bf16 %v2936, %v2917
        %v3044 = vpack.c.bf16 %v2974, %v2955
        %v3045 = vpack.c.bf16 %v3012, %v2993
        %3046 = vst [vmem:[%s339] sm:$0xf] %v3014
        %3047 = vst [vmem:[%s339 + $0x4] sm:$0xf] %v3022
        %3048 = vst [vmem:[%s339 + $0x8] sm:$0xf] %v3030
        %3049 = vst [vmem:[%s339 + $0xc] sm:$0xf] %v3038
        %v3054 = vrot.slane %v3014, 4
        %v3055 = vrot.slane %v3022, 4
        %v3056 = vrot.slane %v3030, 4
        %v3057 = vrot.slane %v3038, 4
        %s3062 = scalar_lea.vmem %s339, 16 [#allocation6]
        %3063 = vst [vmem:[%s3062] sm:$0xf] %v3054
        %3064 = vst [vmem:[%s3062 + $0x4] sm:$0xf] %v3055
        %3065 = vst [vmem:[%s3062 + $0x8] sm:$0xf] %v3056
        %3066 = vst [vmem:[%s3062 + $0xc] sm:$0xf] %v3057
        %s3067 = scalar_lea.vmem %s339, 32 [#allocation6]
        %3068 = vst [vmem:[%s3067] sm:$0xf] %v3015
        %3069 = vst [vmem:[%s3067 + $0x4] sm:$0xf] %v3023
        %3070 = vst [vmem:[%s3067 + $0x8] sm:$0xf] %v3031
        %3071 = vst [vmem:[%s3067 + $0xc] sm:$0xf] %v3039
        %v3076 = vrot.slane %v3015, 4
        %v3077 = vrot.slane %v3023, 4
        %v3078 = vrot.slane %v3031, 4
        %v3079 = vrot.slane %v3039, 4
        %s3084 = scalar_lea.vmem %s339, 48 [#allocation6]
        %3085 = vst [vmem:[%s3084] sm:$0xf] %v3076
        %3086 = vst [vmem:[%s3084 + $0x4] sm:$0xf] %v3077
        %3087 = vst [vmem:[%s3084 + $0x8] sm:$0xf] %v3078
        %3088 = vst [vmem:[%s3084 + $0xc] sm:$0xf] %v3079
        %s3089 = scalar_lea.vmem %s339, 64 [#allocation6]
        %3090 = vst [vmem:[%s3089] sm:$0xf] %v3016
        %3091 = vst [vmem:[%s3089 + $0x4] sm:$0xf] %v3024
        %3092 = vst [vmem:[%s3089 + $0x8] sm:$0xf] %v3032
        %3093 = vst [vmem:[%s3089 + $0xc] sm:$0xf] %v3040
        %v3098 = vrot.slane %v3016, 4
        %v3099 = vrot.slane %v3024, 4
        %v3100 = vrot.slane %v3032, 4
        %v3101 = vrot.slane %v3040, 4
        %s3106 = scalar_lea.vmem %s339, 80 [#allocation6]
        %3107 = vst [vmem:[%s3106] sm:$0xf] %v3098
        %3108 = vst [vmem:[%s3106 + $0x4] sm:$0xf] %v3099
        %3109 = vst [vmem:[%s3106 + $0x8] sm:$0xf] %v3100
        %3110 = vst [vmem:[%s3106 + $0xc] sm:$0xf] %v3101
        %s3111 = scalar_lea.vmem %s339, 96 [#allocation6]
        %3112 = vst [vmem:[%s3111] sm:$0xf] %v3017
        %3113 = vst [vmem:[%s3111 + $0x4] sm:$0xf] %v3025
        %3114 = vst [vmem:[%s3111 + $0x8] sm:$0xf] %v3033
        %3115 = vst [vmem:[%s3111 + $0xc] sm:$0xf] %v3041
        %v3120 = vrot.slane %v3017, 4
        %v3121 = vrot.slane %v3025, 4
        %v3122 = vrot.slane %v3033, 4
        %v3123 = vrot.slane %v3041, 4
        %s3128 = scalar_lea.vmem %s339, 112 [#allocation6]
        %3129 = vst [vmem:[%s3128] sm:$0xf] %v3120
        %3130 = vst [vmem:[%s3128 + $0x4] sm:$0xf] %v3121
        %3131 = vst [vmem:[%s3128 + $0x8] sm:$0xf] %v3122
        %3132 = vst [vmem:[%s3128 + $0xc] sm:$0xf] %v3123
        %s3133 = scalar_lea.vmem %s339, 128 [#allocation6]
        %3134 = vst [vmem:[%s3133] sm:$0xf] %v3018
        %3135 = vst [vmem:[%s3133 + $0x4] sm:$0xf] %v3026
        %3136 = vst [vmem:[%s3133 + $0x8] sm:$0xf] %v3034
        %3137 = vst [vmem:[%s3133 + $0xc] sm:$0xf] %v3042
        %v3142 = vrot.slane %v3018, 4
        %v3143 = vrot.slane %v3026, 4
        %v3144 = vrot.slane %v3034, 4
        %v3145 = vrot.slane %v3042, 4
        %s3150 = scalar_lea.vmem %s339, 144 [#allocation6]
        %3151 = vst [vmem:[%s3150] sm:$0xf] %v3142
        %3152 = vst [vmem:[%s3150 + $0x4] sm:$0xf] %v3143
        %3153 = vst [vmem:[%s3150 + $0x8] sm:$0xf] %v3144
        %3154 = vst [vmem:[%s3150 + $0xc] sm:$0xf] %v3145
        %s3155 = scalar_lea.vmem %s339, 160 [#allocation6]
        %3156 = vst [vmem:[%s3155] sm:$0xf] %v3019
        %3157 = vst [vmem:[%s3155 + $0x4] sm:$0xf] %v3027
        %3158 = vst [vmem:[%s3155 + $0x8] sm:$0xf] %v3035
        %3159 = vst [vmem:[%s3155 + $0xc] sm:$0xf] %v3043
        %v3164 = vrot.slane %v3019, 4
        %v3165 = vrot.slane %v3027, 4
        %v3166 = vrot.slane %v3035, 4
        %v3167 = vrot.slane %v3043, 4
        %s3172 = scalar_lea.vmem %s339, 176 [#allocation6]
        %3173 = vst [vmem:[%s3172] sm:$0xf] %v3164
        %3174 = vst [vmem:[%s3172 + $0x4] sm:$0xf] %v3165
        %3175 = vst [vmem:[%s3172 + $0x8] sm:$0xf] %v3166
        %3176 = vst [vmem:[%s3172 + $0xc] sm:$0xf] %v3167
        %s3177 = scalar_lea.vmem %s339, 192 [#allocation6]
        %3178 = vst [vmem:[%s3177] sm:$0xf] %v3020
        %3179 = vst [vmem:[%s3177 + $0x4] sm:$0xf] %v3028
        %3180 = vst [vmem:[%s3177 + $0x8] sm:$0xf] %v3036
        %3181 = vst [vmem:[%s3177 + $0xc] sm:$0xf] %v3044
        %v3186 = vrot.slane %v3020, 4
        %v3187 = vrot.slane %v3028, 4
        %v3188 = vrot.slane %v3036, 4
        %v3189 = vrot.slane %v3044, 4
        %s3194 = scalar_lea.vmem %s339, 208 [#allocation6]
        %3195 = vst [vmem:[%s3194] sm:$0xf] %v3186
        %3196 = vst [vmem:[%s3194 + $0x4] sm:$0xf] %v3187
        %3197 = vst [vmem:[%s3194 + $0x8] sm:$0xf] %v3188
        %3198 = vst [vmem:[%s3194 + $0xc] sm:$0xf] %v3189
        %s3199 = scalar_lea.vmem %s339, 224 [#allocation6]
        %3200 = vst [vmem:[%s3199] sm:$0xf] %v3021
        %3201 = vst [vmem:[%s3199 + $0x4] sm:$0xf] %v3029
        %3202 = vst [vmem:[%s3199 + $0x8] sm:$0xf] %v3037
        %3203 = vst [vmem:[%s3199 + $0xc] sm:$0xf] %v3045
        %v3208 = vrot.slane %v3021, 4
        %v3209 = vrot.slane %v3029, 4
        %v3210 = vrot.slane %v3037, 4
        %v3211 = vrot.slane %v3045, 4
        %s3216 = scalar_lea.vmem %s339, 240 [#allocation6]
        %3217 = vst [vmem:[%s3216] sm:$0xf] %v3208
        %3218 = vst [vmem:[%s3216 + $0x4] sm:$0xf] %v3209
        %3219 = vst [vmem:[%s3216 + $0x8] sm:$0xf] %v3210
        %3220 = vst [vmem:[%s3216 + $0xc] sm:$0xf] %v3211
        %s3221 = sand.u32 %s180, 1
        %s3222 = scalar_lea.sflag [#allocation5], %s3221
        %s3223 = sand.u32 %s180, 1
        %s3224 = smul.addr %s3223, 256
        %s3225 = scalar_lea.vmem [#allocation6], %s3224
        // Predicated region
        $region45: #{tpu_custom_call.1} parent=39 // pred_check
          %p3226 = pneg %p190
        $region46: #{tpu_custom_call.1} parent=39 // pred_check_branch
          %3228 = sbr.rel (%p3226) target = $region48
        $region47: #{tpu_custom_call.1} parent=39 // pred_region
          #allocation10 [shape = 'u32[6]{0}', space=smem, size = 0x18, scoped, tag = 'DMA stride descriptor']
          %s3229 = smul.u32 16, %s29
          %s3230 = smul.u32 4, %s28
          %3232 = vsyncadd %s3222, 0
          %s3233 = smul.addr %s3229, 8
          %s3234 = sadd.s32 %s3230, %s3233
          %s3235 = smul.addr %s27, 128
          %s3236 = sadd.s32 %s3234, %s3235
          %s3237 = smul.addr %s3236, 4
          %s3238 = scalar_lea.hbm %s5, %s3237
          %s3240 = sshll.u32 1, 14
          %s3241 = sxor.u32 4294967295, %s3240
          %s3244 = sshll.u32 7, 18
          %s3245 = sxor.u32 4294967295, %s3244
          %s3246 = sand.u32 0, %s3245
          %s3248 = sor.u32 %s3246, 0
          %s3249 = sshll.u32 %s3225, 4
          %s3250 = int_to_ptr.vmem [resolvable:$true] %s3249
          %s3251 = sshll.u32 %s3238, 4
          %s3252 = int_to_ptr.hbm [resolvable:$true] %s3251
          %3258 = sst [smem:[#allocation10]] 256
          %s3259 = scalar_lea.smem [#allocation10], 1
          %3260 = sst [smem:[%s3259]] 512
          %s3261 = scalar_lea.smem [#allocation10], 2
          %3262 = sst [smem:[%s3261]] 4
          %s3263 = scalar_lea.smem [#allocation10], 3
          %3264 = sst [smem:[%s3263]] 64
          %s3265 = scalar_lea.smem [#allocation10], 4
          %3266 = sst [smem:[%s3265]] 64
          %s3267 = scalar_lea.smem [#allocation10], 5
          %3268 = sst [smem:[%s3267]] 4
          %3270 = dma.general %s3250, 4096, %s3252, %s3222, [#allocation9], [#allocation10], %s3248, 0
        $region48: #{tpu_custom_call.1} parent=39 // pred_fallthru
          _
      $region40: #{tpu_custom_call.1} parent=5 // pred_fallthru
        _
      %p3271 = scmp.le.s32.totalorder 2, %s17
      // Predicated region
      $region49: #{tpu_custom_call.1} parent=5 // pred_check
        %p3272 = pneg %p3271
      $region50: #{tpu_custom_call.1} parent=5 // pred_check_branch
        %3274 = sbr.rel (%p3272) target = $region52
      $region51: #{tpu_custom_call.1} parent=5 // pred_region
        %s3275 = ssub.s32 %s17, 2
        // Predicated region
        $region53: #{tpu_custom_call.1} parent=51 // pred_check
          %p3276 = pneg %p196
        $region54: #{tpu_custom_call.1} parent=51 // pred_check_branch
          %3278 = sbr.rel (%p3276) target = $region56
        $region55: #{tpu_custom_call.1} parent=51 // pred_region
          %s3279 = sand.u32 %s181, 1
          %s3280 = scalar_lea.sflag [#allocation5], %s3279
          %s3281 = sand.u32 %s181, 1
          %s3282 = smul.addr %s3281, 256
          %s3283 = scalar_lea.vmem [#allocation6], %s3282
          %3285 = dma.done %s3280, 4096
        $region56: #{tpu_custom_call.1} parent=51 // pred_fallthru
          _
      $region52: #{tpu_custom_call.1} parent=5 // pred_fallthru
        _
    $region6: #{tpu_custom_call.1} parent=1 // loop_footer
      %s21 = sadd.s32 1, %s17
    $region7: #{tpu_custom_call.1} parent=1 // loop_footer_branch
      %16 = sbr.rel target = $region3
    $region8: #{tpu_custom_call.1} parent=1 // loop_exit
      _
    %3286 = vsyncpa [#allocation4], 1
    %s3287 = scalar_lea.sflag [#allocation4], 1
    %3288 = vsyncpa %s3287, 1
    %3289 = vsyncpa [#allocation5], 1
    %s3290 = scalar_lea.sflag [#allocation5], 1
    %3291 = vsyncpa %s3290, 1

</llo_original>
